<compile_context>
chip_gen: v7x
topology: tpu7x:2x2x1
jax: 0.10.0
libtpu: 0.0.40
codegen_flags: <defaults>
</compile_context>

<pallas_src>
import functools

import jax
import jax.numpy as jnp
from jax.experimental import pallas as pl
from jax.experimental.pallas import tpu as pltpu


# ---------------------------------------------------------------------------
# Fused Residual-block kernel (one batch element per grid step)
# ---------------------------------------------------------------------------
def _residual_kernel(x_ref, w1_ref, b1_ref, w23_ref, b23_ref, o_ref,
                     xpad_ref, ypad_ref, *, H, W, Cin, Cout):
    KH = KW = 3
    LPAD = 8                 # interior column offset: sublane-aligned
    WP = W + 2 * LPAD        # padded row width (multiple of 8)
    f32 = jnp.float32

    x = x_ref[0]             # (H, W, Cin)

    def fill_padded(pad_ref, interior, C):
        # Zero ONLY the margins the taps read (rows 0 / H+1 and columns
        # LPAD-1 / LPAD+W); the interior is fully overwritten below.
        pad_ref[0:1, :, :] = jnp.zeros((1, WP, C), f32)
        pad_ref[H + 1:H + 2, :, :] = jnp.zeros((1, WP, C), f32)
        pad_ref[:, LPAD - 1:LPAD, :] = jnp.zeros((H + 2, 1, C), f32)
        pad_ref[:, LPAD + W:LPAD + W + 1, :] = jnp.zeros((H + 2, 1, C), f32)
        pad_ref[1:1 + H, LPAD:LPAD + W, :] = interior      # aligned interior write

    def im2col(pad_ref, extra=None):
        # One aligned ref load per dy; the three dx windows are cut out of the
        # loaded value in-register (no shifted VMEM copies).  Tap order matches
        # the weight row order k = dy*3 + dx.
        pieces = []
        for dy in range(KH):
            row = pad_ref[dy:dy + H, :, :]                  # (H, WP, C) aligned
            for dx in range(KW):
                pieces.append(row[:, LPAD - 1 + dx:LPAD - 1 + dx + W, :])
        if extra is not None:                               # fused 1x1-conv skip
            pieces.append(extra)
        slab = jnp.concatenate(pieces, axis=-1)             # (H, W, K)
        return slab.reshape(H * W, slab.shape[-1])          # leading->sublane merge

    # ---- conv1 (3x3, pad=1) + folded BN1 + ReLU : one MXU dot, K = 9*Cin ----
    fill_padded(xpad_ref, x, Cin)
    y1 = jnp.dot(im2col(xpad_ref), w1_ref[...],
                 preferred_element_type=f32) + b1_ref[...]
    y1 = jnp.maximum(y1, 0.0)                               # (H*W, Cout)

    # ---- conv2 (3x3, pad=1) + folded BN2 + fused skip : one dot, K = 9*Cout+Cin ----
    fill_padded(ypad_ref, y1.reshape(H, W, Cout), Cout)
    rhs = im2col(ypad_ref, extra=x)                         # (H*W, 9*Cout + Cin)
    out = jnp.dot(rhs, w23_ref[...],
                  preferred_element_type=f32) + b23_ref[...]
    out = jnp.maximum(out, 0.0)                             # (H*W, Cout)

    # Lane-dense store: (Cout, H*W) with 256 lanes -> unmasked vst.
    o_ref[0] = out.T


# ---------------------------------------------------------------------------
# Wrapper: NCHW in / NCHW out, eval-mode BN folded into weights & biases
# ---------------------------------------------------------------------------
def residual_forward_pallas(x_nchw, p, *, eps=1e-5):
    B, Cin, H, W = x_nchw.shape
    Cout = p["w1"].shape[-1]

    # Single small layout op on the input; everything else stays fused in VMEM.
    x_nhwc = jnp.transpose(x_nchw, (0, 2, 3, 1)).astype(jnp.float32)

    # Fold conv bias + eval-mode BatchNorm into the matmul weights / bias vectors.
    s1 = p["gamma1"] / jnp.sqrt(p["var1"] + eps)
    w1f = (p["w1"] * s1[None, None, :]).reshape(9 * Cin, Cout)
    b1f = ((p["cb1"] - p["mean1"]) * s1 + p["beta1"]).reshape(1, Cout)

    s2 = p["gamma2"] / jnp.sqrt(p["var2"] + eps)
    w2f = (p["w2"] * s2[None, None, :]).reshape(9 * Cout, Cout)
    b2f = (p["cb2"] - p["mean2"]) * s2 + p["beta2"]
    w23 = jnp.concatenate([w2f, p["w3"]], axis=0)           # (9*Cout + Cin, Cout)
    b23 = (b2f + p["cb3"]).reshape(1, Cout)                 # bn2 bias + skip bias

    kern = functools.partial(_residual_kernel, H=H, W=W, Cin=Cin, Cout=Cout)
    out = pl.pallas_call(
        kern,
        out_shape=jax.ShapeDtypeStruct((B, Cout, H * W), jnp.float32),
        grid=(B,),
        in_specs=[
            pl.BlockSpec((1, H, W, Cin), lambda b: (b, 0, 0, 0)),        # x
            pl.BlockSpec((9 * Cin, Cout), lambda b: (0, 0)),             # conv1+bn1 w
            pl.BlockSpec((1, Cout), lambda b: (0, 0)),                   # conv1+bn1 bias
            pl.BlockSpec((9 * Cout + Cin, Cout), lambda b: (0, 0)),      # conv2+bn2 | skip w
            pl.BlockSpec((1, Cout), lambda b: (0, 0)),                   # conv2+bn2+skip bias
        ],
        out_specs=pl.BlockSpec((1, Cout, H * W), lambda b: (b, 0, 0)),   # lane-dense
        scratch_shapes=[
            pltpu.VMEM((H + 2, W + 16, Cin), jnp.float32),               # padded conv1 input
            pltpu.VMEM((H + 2, W + 16, Cout), jnp.float32),              # padded conv2 input
        ],
        compiler_params=pltpu.CompilerParams(dimension_semantics=("parallel",)),
    )(x_nhwc, w1f, b1f, w23, b23)

    return out.reshape(B, Cout, H, W)      # already NCHW; metadata-only reshape


# ---------------------------------------------------------------------------
# Pure-JAX reference (un-folded BN) for correctness checking
# ---------------------------------------------------------------------------
def residual_forward_ref(x_nchw, p, *, eps=1e-5):
    hi = jax.lax.Precision.HIGHEST
    x = jnp.transpose(x_nchw, (0, 2, 3, 1)).astype(jnp.float32)

    def conv3x3(h, w9):  # w9: (9, Ci, Co), row k = dy*3 + dx  ==  HWIO reshape
        k = w9.reshape(3, 3, w9.shape[1], w9.shape[2])
        return jax.lax.conv_general_dilated(
            h, k, window_strides=(1, 1), padding=((1, 1), (1, 1)),
            dimension_numbers=("NHWC", "HWIO", "NHWC"), precision=hi)

    h = conv3x3(x, p["w1"]) + p["cb1"]
    h = (h - p["mean1"]) / jnp.sqrt(p["var1"] + eps) * p["gamma1"] + p["beta1"]
    h = jnp.maximum(h, 0.0)
    h = conv3x3(h, p["w2"]) + p["cb2"]
    h = (h - p["mean2"]) / jnp.sqrt(p["var2"] + eps) * p["gamma2"] + p["beta2"]
    skip = jnp.einsum("bhwc,cd->bhwd", x, p["w3"], precision=hi) + p["cb3"]
    out = jnp.maximum(h + skip, 0.0)
    return jnp.transpose(out, (0, 3, 1, 2))


# ---------------------------------------------------------------------------
# Deterministic synthetic parameters
# (conv weight layout: (9, Cin, Cout), row k = dy*3+dx  <->  torch W[co,ci,dy,dx])
# ---------------------------------------------------------------------------
def make_params(key, cin=4, cout=8):
    ks = jax.random.split(key, 14)
    p = {}
    p["w1"] = 0.2 * jax.random.normal(ks[0], (9, cin, cout), jnp.float32)
    p["cb1"] = 0.1 * jax.random.normal(ks[1], (cout,), jnp.float32)
    p["w2"] = 0.2 * jax.random.normal(ks[2], (9, cout, cout), jnp.float32)
    p["cb2"] = 0.1 * jax.random.normal(ks[3], (cout,), jnp.float32)
    p["w3"] = 0.2 * jax.random.normal(ks[4], (cin, cout), jnp.float32)
    p["cb3"] = 0.1 * jax.random.normal(ks[5], (cout,), jnp.float32)
    p["gamma1"] = 1.0 + 0.1 * jax.random.normal(ks[6], (cout,), jnp.float32)
    p["beta1"] = 0.1 * jax.random.normal(ks[7], (cout,), jnp.float32)
    p["mean1"] = 0.1 * jax.random.normal(ks[8], (cout,), jnp.float32)
    p["var1"] = 1.0 + 0.1 * jax.random.uniform(ks[9], (cout,), jnp.float32)
    p["gamma2"] = 1.0 + 0.1 * jax.random.normal(ks[10], (cout,), jnp.float32)
    p["beta2"] = 0.1 * jax.random.normal(ks[11], (cout,), jnp.float32)
    p["mean2"] = 0.1 * jax.random.normal(ks[12], (cout,), jnp.float32)
    p["var2"] = 1.0 + 0.1 * jax.random.uniform(ks[13], (cout,), jnp.float32)
    return p


if __name__ == "__main__":
    root = jax.random.PRNGKey(0)
    kx, kp = jax.random.split(root)
    x = jax.random.normal(kx, (2, 4, 16, 16), jnp.float32)   # NCHW
    params = make_params(kp, cin=4, cout=8)

    fwd = jax.jit(lambda xx: residual_forward_pallas(xx, params))
    out = jax.block_until_ready(fwd(x))

    ref = residual_forward_ref(x, params)
    assert out.shape == (2, 8, 16, 16), out.shape
    err = float(jnp.max(jnp.abs(out - ref)))
    # Tightened vs. the previous 2e-2; 1e-2 leaves headroom for bf16-pass
    # emulation of f32 MXU matmuls while still catching any real tap/fold bug
    # (those produce O(1) errors).
    assert err < 1e-2, f"max abs err {err}"
    print("KERNEL_OK")
</pallas_src>

<mosaic_0001>
module attributes {stable_mosaic.version = 11 : i64} {
  func.func @_residual_kernel(%arg0: i32, %arg1: memref<1x16x16x4xf32, #tpu.memory_space<vmem>>, %arg2: memref<36x8xf32, #tpu.memory_space<vmem>>, %arg3: memref<1x8xf32, #tpu.memory_space<vmem>>, %arg4: memref<76x8xf32, #tpu.memory_space<vmem>>, %arg5: memref<1x8xf32, #tpu.memory_space<vmem>>, %arg6: memref<1x8x256xf32, #tpu.memory_space<vmem>>, %arg7: memref<18x32x4xf32, #tpu.memory_space<vmem>>, %arg8: memref<18x32x8xf32, #tpu.memory_space<vmem>>) attributes {dimension_semantics = [#tpu.dimension_semantics<parallel>], iteration_bounds = array<i64: 2>, scalar_prefetch = 0 : i64, scratch_operands = 2 : i64, tpu.core_type = #tpu.core_type<tc>, window_params = [{transform_indices = @transform_0, window_bounds = array<i64: 1, 16, 16, 4>}, {pipeline_mode = #tpu.pipeline_mode<synchronous>, transform_indices = @transform_1, window_bounds = array<i64: 36, 8>}, {pipeline_mode = #tpu.pipeline_mode<synchronous>, transform_indices = @transform_2, window_bounds = array<i64: 1, 8>}, {pipeline_mode = #tpu.pipeline_mode<synchronous>, transform_indices = @transform_3, window_bounds = array<i64: 76, 8>}, {pipeline_mode = #tpu.pipeline_mode<synchronous>, transform_indices = @transform_4, window_bounds = array<i64: 1, 8>}, {transform_indices = @transform_5, window_bounds = array<i64: 1, 8, 256>}]} {
    %c0 = arith.constant 0 : index
    %c0_0 = arith.constant 0 : index
    %c0_1 = arith.constant 0 : index
    %c0_2 = arith.constant 0 : index
    %0 = vector.load %arg1[%c0, %c0_0, %c0_1, %c0_2] : memref<1x16x16x4xf32, #tpu.memory_space<vmem>>, vector<1x16x16x4xf32>
    %1 = vector.shape_cast %0 : vector<1x16x16x4xf32> to vector<16x16x4xf32>
    %cst = arith.constant 0.000000e+00 : f32
    %2 = vector.broadcast %cst : f32 to vector<1x32x4xf32>
    %c0_3 = arith.constant 0 : index
    %c0_4 = arith.constant 0 : index
    %c0_5 = arith.constant 0 : index
    %3 = vector.load %arg7[%c0_3, %c0_4, %c0_5] : memref<18x32x4xf32, #tpu.memory_space<vmem>>, vector<1x32x4xf32>
    tpu.vector_store %arg7[%c0_3, %c0_4, %c0_5], %2 {strides = array<i32>} : memref<18x32x4xf32, #tpu.memory_space<vmem>>, vector<1x32x4xf32>,
    %cst_6 = arith.constant 0.000000e+00 : f32
    %4 = vector.broadcast %cst_6 : f32 to vector<1x32x4xf32>
    %c17 = arith.constant 17 : index
    %c0_7 = arith.constant 0 : index
    %c0_8 = arith.constant 0 : index
    %5 = vector.load %arg7[%c17, %c0_7, %c0_8] : memref<18x32x4xf32, #tpu.memory_space<vmem>>, vector<1x32x4xf32>
    tpu.vector_store %arg7[%c17, %c0_7, %c0_8], %4 {strides = array<i32>} : memref<18x32x4xf32, #tpu.memory_space<vmem>>, vector<1x32x4xf32>,
    %cst_9 = arith.constant 0.000000e+00 : f32
    %6 = vector.broadcast %cst_9 : f32 to vector<18x1x4xf32>
    %c0_10 = arith.constant 0 : index
    %c7 = arith.constant 7 : index
    %c0_11 = arith.constant 0 : index
    %7 = vector.load %arg7[%c0_10, %c7, %c0_11] : memref<18x32x4xf32, #tpu.memory_space<vmem>>, vector<18x1x4xf32>
    tpu.vector_store %arg7[%c0_10, %c7, %c0_11], %6 {strides = array<i32>} : memref<18x32x4xf32, #tpu.memory_space<vmem>>, vector<18x1x4xf32>,
    %cst_12 = arith.constant 0.000000e+00 : f32
    %8 = vector.broadcast %cst_12 : f32 to vector<18x1x4xf32>
    %c0_13 = arith.constant 0 : index
    %c24 = arith.constant 24 : index
    %c0_14 = arith.constant 0 : index
    %9 = vector.load %arg7[%c0_13, %c24, %c0_14] : memref<18x32x4xf32, #tpu.memory_space<vmem>>, vector<18x1x4xf32>
    tpu.vector_store %arg7[%c0_13, %c24, %c0_14], %8 {strides = array<i32>} : memref<18x32x4xf32, #tpu.memory_space<vmem>>, vector<18x1x4xf32>,
    %c1 = arith.constant 1 : index
    %c8 = arith.constant 8 : index
    %c0_15 = arith.constant 0 : index
    %10 = vector.load %arg7[%c1, %c8, %c0_15] : memref<18x32x4xf32, #tpu.memory_space<vmem>>, vector<16x16x4xf32>
    tpu.vector_store %arg7[%c1, %c8, %c0_15], %1 {strides = array<i32>} : memref<18x32x4xf32, #tpu.memory_space<vmem>>, vector<16x16x4xf32>,
    %c0_16 = arith.constant 0 : index
    %c0_17 = arith.constant 0 : index
    %c0_18 = arith.constant 0 : index
    %11 = vector.load %arg7[%c0_16, %c0_17, %c0_18] : memref<18x32x4xf32, #tpu.memory_space<vmem>>, vector<16x32x4xf32>
    %12 = vector.extract_strided_slice %11 {offsets = [0, 7, 0], sizes = [16, 16, 4], strides = [1, 1, 1]} : vector<16x32x4xf32> to vector<16x16x4xf32>
    %13 = vector.extract_strided_slice %11 {offsets = [0, 8, 0], sizes = [16, 16, 4], strides = [1, 1, 1]} : vector<16x32x4xf32> to vector<16x16x4xf32>
    %14 = vector.extract_strided_slice %11 {offsets = [0, 9, 0], sizes = [16, 16, 4], strides = [1, 1, 1]} : vector<16x32x4xf32> to vector<16x16x4xf32>
    %c1_19 = arith.constant 1 : index
    %c0_20 = arith.constant 0 : index
    %c0_21 = arith.constant 0 : index
    %15 = vector.load %arg7[%c1_19, %c0_20, %c0_21] : memref<18x32x4xf32, #tpu.memory_space<vmem>>, vector<16x32x4xf32>
    %16 = vector.extract_strided_slice %15 {offsets = [0, 7, 0], sizes = [16, 16, 4], strides = [1, 1, 1]} : vector<16x32x4xf32> to vector<16x16x4xf32>
    %17 = vector.extract_strided_slice %15 {offsets = [0, 8, 0], sizes = [16, 16, 4], strides = [1, 1, 1]} : vector<16x32x4xf32> to vector<16x16x4xf32>
    %18 = vector.extract_strided_slice %15 {offsets = [0, 9, 0], sizes = [16, 16, 4], strides = [1, 1, 1]} : vector<16x32x4xf32> to vector<16x16x4xf32>
    %c2 = arith.constant 2 : index
    %c0_22 = arith.constant 0 : index
    %c0_23 = arith.constant 0 : index
    %19 = vector.load %arg7[%c2, %c0_22, %c0_23] : memref<18x32x4xf32, #tpu.memory_space<vmem>>, vector<16x32x4xf32>
    %20 = vector.extract_strided_slice %19 {offsets = [0, 7, 0], sizes = [16, 16, 4], strides = [1, 1, 1]} : vector<16x32x4xf32> to vector<16x16x4xf32>
    %21 = vector.extract_strided_slice %19 {offsets = [0, 8, 0], sizes = [16, 16, 4], strides = [1, 1, 1]} : vector<16x32x4xf32> to vector<16x16x4xf32>
    %22 = vector.extract_strided_slice %19 {offsets = [0, 9, 0], sizes = [16, 16, 4], strides = [1, 1, 1]} : vector<16x32x4xf32> to vector<16x16x4xf32>
    %23 = tpu.concatenate %12, %13, %14, %16, %17, %18, %20, %21, %22 in 2 : vector<16x16x4xf32>, vector<16x16x4xf32>, vector<16x16x4xf32>, vector<16x16x4xf32>, vector<16x16x4xf32>, vector<16x16x4xf32>, vector<16x16x4xf32>, vector<16x16x4xf32>, vector<16x16x4xf32> -> vector<16x16x36xf32>
    %24 = vector.shape_cast %23 : vector<16x16x36xf32> to vector<256x36xf32>
    %c0_24 = arith.constant 0 : index
    %c0_25 = arith.constant 0 : index
    %25 = vector.load %arg2[%c0_24, %c0_25] : memref<36x8xf32, #tpu.memory_space<vmem>>, vector<36x8xf32>
    %cst_26 = arith.constant dense<0.000000e+00> : vector<256x8xf32>
    %26 = tpu.matmul %24, %25, %cst_26 {dimension_numbers = #tpu.dot_dimension_numbers<[1], [0], [0], [1], [0, 0, 1, 1], [], []>} : vector<256x36xf32>, vector<36x8xf32>, vector<256x8xf32> -> vector<256x8xf32>
    %c0_27 = arith.constant 0 : index
    %c0_28 = arith.constant 0 : index
    %27 = vector.load %arg3[%c0_27, %c0_28] : memref<1x8xf32, #tpu.memory_space<vmem>>, vector<1x8xf32>
    %28 = vector.broadcast %27 : vector<1x8xf32> to vector<256x8xf32>
    %29 = arith.addf %26, %28 : vector<256x8xf32>
    %cst_29 = arith.constant 0.000000e+00 : f32
    %30 = vector.broadcast %cst_29 : f32 to vector<256x8xf32>
    %31 = arith.maximumf %29, %30 : vector<256x8xf32>
    %32 = vector.shape_cast %31 : vector<256x8xf32> to vector<16x16x8xf32>
    %cst_30 = arith.constant 0.000000e+00 : f32
    %33 = vector.broadcast %cst_30 : f32 to vector<1x32x8xf32>
    %c0_31 = arith.constant 0 : index
    %c0_32 = arith.constant 0 : index
    %c0_33 = arith.constant 0 : index
    %34 = vector.load %arg8[%c0_31, %c0_32, %c0_33] : memref<18x32x8xf32, #tpu.memory_space<vmem>>, vector<1x32x8xf32>
    tpu.vector_store %arg8[%c0_31, %c0_32, %c0_33], %33 {strides = array<i32>} : memref<18x32x8xf32, #tpu.memory_space<vmem>>, vector<1x32x8xf32>,
    %cst_34 = arith.constant 0.000000e+00 : f32
    %35 = vector.broadcast %cst_34 : f32 to vector<1x32x8xf32>
    %c17_35 = arith.constant 17 : index
    %c0_36 = arith.constant 0 : index
    %c0_37 = arith.constant 0 : index
    %36 = vector.load %arg8[%c17_35, %c0_36, %c0_37] : memref<18x32x8xf32, #tpu.memory_space<vmem>>, vector<1x32x8xf32>
    tpu.vector_store %arg8[%c17_35, %c0_36, %c0_37], %35 {strides = array<i32>} : memref<18x32x8xf32, #tpu.memory_space<vmem>>, vector<1x32x8xf32>,
    %cst_38 = arith.constant 0.000000e+00 : f32
    %37 = vector.broadcast %cst_38 : f32 to vector<18x1x8xf32>
    %c0_39 = arith.constant 0 : index
    %c7_40 = arith.constant 7 : index
    %c0_41 = arith.constant 0 : index
    %38 = vector.load %arg8[%c0_39, %c7_40, %c0_41] : memref<18x32x8xf32, #tpu.memory_space<vmem>>, vector<18x1x8xf32>
    tpu.vector_store %arg8[%c0_39, %c7_40, %c0_41], %37 {strides = array<i32>} : memref<18x32x8xf32, #tpu.memory_space<vmem>>, vector<18x1x8xf32>,
    %cst_42 = arith.constant 0.000000e+00 : f32
    %39 = vector.broadcast %cst_42 : f32 to vector<18x1x8xf32>
    %c0_43 = arith.constant 0 : index
    %c24_44 = arith.constant 24 : index
    %c0_45 = arith.constant 0 : index
    %40 = vector.load %arg8[%c0_43, %c24_44, %c0_45] : memref<18x32x8xf32, #tpu.memory_space<vmem>>, vector<18x1x8xf32>
    tpu.vector_store %arg8[%c0_43, %c24_44, %c0_45], %39 {strides = array<i32>} : memref<18x32x8xf32, #tpu.memory_space<vmem>>, vector<18x1x8xf32>,
    %c1_46 = arith.constant 1 : index
    %c8_47 = arith.constant 8 : index
    %c0_48 = arith.constant 0 : index
    %41 = vector.load %arg8[%c1_46, %c8_47, %c0_48] : memref<18x32x8xf32, #tpu.memory_space<vmem>>, vector<16x16x8xf32>
    tpu.vector_store %arg8[%c1_46, %c8_47, %c0_48], %32 {strides = array<i32>} : memref<18x32x8xf32, #tpu.memory_space<vmem>>, vector<16x16x8xf32>,
    %c0_49 = arith.constant 0 : index
    %c0_50 = arith.constant 0 : index
    %c0_51 = arith.constant 0 : index
    %42 = vector.load %arg8[%c0_49, %c0_50, %c0_51] : memref<18x32x8xf32, #tpu.memory_space<vmem>>, vector<16x32x8xf32>
    %43 = vector.extract_strided_slice %42 {offsets = [0, 7, 0], sizes = [16, 16, 8], strides = [1, 1, 1]} : vector<16x32x8xf32> to vector<16x16x8xf32>
    %44 = vector.extract_strided_slice %42 {offsets = [0, 8, 0], sizes = [16, 16, 8], strides = [1, 1, 1]} : vector<16x32x8xf32> to vector<16x16x8xf32>
    %45 = vector.extract_strided_slice %42 {offsets = [0, 9, 0], sizes = [16, 16, 8], strides = [1, 1, 1]} : vector<16x32x8xf32> to vector<16x16x8xf32>
    %c1_52 = arith.constant 1 : index
    %c0_53 = arith.constant 0 : index
    %c0_54 = arith.constant 0 : index
    %46 = vector.load %arg8[%c1_52, %c0_53, %c0_54] : memref<18x32x8xf32, #tpu.memory_space<vmem>>, vector<16x32x8xf32>
    %47 = vector.extract_strided_slice %46 {offsets = [0, 7, 0], sizes = [16, 16, 8], strides = [1, 1, 1]} : vector<16x32x8xf32> to vector<16x16x8xf32>
    %48 = vector.extract_strided_slice %46 {offsets = [0, 8, 0], sizes = [16, 16, 8], strides = [1, 1, 1]} : vector<16x32x8xf32> to vector<16x16x8xf32>
    %49 = vector.extract_strided_slice %46 {offsets = [0, 9, 0], sizes = [16, 16, 8], strides = [1, 1, 1]} : vector<16x32x8xf32> to vector<16x16x8xf32>
    %c2_55 = arith.constant 2 : index
    %c0_56 = arith.constant 0 : index
    %c0_57 = arith.constant 0 : index
    %50 = vector.load %arg8[%c2_55, %c0_56, %c0_57] : memref<18x32x8xf32, #tpu.memory_space<vmem>>, vector<16x32x8xf32>
    %51 = vector.extract_strided_slice %50 {offsets = [0, 7, 0], sizes = [16, 16, 8], strides = [1, 1, 1]} : vector<16x32x8xf32> to vector<16x16x8xf32>
    %52 = vector.extract_strided_slice %50 {offsets = [0, 8, 0], sizes = [16, 16, 8], strides = [1, 1, 1]} : vector<16x32x8xf32> to vector<16x16x8xf32>
    %53 = vector.extract_strided_slice %50 {offsets = [0, 9, 0], sizes = [16, 16, 8], strides = [1, 1, 1]} : vector<16x32x8xf32> to vector<16x16x8xf32>
    %54 = tpu.concatenate %43, %44, %45, %47, %48, %49, %51, %52, %53, %1 in 2 : vector<16x16x8xf32>, vector<16x16x8xf32>, vector<16x16x8xf32>, vector<16x16x8xf32>, vector<16x16x8xf32>, vector<16x16x8xf32>, vector<16x16x8xf32>, vector<16x16x8xf32>, vector<16x16x8xf32>, vector<16x16x4xf32> -> vector<16x16x76xf32>
    %55 = vector.shape_cast %54 : vector<16x16x76xf32> to vector<256x76xf32>
    %c0_58 = arith.constant 0 : index
    %c0_59 = arith.constant 0 : index
    %56 = vector.load %arg4[%c0_58, %c0_59] : memref<76x8xf32, #tpu.memory_space<vmem>>, vector<76x8xf32>
    %cst_60 = arith.constant dense<0.000000e+00> : vector<256x8xf32>
    %57 = tpu.matmul %55, %56, %cst_60 {dimension_numbers = #tpu.dot_dimension_numbers<[1], [0], [0], [1], [0, 0, 1, 1], [], []>} : vector<256x76xf32>, vector<76x8xf32>, vector<256x8xf32> -> vector<256x8xf32>
    %c0_61 = arith.constant 0 : index
    %c0_62 = arith.constant 0 : index
    %58 = vector.load %arg5[%c0_61, %c0_62] : memref<1x8xf32, #tpu.memory_space<vmem>>, vector<1x8xf32>
    %59 = vector.broadcast %58 : vector<1x8xf32> to vector<256x8xf32>
    %60 = arith.addf %57, %59 : vector<256x8xf32>
    %cst_63 = arith.constant 0.000000e+00 : f32
    %61 = vector.broadcast %cst_63 : f32 to vector<256x8xf32>
    %62 = arith.maximumf %60, %61 : vector<256x8xf32>
    %63 = tpu.transpose %62, [1, 0] : vector<256x8xf32> -> vector<8x256xf32>
    %c0_64 = arith.constant 0 : index
    %c0_65 = arith.constant 0 : index
    %c0_66 = arith.constant 0 : index
    %64 = vector.load %arg6[%c0_64, %c0_65, %c0_66] : memref<1x8x256xf32, #tpu.memory_space<vmem>>, vector<1x8x256xf32>
    %65 = vector.shape_cast %64 : vector<1x8x256xf32> to vector<8x256xf32>
    %66 = vector.shape_cast %63 : vector<8x256xf32> to vector<1x8x256xf32>
    tpu.vector_store %arg6[%c0_64, %c0_65, %c0_66], %66 {strides = array<i32>} : memref<1x8x256xf32, #tpu.memory_space<vmem>>, vector<1x8x256xf32>,
    return
  }
  func.func @transform_0(%arg0: i32) -> (i32, i32, i32, i32) {
    %c0_i32 = arith.constant 0 : i32
    %c0_i32_0 = arith.constant 0 : i32
    %c0_i32_1 = arith.constant 0 : i32
    %c0_i32_2 = arith.constant 0 : i32
    return %arg0, %c0_i32, %c0_i32_0, %c0_i32_1 : i32, i32, i32, i32
  }
  func.func @transform_1(%arg0: i32) -> (i32, i32) {
    %c0_i32 = arith.constant 0 : i32
    %c0_i32_0 = arith.constant 0 : i32
    %c0_i32_1 = arith.constant 0 : i32
    return %c0_i32, %c0_i32_0 : i32, i32
  }
  func.func @transform_2(%arg0: i32) -> (i32, i32) {
    %c0_i32 = arith.constant 0 : i32
    %c0_i32_0 = arith.constant 0 : i32
    %c0_i32_1 = arith.constant 0 : i32
    return %c0_i32, %c0_i32_0 : i32, i32
  }
  func.func @transform_3(%arg0: i32) -> (i32, i32) {
    %c0_i32 = arith.constant 0 : i32
    %c0_i32_0 = arith.constant 0 : i32
    %c0_i32_1 = arith.constant 0 : i32
    return %c0_i32, %c0_i32_0 : i32, i32
  }
  func.func @transform_4(%arg0: i32) -> (i32, i32) {
    %c0_i32 = arith.constant 0 : i32
    %c0_i32_0 = arith.constant 0 : i32
    %c0_i32_1 = arith.constant 0 : i32
    return %c0_i32, %c0_i32_0 : i32, i32
  }
  func.func @transform_5(%arg0: i32) -> (i32, i32, i32) {
    %c0_i32 = arith.constant 0 : i32
    %c0_i32_0 = arith.constant 0 : i32
    %c0_i32_1 = arith.constant 0 : i32
    return %arg0, %c0_i32, %c0_i32_0 : i32, i32, i32
  }
}

</mosaic_0001>

<llo_original>
// kernel: _lambda_.1
$region0: #{_lambda_.1}
  #allocation0 [shape = 'u32[]', space=smem, size = 0x4, offset = 0x4, fixed_abs, tag = 'smem constant byte address 0x4 - core index']
  #allocation1 [shape = 'u32[144,128]{1,0:T(1,128)}', space=vmem, size = 0x12000, scoped, tag = 'internal scratch']
  #allocation2 [shape = 'f32[18,32,4]{2,1,0:T(8,128)}', space=vmem, size = 0x48000, scoped, tag = 'scratch operand']
  #allocation3 [shape = 'f32[18,32,8]{2,1,0:T(8,128)}', space=vmem, size = 0x48000, scoped, tag = 'scratch operand']
  %s0 = inlined_call_operand.vmem [shape: f32[2,16,16,4], index: 0, kind: input, shape index: {}]
  %s1 = inlined_call_operand.vmem [shape: f32[36,8], index: 1, kind: input, shape index: {}]
  %s2 = inlined_call_operand.vmem [shape: f32[1,8], index: 2, kind: input, shape index: {}]
  %s3 = inlined_call_operand.vmem [shape: f32[76,8], index: 3, kind: input, shape index: {}]
  %s4 = inlined_call_operand.vmem [shape: f32[1,8], index: 4, kind: input, shape index: {}]
  %s5 = inlined_call_operand.vmem [shape: f32[2,8,256], index: 5, kind: output, shape index: {}]
  %s6 = sld [smem:[#allocation0]]
  $region53: #{_lambda_.1} parent=0
    _
  %s8 = ssub.s32 1, %s6
  %s9 = scalar_select 0, %s8, %s6
  loop: start=0, step=1, limit=4
  $region2: #{_lambda_.1} parent=0 // loop_pre_header
    _
  $region3: #{_lambda_.1} parent=0 // loop_header
    %s11 = sphi 0, %s15
    %p12 = scmp.ge.s32.totalorder %s11, 4
    %s21 = sphi 0, %s23
    %s24 = sphi 0, %s21
    %s25 = sphi 0, %s24
    %s41 = sphi 0, %s25
    %s45 = sphi 0, %s45
    %s47 = sphi 0, %s45
    %s48 = sphi 0, %s47
    %s62 = sphi 0, %s48
    %s66 = sphi 0, %s66
    %s68 = sphi 0, %s66
    %s69 = sphi 0, %s68
    %s83 = sphi 0, %s69
    %s87 = sphi 0, %s87
    %s89 = sphi 0, %s87
    %s90 = sphi 0, %s89
    %s104 = sphi 0, %s90
    %s108 = sphi 0, %s108
    %s110 = sphi 0, %s108
    %s111 = sphi 0, %s110
    %s125 = sphi 0, %s111
    %s131 = sphi 0, %s133
    %s134 = sphi 0, %s131
    %s135 = sphi 0, %s134
    %s151 = sphi 0, %s135
  $region4: #{_lambda_.1} parent=0 // loop_header_branch
    %14 = sbr.rel (%p12) target = $region8
  $region5: #{_lambda_.1} parent=0 // loop_body
    %s16 = ssub.s32 %s11, 1
    %s17 = ssub.s32 %s11, 2
    %s18 = sadd.s32 %s11, 1
    %s19 = ssub.s32 %s11, %s18
    %p20 = scmp.eq.s32.totalorder %s19, 0
    %s22 = sadd.s32 %s21, 1
    %s23 = scalar_select %p20, %s21, %s22
    %p26 = pneg %p20
    %p27 = scmp.eq.s32.totalorder %s11, 1
    %p28 = por %p26, %p27
    %p29 = scmp.ne.s32.totalorder %s21, %s24
    %p30 = scmp.eq.s32.totalorder %s11, 0
    %p31 = por %p29, %p30
    %p32 = scmp.ne.s32.totalorder %s21, %s24
    %p33 = scmp.eq.s32.totalorder %s16, 1
    %p34 = por %p32, %p33
    %p35 = scmp.ne.s32.totalorder %s24, %s25
    %p36 = scmp.eq.s32.totalorder %s16, 0
    %p37 = por %p35, %p36
    %p38 = scmp.ne.s32.totalorder %s24, %s25
    %p39 = scmp.eq.s32.totalorder %s17, 1
    %p40 = por %p38, %p39
    %p42 = scmp.ne.s32.totalorder %s25, %s41
    %p43 = scmp.eq.s32.totalorder %s17, 0
    %p44 = por %p42, %p43
    %s46 = sadd.s32 %s45, 1
    %p49 = scmp.eq.s32.totalorder %s11, 1
    %p50 = scmp.ne.s32.totalorder %s45, %s47
    %p51 = scmp.eq.s32.totalorder %s11, 0
    %p52 = por %p50, %p51
    %p53 = scmp.ne.s32.totalorder %s45, %s47
    %p54 = scmp.eq.s32.totalorder %s16, 1
    %p55 = por %p53, %p54
    %p56 = scmp.ne.s32.totalorder %s47, %s48
    %p57 = scmp.eq.s32.totalorder %s16, 0
    %p58 = por %p56, %p57
    %p59 = scmp.ne.s32.totalorder %s47, %s48
    %p60 = scmp.eq.s32.totalorder %s17, 1
    %p61 = por %p59, %p60
    %p63 = scmp.ne.s32.totalorder %s48, %s62
    %p64 = scmp.eq.s32.totalorder %s17, 0
    %p65 = por %p63, %p64
    %s67 = sadd.s32 %s66, 1
    %p70 = scmp.eq.s32.totalorder %s11, 1
    %p71 = scmp.ne.s32.totalorder %s66, %s68
    %p72 = scmp.eq.s32.totalorder %s11, 0
    %p73 = por %p71, %p72
    %p74 = scmp.ne.s32.totalorder %s66, %s68
    %p75 = scmp.eq.s32.totalorder %s16, 1
    %p76 = por %p74, %p75
    %p77 = scmp.ne.s32.totalorder %s68, %s69
    %p78 = scmp.eq.s32.totalorder %s16, 0
    %p79 = por %p77, %p78
    %p80 = scmp.ne.s32.totalorder %s68, %s69
    %p81 = scmp.eq.s32.totalorder %s17, 1
    %p82 = por %p80, %p81
    %p84 = scmp.ne.s32.totalorder %s69, %s83
    %p85 = scmp.eq.s32.totalorder %s17, 0
    %p86 = por %p84, %p85
    %s88 = sadd.s32 %s87, 1
    %p91 = scmp.eq.s32.totalorder %s11, 1
    %p92 = scmp.ne.s32.totalorder %s87, %s89
    %p93 = scmp.eq.s32.totalorder %s11, 0
    %p94 = por %p92, %p93
    %p95 = scmp.ne.s32.totalorder %s87, %s89
    %p96 = scmp.eq.s32.totalorder %s16, 1
    %p97 = por %p95, %p96
    %p98 = scmp.ne.s32.totalorder %s89, %s90
    %p99 = scmp.eq.s32.totalorder %s16, 0
    %p100 = por %p98, %p99
    %p101 = scmp.ne.s32.totalorder %s89, %s90
    %p102 = scmp.eq.s32.totalorder %s17, 1
    %p103 = por %p101, %p102
    %p105 = scmp.ne.s32.totalorder %s90, %s104
    %p106 = scmp.eq.s32.totalorder %s17, 0
    %p107 = por %p105, %p106
    %s109 = sadd.s32 %s108, 1
    %p112 = scmp.eq.s32.totalorder %s11, 1
    %p113 = scmp.ne.s32.totalorder %s108, %s110
    %p114 = scmp.eq.s32.totalorder %s11, 0
    %p115 = por %p113, %p114
    %p116 = scmp.ne.s32.totalorder %s108, %s110
    %p117 = scmp.eq.s32.totalorder %s16, 1
    %p118 = por %p116, %p117
    %p119 = scmp.ne.s32.totalorder %s110, %s111
    %p120 = scmp.eq.s32.totalorder %s16, 0
    %p121 = por %p119, %p120
    %p122 = scmp.ne.s32.totalorder %s110, %s111
    %p123 = scmp.eq.s32.totalorder %s17, 1
    %p124 = por %p122, %p123
    %p126 = scmp.ne.s32.totalorder %s111, %s125
    %p127 = scmp.eq.s32.totalorder %s17, 0
    %p128 = por %p126, %p127
    %s129 = ssub.s32 %s11, %s18
    %p130 = scmp.eq.s32.totalorder %s129, 0
    %s132 = sadd.s32 %s131, 1
    %s133 = scalar_select %p130, %s131, %s132
    %p136 = pneg %p130
    %p137 = scmp.eq.s32.totalorder %s11, 1
    %p138 = por %p136, %p137
    %p139 = scmp.ne.s32.totalorder %s131, %s134
    %p140 = scmp.eq.s32.totalorder %s11, 0
    %p141 = por %p139, %p140
    %p142 = scmp.ne.s32.totalorder %s131, %s134
    %p143 = scmp.eq.s32.totalorder %s16, 1
    %p144 = por %p142, %p143
    %p145 = scmp.ne.s32.totalorder %s134, %s135
    %p146 = scmp.eq.s32.totalorder %s16, 0
    %p147 = por %p145, %p146
    %p148 = scmp.ne.s32.totalorder %s134, %s135
    %p149 = scmp.eq.s32.totalorder %s17, 1
    %p150 = por %p148, %p149
    %p152 = scmp.ne.s32.totalorder %s135, %s151
    %p153 = scmp.eq.s32.totalorder %s17, 0
    %p154 = por %p152, %p153
    %p155 = scmp.le.s32.totalorder 1, %s11
    %p156 = scmp.lt.s32.totalorder %s11, 3
    %p157 = pnand %p155, %p156
    %p158 = pneg %p157
    // Predicated region
    $region9: #{_lambda_.1} parent=5 // pred_check
      _
    $region10: #{_lambda_.1} parent=5 // pred_check_branch
      %160 = sbr.rel (%p157) target = $region12
    $region11: #{_lambda_.1} parent=5 // pred_region
      %s161 = ssub.s32 %s11, 1
      // Predicated region
      $region13: #{_lambda_.1} parent=11 // pred_check
        %p162 = pneg %p58
      $region14: #{_lambda_.1} parent=11 // pred_check_branch
        %164 = sbr.rel (%p162) target = $region16
      $region15: #{_lambda_.1} parent=11 // pred_region
        _
      $region16: #{_lambda_.1} parent=11 // pred_fallthru
        _
      // Predicated region
      $region17: #{_lambda_.1} parent=11 // pred_check
        %p165 = pneg %p79
      $region18: #{_lambda_.1} parent=11 // pred_check_branch
        %167 = sbr.rel (%p165) target = $region20
      $region19: #{_lambda_.1} parent=11 // pred_region
        _
      $region20: #{_lambda_.1} parent=11 // pred_fallthru
        _
      // Predicated region
      $region21: #{_lambda_.1} parent=11 // pred_check
        %p168 = pneg %p100
      $region22: #{_lambda_.1} parent=11 // pred_check_branch
        %170 = sbr.rel (%p168) target = $region24
      $region23: #{_lambda_.1} parent=11 // pred_region
        _
      $region24: #{_lambda_.1} parent=11 // pred_fallthru
        _
      // Predicated region
      $region25: #{_lambda_.1} parent=11 // pred_check
        %p171 = pneg %p121
      $region26: #{_lambda_.1} parent=11 // pred_check_branch
        %173 = sbr.rel (%p171) target = $region28
      $region27: #{_lambda_.1} parent=11 // pred_region
        _
      $region28: #{_lambda_.1} parent=11 // pred_fallthru
        _
    $region12: #{_lambda_.1} parent=5 // pred_fallthru
      _
    %p174 = scmp.lt.s32.totalorder %s11, 2
    // Predicated region
    $region29: #{_lambda_.1} parent=5 // pred_check
      %p175 = pneg %p174
    $region30: #{_lambda_.1} parent=5 // pred_check_branch
      %177 = sbr.rel (%p175) target = $region32
    $region31: #{_lambda_.1} parent=5 // pred_region
      // Predicated region
      $region33: #{_lambda_.1} parent=31 // pred_check
        %p178 = pneg %p31
      $region34: #{_lambda_.1} parent=31 // pred_check_branch
        %180 = sbr.rel (%p178) target = $region36
      $region35: #{_lambda_.1} parent=31 // pred_region
        %p181 = scmp.lt.s32.totalorder %s11, 1
        %s182 = scalar_select %p181, %s11, 1
        %s183 = smul.addr %s182, 32
        %s184 = smul.addr %s183, 8
        %s185 = scalar_lea.vmem %s0, %s184
      $region36: #{_lambda_.1} parent=31 // pred_fallthru
        _
    $region32: #{_lambda_.1} parent=5 // pred_fallthru
      _
    %p186 = scmp.le.s32.totalorder 1, %s11
    %p187 = scmp.lt.s32.totalorder %s11, 3
    %p188 = pnand %p186, %p187
    %p189 = pneg %p188
    // Predicated region
    $region37: #{_lambda_.1} parent=5 // pred_check
      _
    $region38: #{_lambda_.1} parent=5 // pred_check_branch
      %191 = sbr.rel (%p188) target = $region40
    $region39: #{_lambda_.1} parent=5 // pred_region
      %s192 = ssub.s32 %s11, 1
      %p193 = scmp.lt.s32.totalorder %s16, 1
      %s194 = scalar_select %p193, %s16, 1
      %s195 = smul.addr %s194, 32
      %s196 = smul.addr %s195, 8
      %s197 = scalar_lea.vmem %s0, %s196
      %p198 = pneg %p37
      %p199 = pneg %p34
      %p200 = pneg %p58
      %p201 = pneg %p55
      %p202 = pneg %p79
      %p203 = pneg %p76
      %p204 = pneg %p100
      %p205 = pneg %p97
      %p206 = pneg %p121
      %p207 = pneg %p118
      %p208 = pneg %p147
      %p209 = pneg %p144
      %p210 = scmp.lt.s32.totalorder %s16, 1
      %s211 = scalar_select %p210, %s16, 1
      %s212 = smul.addr %s211, 2
      %s213 = smul.addr %s212, 8
      %s214 = scalar_lea.vmem %s5, %s213
      %p215 = scmp.lt.s32.totalorder %s16, 1
      %s216 = scalar_select %p215, %s16, 1
      %s217 = smul.addr %s216, 32
      %s218 = smul.addr %s217, 8
      %s219 = scalar_lea.vmem %s0, %s218
      %p220 = scmp.lt.s32.totalorder %s16, 1
      %s221 = scalar_select %p220, %s16, 1
      %s222 = smul.addr %s221, 2
      %s223 = smul.addr %s222, 8
      %s224 = scalar_lea.vmem %s5, %s223
      %v225 = vld [vmem:[%s219] sm:$0xff]
      %v226 = vld [vmem:[%s219 + $0x8] sm:$0xff]
      %v227 = vld [vmem:[%s219 + $0x10] sm:$0xff]
      %v228 = vld [vmem:[%s219 + $0x18] sm:$0xff]
      %v229 = vld [vmem:[%s219 + $0x20] sm:$0xff]
      %v230 = vld [vmem:[%s219 + $0x28] sm:$0xff]
      %v231 = vld [vmem:[%s219 + $0x30] sm:$0xff]
      %v232 = vld [vmem:[%s219 + $0x38] sm:$0xff]
      %v233 = vld [vmem:[%s219 + $0x40] sm:$0xff]
      %v234 = vld [vmem:[%s219 + $0x48] sm:$0xff]
      %v235 = vld [vmem:[%s219 + $0x50] sm:$0xff]
      %v236 = vld [vmem:[%s219 + $0x58] sm:$0xff]
      %v237 = vld [vmem:[%s219 + $0x60] sm:$0xff]
      %v238 = vld [vmem:[%s219 + $0x68] sm:$0xff]
      %v239 = vld [vmem:[%s219 + $0x70] sm:$0xff]
      %v240 = vld [vmem:[%s219 + $0x78] sm:$0xff]
      %v241 = vld [vmem:[%s219 + $0x80] sm:$0xff]
      %v242 = vld [vmem:[%s219 + $0x88] sm:$0xff]
      %v243 = vld [vmem:[%s219 + $0x90] sm:$0xff]
      %v244 = vld [vmem:[%s219 + $0x98] sm:$0xff]
      %v245 = vld [vmem:[%s219 + $0xa0] sm:$0xff]
      %v246 = vld [vmem:[%s219 + $0xa8] sm:$0xff]
      %v247 = vld [vmem:[%s219 + $0xb0] sm:$0xff]
      %v248 = vld [vmem:[%s219 + $0xb8] sm:$0xff]
      %v249 = vld [vmem:[%s219 + $0xc0] sm:$0xff]
      %v250 = vld [vmem:[%s219 + $0xc8] sm:$0xff]
      %v251 = vld [vmem:[%s219 + $0xd0] sm:$0xff]
      %v252 = vld [vmem:[%s219 + $0xd8] sm:$0xff]
      %v253 = vld [vmem:[%s219 + $0xe0] sm:$0xff]
      %v254 = vld [vmem:[%s219 + $0xe8] sm:$0xff]
      %v255 = vld [vmem:[%s219 + $0xf0] sm:$0xff]
      %v256 = vld [vmem:[%s219 + $0xf8] sm:$0xff]
      %vm257 = vcmask 31744
      %258 = vst.msk [vmem:[#allocation2] sm:$0xff] %vm257, 0.0
      %259 = vst.msk [vmem:[#allocation2 + $0x8] sm:$0xff] %vm257, 0.0
      %260 = vst.msk [vmem:[#allocation2 + $0x10] sm:$0xff] %vm257, 0.0
      %261 = vst.msk [vmem:[#allocation2 + $0x18] sm:$0xff] %vm257, 0.0
      %s262 = scalar_lea.vmem [#allocation2], 544
      %263 = vst.msk [vmem:[%s262] sm:$0xff] %vm257, 0.0
      %264 = vst.msk [vmem:[%s262 + $0x8] sm:$0xff] %vm257, 0.0
      %265 = vst.msk [vmem:[%s262 + $0x10] sm:$0xff] %vm257, 0.0
      %266 = vst.msk [vmem:[%s262 + $0x18] sm:$0xff] %vm257, 0.0
      %vm267 = vcmask 24576
      %268 = vst.msk [vmem:[#allocation2 + $0x7] sm:$0x1] %vm267, 0.0
      %269 = vst.msk [vmem:[#allocation2 + $0x27] sm:$0x1] %vm267, 0.0
      %270 = vst.msk [vmem:[#allocation2 + $0x47] sm:$0x1] %vm267, 0.0
      %271 = vst.msk [vmem:[#allocation2 + $0x67] sm:$0x1] %vm267, 0.0
      %272 = vst.msk [vmem:[#allocation2 + $0x87] sm:$0x1] %vm267, 0.0
      %273 = vst.msk [vmem:[#allocation2 + $0xa7] sm:$0x1] %vm267, 0.0
      %274 = vst.msk [vmem:[#allocation2 + $0xc7] sm:$0x1] %vm267, 0.0
      %275 = vst.msk [vmem:[#allocation2 + $0xe7] sm:$0x1] %vm267, 0.0
      %276 = vst.msk [vmem:[#allocation2 + $0x107] sm:$0x1] %vm267, 0.0
      %277 = vst.msk [vmem:[#allocation2 + $0x127] sm:$0x1] %vm267, 0.0
      %278 = vst.msk [vmem:[#allocation2 + $0x147] sm:$0x1] %vm267, 0.0
      %279 = vst.msk [vmem:[#allocation2 + $0x167] sm:$0x1] %vm267, 0.0
      %280 = vst.msk [vmem:[#allocation2 + $0x187] sm:$0x1] %vm267, 0.0
      %281 = vst.msk [vmem:[#allocation2 + $0x1a7] sm:$0x1] %vm267, 0.0
      %282 = vst.msk [vmem:[#allocation2 + $0x1c7] sm:$0x1] %vm267, 0.0
      %283 = vst.msk [vmem:[#allocation2 + $0x1e7] sm:$0x1] %vm267, 0.0
      %284 = vst.msk [vmem:[#allocation2 + $0x207] sm:$0x1] %vm267, 0.0
      %285 = vst.msk [vmem:[#allocation2 + $0x227] sm:$0x1] %vm267, 0.0
      %286 = vst.msk [vmem:[#allocation2 + $0x18] sm:$0x1] %vm267, 0.0
      %287 = vst.msk [vmem:[#allocation2 + $0x38] sm:$0x1] %vm267, 0.0
      %288 = vst.msk [vmem:[#allocation2 + $0x58] sm:$0x1] %vm267, 0.0
      %289 = vst.msk [vmem:[#allocation2 + $0x78] sm:$0x1] %vm267, 0.0
      %290 = vst.msk [vmem:[#allocation2 + $0x98] sm:$0x1] %vm267, 0.0
      %291 = vst.msk [vmem:[#allocation2 + $0xb8] sm:$0x1] %vm267, 0.0
      %292 = vst.msk [vmem:[#allocation2 + $0xd8] sm:$0x1] %vm267, 0.0
      %293 = vst.msk [vmem:[#allocation2 + $0xf8] sm:$0x1] %vm267, 0.0
      %294 = vst.msk [vmem:[#allocation2 + $0x118] sm:$0x1] %vm267, 0.0
      %295 = vst.msk [vmem:[#allocation2 + $0x138] sm:$0x1] %vm267, 0.0
      %296 = vst.msk [vmem:[#allocation2 + $0x158] sm:$0x1] %vm267, 0.0
      %297 = vst.msk [vmem:[#allocation2 + $0x178] sm:$0x1] %vm267, 0.0
      %298 = vst.msk [vmem:[#allocation2 + $0x198] sm:$0x1] %vm267, 0.0
      %299 = vst.msk [vmem:[#allocation2 + $0x1b8] sm:$0x1] %vm267, 0.0
      %300 = vst.msk [vmem:[#allocation2 + $0x1d8] sm:$0x1] %vm267, 0.0
      %301 = vst.msk [vmem:[#allocation2 + $0x1f8] sm:$0x1] %vm267, 0.0
      %302 = vst.msk [vmem:[#allocation2 + $0x218] sm:$0x1] %vm267, 0.0
      %303 = vst.msk [vmem:[#allocation2 + $0x238] sm:$0x1] %vm267, 0.0
      %s304 = scalar_lea.vmem [#allocation2], 32
      %305 = vst.msk [vmem:[%s304 + $0x8] sm:$0xff] %vm257, %v225
      %306 = vst.msk [vmem:[%s304 + $0x10] sm:$0xff] %vm257, %v226
      %307 = vst.msk [vmem:[%s304 + $0x28] sm:$0xff] %vm257, %v227
      %308 = vst.msk [vmem:[%s304 + $0x30] sm:$0xff] %vm257, %v228
      %309 = vst.msk [vmem:[%s304 + $0x48] sm:$0xff] %vm257, %v229
      %310 = vst.msk [vmem:[%s304 + $0x50] sm:$0xff] %vm257, %v230
      %311 = vst.msk [vmem:[%s304 + $0x68] sm:$0xff] %vm257, %v231
      %312 = vst.msk [vmem:[%s304 + $0x70] sm:$0xff] %vm257, %v232
      %313 = vst.msk [vmem:[%s304 + $0x88] sm:$0xff] %vm257, %v233
      %314 = vst.msk [vmem:[%s304 + $0x90] sm:$0xff] %vm257, %v234
      %315 = vst.msk [vmem:[%s304 + $0xa8] sm:$0xff] %vm257, %v235
      %316 = vst.msk [vmem:[%s304 + $0xb0] sm:$0xff] %vm257, %v236
      %317 = vst.msk [vmem:[%s304 + $0xc8] sm:$0xff] %vm257, %v237
      %318 = vst.msk [vmem:[%s304 + $0xd0] sm:$0xff] %vm257, %v238
      %319 = vst.msk [vmem:[%s304 + $0xe8] sm:$0xff] %vm257, %v239
      %320 = vst.msk [vmem:[%s304 + $0xf0] sm:$0xff] %vm257, %v240
      %321 = vst.msk [vmem:[%s304 + $0x108] sm:$0xff] %vm257, %v241
      %322 = vst.msk [vmem:[%s304 + $0x110] sm:$0xff] %vm257, %v242
      %323 = vst.msk [vmem:[%s304 + $0x128] sm:$0xff] %vm257, %v243
      %324 = vst.msk [vmem:[%s304 + $0x130] sm:$0xff] %vm257, %v244
      %325 = vst.msk [vmem:[%s304 + $0x148] sm:$0xff] %vm257, %v245
      %326 = vst.msk [vmem:[%s304 + $0x150] sm:$0xff] %vm257, %v246
      %327 = vst.msk [vmem:[%s304 + $0x168] sm:$0xff] %vm257, %v247
      %328 = vst.msk [vmem:[%s304 + $0x170] sm:$0xff] %vm257, %v248
      %329 = vst.msk [vmem:[%s304 + $0x188] sm:$0xff] %vm257, %v249
      %330 = vst.msk [vmem:[%s304 + $0x190] sm:$0xff] %vm257, %v250
      %331 = vst.msk [vmem:[%s304 + $0x1a8] sm:$0xff] %vm257, %v251
      %332 = vst.msk [vmem:[%s304 + $0x1b0] sm:$0xff] %vm257, %v252
      %333 = vst.msk [vmem:[%s304 + $0x1c8] sm:$0xff] %vm257, %v253
      %334 = vst.msk [vmem:[%s304 + $0x1d0] sm:$0xff] %vm257, %v254
      %335 = vst.msk [vmem:[%s304 + $0x1e8] sm:$0xff] %vm257, %v255
      %336 = vst.msk [vmem:[%s304 + $0x1f0] sm:$0xff] %vm257, %v256
      %v337 = vld [vmem:[#allocation2] sm:$0xff]
      %v338 = vld [vmem:[#allocation2 + $0x8] sm:$0xff]
      %v339 = vld [vmem:[#allocation2 + $0x10] sm:$0xff]
      %v340 = vld [vmem:[#allocation2 + $0x18] sm:$0xff]
      %v341 = vld [vmem:[#allocation2 + $0x20] sm:$0xff]
      %v342 = vld [vmem:[#allocation2 + $0x28] sm:$0xff]
      %v343 = vld [vmem:[#allocation2 + $0x30] sm:$0xff]
      %v344 = vld [vmem:[#allocation2 + $0x38] sm:$0xff]
      %v345 = vld [vmem:[#allocation2 + $0x40] sm:$0xff]
      %v346 = vld [vmem:[#allocation2 + $0x48] sm:$0xff]
      %v347 = vld [vmem:[#allocation2 + $0x50] sm:$0xff]
      %v348 = vld [vmem:[#allocation2 + $0x58] sm:$0xff]
      %v349 = vld [vmem:[#allocation2 + $0x60] sm:$0xff]
      %v350 = vld [vmem:[#allocation2 + $0x68] sm:$0xff]
      %v351 = vld [vmem:[#allocation2 + $0x70] sm:$0xff]
      %v352 = vld [vmem:[#allocation2 + $0x78] sm:$0xff]
      %v353 = vld [vmem:[#allocation2 + $0x80] sm:$0xff]
      %v354 = vld [vmem:[#allocation2 + $0x88] sm:$0xff]
      %v355 = vld [vmem:[#allocation2 + $0x90] sm:$0xff]
      %v356 = vld [vmem:[#allocation2 + $0x98] sm:$0xff]
      %v357 = vld [vmem:[#allocation2 + $0xa0] sm:$0xff]
      %v358 = vld [vmem:[#allocation2 + $0xa8] sm:$0xff]
      %v359 = vld [vmem:[#allocation2 + $0xb0] sm:$0xff]
      %v360 = vld [vmem:[#allocation2 + $0xb8] sm:$0xff]
      %v361 = vld [vmem:[#allocation2 + $0xc0] sm:$0xff]
      %v362 = vld [vmem:[#allocation2 + $0xc8] sm:$0xff]
      %v363 = vld [vmem:[#allocation2 + $0xd0] sm:$0xff]
      %v364 = vld [vmem:[#allocation2 + $0xd8] sm:$0xff]
      %v365 = vld [vmem:[#allocation2 + $0xe0] sm:$0xff]
      %v366 = vld [vmem:[#allocation2 + $0xe8] sm:$0xff]
      %v367 = vld [vmem:[#allocation2 + $0xf0] sm:$0xff]
      %v368 = vld [vmem:[#allocation2 + $0xf8] sm:$0xff]
      %v369 = vld [vmem:[#allocation2 + $0x100] sm:$0xff]
      %v370 = vld [vmem:[#allocation2 + $0x108] sm:$0xff]
      %v371 = vld [vmem:[#allocation2 + $0x110] sm:$0xff]
      %v372 = vld [vmem:[#allocation2 + $0x118] sm:$0xff]
      %v373 = vld [vmem:[#allocation2 + $0x120] sm:$0xff]
      %v374 = vld [vmem:[#allocation2 + $0x128] sm:$0xff]
      %v375 = vld [vmem:[#allocation2 + $0x130] sm:$0xff]
      %v376 = vld [vmem:[#allocation2 + $0x138] sm:$0xff]
      %v377 = vld [vmem:[#allocation2 + $0x140] sm:$0xff]
      %v378 = vld [vmem:[#allocation2 + $0x148] sm:$0xff]
      %v379 = vld [vmem:[#allocation2 + $0x150] sm:$0xff]
      %v380 = vld [vmem:[#allocation2 + $0x158] sm:$0xff]
      %v381 = vld [vmem:[#allocation2 + $0x160] sm:$0xff]
      %v382 = vld [vmem:[#allocation2 + $0x168] sm:$0xff]
      %v383 = vld [vmem:[#allocation2 + $0x170] sm:$0xff]
      %v384 = vld [vmem:[#allocation2 + $0x178] sm:$0xff]
      %v385 = vld [vmem:[#allocation2 + $0x180] sm:$0xff]
      %v386 = vld [vmem:[#allocation2 + $0x188] sm:$0xff]
      %v387 = vld [vmem:[#allocation2 + $0x190] sm:$0xff]
      %v388 = vld [vmem:[#allocation2 + $0x198] sm:$0xff]
      %v389 = vld [vmem:[#allocation2 + $0x1a0] sm:$0xff]
      %v390 = vld [vmem:[#allocation2 + $0x1a8] sm:$0xff]
      %v391 = vld [vmem:[#allocation2 + $0x1b0] sm:$0xff]
      %v392 = vld [vmem:[#allocation2 + $0x1b8] sm:$0xff]
      %v393 = vld [vmem:[#allocation2 + $0x1c0] sm:$0xff]
      %v394 = vld [vmem:[#allocation2 + $0x1c8] sm:$0xff]
      %v395 = vld [vmem:[#allocation2 + $0x1d0] sm:$0xff]
      %v396 = vld [vmem:[#allocation2 + $0x1d8] sm:$0xff]
      %v397 = vld [vmem:[#allocation2 + $0x1e0] sm:$0xff]
      %v398 = vld [vmem:[#allocation2 + $0x1e8] sm:$0xff]
      %v399 = vld [vmem:[#allocation2 + $0x1f0] sm:$0xff]
      %v400 = vld [vmem:[#allocation2 + $0x1f8] sm:$0xff]
      %v401 = vld [vmem:[%s304] sm:$0xff]
      %v402 = vld [vmem:[%s304 + $0x8] sm:$0xff]
      %v403 = vld [vmem:[%s304 + $0x10] sm:$0xff]
      %v404 = vld [vmem:[%s304 + $0x18] sm:$0xff]
      %v405 = vld [vmem:[%s304 + $0x20] sm:$0xff]
      %v406 = vld [vmem:[%s304 + $0x28] sm:$0xff]
      %v407 = vld [vmem:[%s304 + $0x30] sm:$0xff]
      %v408 = vld [vmem:[%s304 + $0x38] sm:$0xff]
      %v409 = vld [vmem:[%s304 + $0x40] sm:$0xff]
      %v410 = vld [vmem:[%s304 + $0x48] sm:$0xff]
      %v411 = vld [vmem:[%s304 + $0x50] sm:$0xff]
      %v412 = vld [vmem:[%s304 + $0x58] sm:$0xff]
      %v413 = vld [vmem:[%s304 + $0x60] sm:$0xff]
      %v414 = vld [vmem:[%s304 + $0x68] sm:$0xff]
      %v415 = vld [vmem:[%s304 + $0x70] sm:$0xff]
      %v416 = vld [vmem:[%s304 + $0x78] sm:$0xff]
      %v417 = vld [vmem:[%s304 + $0x80] sm:$0xff]
      %v418 = vld [vmem:[%s304 + $0x88] sm:$0xff]
      %v419 = vld [vmem:[%s304 + $0x90] sm:$0xff]
      %v420 = vld [vmem:[%s304 + $0x98] sm:$0xff]
      %v421 = vld [vmem:[%s304 + $0xa0] sm:$0xff]
      %v422 = vld [vmem:[%s304 + $0xa8] sm:$0xff]
      %v423 = vld [vmem:[%s304 + $0xb0] sm:$0xff]
      %v424 = vld [vmem:[%s304 + $0xb8] sm:$0xff]
      %v425 = vld [vmem:[%s304 + $0xc0] sm:$0xff]
      %v426 = vld [vmem:[%s304 + $0xc8] sm:$0xff]
      %v427 = vld [vmem:[%s304 + $0xd0] sm:$0xff]
      %v428 = vld [vmem:[%s304 + $0xd8] sm:$0xff]
      %v429 = vld [vmem:[%s304 + $0xe0] sm:$0xff]
      %v430 = vld [vmem:[%s304 + $0xe8] sm:$0xff]
      %v431 = vld [vmem:[%s304 + $0xf0] sm:$0xff]
      %v432 = vld [vmem:[%s304 + $0xf8] sm:$0xff]
      %v433 = vld [vmem:[%s304 + $0x100] sm:$0xff]
      %v434 = vld [vmem:[%s304 + $0x108] sm:$0xff]
      %v435 = vld [vmem:[%s304 + $0x110] sm:$0xff]
      %v436 = vld [vmem:[%s304 + $0x118] sm:$0xff]
      %v437 = vld [vmem:[%s304 + $0x120] sm:$0xff]
      %v438 = vld [vmem:[%s304 + $0x128] sm:$0xff]
      %v439 = vld [vmem:[%s304 + $0x130] sm:$0xff]
      %v440 = vld [vmem:[%s304 + $0x138] sm:$0xff]
      %v441 = vld [vmem:[%s304 + $0x140] sm:$0xff]
      %v442 = vld [vmem:[%s304 + $0x148] sm:$0xff]
      %v443 = vld [vmem:[%s304 + $0x150] sm:$0xff]
      %v444 = vld [vmem:[%s304 + $0x158] sm:$0xff]
      %v445 = vld [vmem:[%s304 + $0x160] sm:$0xff]
      %v446 = vld [vmem:[%s304 + $0x168] sm:$0xff]
      %v447 = vld [vmem:[%s304 + $0x170] sm:$0xff]
      %v448 = vld [vmem:[%s304 + $0x178] sm:$0xff]
      %v449 = vld [vmem:[%s304 + $0x180] sm:$0xff]
      %v450 = vld [vmem:[%s304 + $0x188] sm:$0xff]
      %v451 = vld [vmem:[%s304 + $0x190] sm:$0xff]
      %v452 = vld [vmem:[%s304 + $0x198] sm:$0xff]
      %v453 = vld [vmem:[%s304 + $0x1a0] sm:$0xff]
      %v454 = vld [vmem:[%s304 + $0x1a8] sm:$0xff]
      %v455 = vld [vmem:[%s304 + $0x1b0] sm:$0xff]
      %v456 = vld [vmem:[%s304 + $0x1b8] sm:$0xff]
      %v457 = vld [vmem:[%s304 + $0x1c0] sm:$0xff]
      %v458 = vld [vmem:[%s304 + $0x1c8] sm:$0xff]
      %v459 = vld [vmem:[%s304 + $0x1d0] sm:$0xff]
      %v460 = vld [vmem:[%s304 + $0x1d8] sm:$0xff]
      %v461 = vld [vmem:[%s304 + $0x1e0] sm:$0xff]
      %v462 = vld [vmem:[%s304 + $0x1e8] sm:$0xff]
      %v463 = vld [vmem:[%s304 + $0x1f0] sm:$0xff]
      %v464 = vld [vmem:[%s304 + $0x1f8] sm:$0xff]
      %s465 = scalar_lea.vmem [#allocation2], 64
      %v466 = vld [vmem:[%s465] sm:$0xff]
      %v467 = vld [vmem:[%s465 + $0x8] sm:$0xff]
      %v468 = vld [vmem:[%s465 + $0x10] sm:$0xff]
      %v469 = vld [vmem:[%s465 + $0x18] sm:$0xff]
      %v470 = vld [vmem:[%s465 + $0x20] sm:$0xff]
      %v471 = vld [vmem:[%s465 + $0x28] sm:$0xff]
      %v472 = vld [vmem:[%s465 + $0x30] sm:$0xff]
      %v473 = vld [vmem:[%s465 + $0x38] sm:$0xff]
      %v474 = vld [vmem:[%s465 + $0x40] sm:$0xff]
      %v475 = vld [vmem:[%s465 + $0x48] sm:$0xff]
      %v476 = vld [vmem:[%s465 + $0x50] sm:$0xff]
      %v477 = vld [vmem:[%s465 + $0x58] sm:$0xff]
      %v478 = vld [vmem:[%s465 + $0x60] sm:$0xff]
      %v479 = vld [vmem:[%s465 + $0x68] sm:$0xff]
      %v480 = vld [vmem:[%s465 + $0x70] sm:$0xff]
      %v481 = vld [vmem:[%s465 + $0x78] sm:$0xff]
      %v482 = vld [vmem:[%s465 + $0x80] sm:$0xff]
      %v483 = vld [vmem:[%s465 + $0x88] sm:$0xff]
      %v484 = vld [vmem:[%s465 + $0x90] sm:$0xff]
      %v485 = vld [vmem:[%s465 + $0x98] sm:$0xff]
      %v486 = vld [vmem:[%s465 + $0xa0] sm:$0xff]
      %v487 = vld [vmem:[%s465 + $0xa8] sm:$0xff]
      %v488 = vld [vmem:[%s465 + $0xb0] sm:$0xff]
      %v489 = vld [vmem:[%s465 + $0xb8] sm:$0xff]
      %v490 = vld [vmem:[%s465 + $0xc0] sm:$0xff]
      %v491 = vld [vmem:[%s465 + $0xc8] sm:$0xff]
      %v492 = vld [vmem:[%s465 + $0xd0] sm:$0xff]
      %v493 = vld [vmem:[%s465 + $0xd8] sm:$0xff]
      %v494 = vld [vmem:[%s465 + $0xe0] sm:$0xff]
      %v495 = vld [vmem:[%s465 + $0xe8] sm:$0xff]
      %v496 = vld [vmem:[%s465 + $0xf0] sm:$0xff]
      %v497 = vld [vmem:[%s465 + $0xf8] sm:$0xff]
      %v498 = vld [vmem:[%s465 + $0x100] sm:$0xff]
      %v499 = vld [vmem:[%s465 + $0x108] sm:$0xff]
      %v500 = vld [vmem:[%s465 + $0x110] sm:$0xff]
      %v501 = vld [vmem:[%s465 + $0x118] sm:$0xff]
      %v502 = vld [vmem:[%s465 + $0x120] sm:$0xff]
      %v503 = vld [vmem:[%s465 + $0x128] sm:$0xff]
      %v504 = vld [vmem:[%s465 + $0x130] sm:$0xff]
      %v505 = vld [vmem:[%s465 + $0x138] sm:$0xff]
      %v506 = vld [vmem:[%s465 + $0x140] sm:$0xff]
      %v507 = vld [vmem:[%s465 + $0x148] sm:$0xff]
      %v508 = vld [vmem:[%s465 + $0x150] sm:$0xff]
      %v509 = vld [vmem:[%s465 + $0x158] sm:$0xff]
      %v510 = vld [vmem:[%s465 + $0x160] sm:$0xff]
      %v511 = vld [vmem:[%s465 + $0x168] sm:$0xff]
      %v512 = vld [vmem:[%s465 + $0x170] sm:$0xff]
      %v513 = vld [vmem:[%s465 + $0x178] sm:$0xff]
      %v514 = vld [vmem:[%s465 + $0x180] sm:$0xff]
      %v515 = vld [vmem:[%s465 + $0x188] sm:$0xff]
      %v516 = vld [vmem:[%s465 + $0x190] sm:$0xff]
      %v517 = vld [vmem:[%s465 + $0x198] sm:$0xff]
      %v518 = vld [vmem:[%s465 + $0x1a0] sm:$0xff]
      %v519 = vld [vmem:[%s465 + $0x1a8] sm:$0xff]
      %v520 = vld [vmem:[%s465 + $0x1b0] sm:$0xff]
      %v521 = vld [vmem:[%s465 + $0x1b8] sm:$0xff]
      %v522 = vld [vmem:[%s465 + $0x1c0] sm:$0xff]
      %v523 = vld [vmem:[%s465 + $0x1c8] sm:$0xff]
      %v524 = vld [vmem:[%s465 + $0x1d0] sm:$0xff]
      %v525 = vld [vmem:[%s465 + $0x1d8] sm:$0xff]
      %v526 = vld [vmem:[%s465 + $0x1e0] sm:$0xff]
      %v527 = vld [vmem:[%s465 + $0x1e8] sm:$0xff]
      %v528 = vld [vmem:[%s465 + $0x1f0] sm:$0xff]
      %v529 = vld [vmem:[%s465 + $0x1f8] sm:$0xff]
      %vm562 = vcmask 1046528
      %v563 = vrot.slane %v338, 1
      %v564 = vrot.slane %v339, 1
      %v565 = vsel %vm562, %v563, %v564
      %v566 = vrot.slane %v342, 1
      %v567 = vrot.slane %v343, 1
      %v568 = vsel %vm562, %v566, %v567
      %v569 = vrot.slane %v346, 1
      %v570 = vrot.slane %v347, 1
      %v571 = vsel %vm562, %v569, %v570
      %v572 = vrot.slane %v350, 1
      %v573 = vrot.slane %v351, 1
      %v574 = vsel %vm562, %v572, %v573
      %v575 = vrot.slane %v354, 1
      %v576 = vrot.slane %v355, 1
      %v577 = vsel %vm562, %v575, %v576
      %v578 = vrot.slane %v358, 1
      %v579 = vrot.slane %v359, 1
      %v580 = vsel %vm562, %v578, %v579
      %v581 = vrot.slane %v362, 1
      %v582 = vrot.slane %v363, 1
      %v583 = vsel %vm562, %v581, %v582
      %v584 = vrot.slane %v366, 1
      %v585 = vrot.slane %v367, 1
      %v586 = vsel %vm562, %v584, %v585
      %v587 = vrot.slane %v370, 1
      %v588 = vrot.slane %v371, 1
      %v589 = vsel %vm562, %v587, %v588
      %v590 = vrot.slane %v374, 1
      %v591 = vrot.slane %v375, 1
      %v592 = vsel %vm562, %v590, %v591
      %v593 = vrot.slane %v378, 1
      %v594 = vrot.slane %v379, 1
      %v595 = vsel %vm562, %v593, %v594
      %v596 = vrot.slane %v382, 1
      %v597 = vrot.slane %v383, 1
      %v598 = vsel %vm562, %v596, %v597
      %v599 = vrot.slane %v386, 1
      %v600 = vrot.slane %v387, 1
      %v601 = vsel %vm562, %v599, %v600
      %v602 = vrot.slane %v390, 1
      %v603 = vrot.slane %v391, 1
      %v604 = vsel %vm562, %v602, %v603
      %v605 = vrot.slane %v394, 1
      %v606 = vrot.slane %v395, 1
      %v607 = vsel %vm562, %v605, %v606
      %v608 = vrot.slane %v398, 1
      %v609 = vrot.slane %v399, 1
      %v610 = vsel %vm562, %v608, %v609
      %611 = vrot.lane.b32.xlu0 %v563, 4
      %v612 = vpop.permute.xlu0 %611
      %613 = vrot.lane.b32.xlu0 %v565, 4
      %v614 = vpop.permute.xlu0 %613
      %615 = vrot.lane.b32.xlu0 %v564, 4
      %v616 = vpop.permute.xlu0 %615
      %617 = vrot.lane.b32.xlu0 %v566, 4
      %v618 = vpop.permute.xlu0 %617
      %619 = vrot.lane.b32.xlu0 %v568, 4
      %v620 = vpop.permute.xlu0 %619
      %621 = vrot.lane.b32.xlu0 %v567, 4
      %v622 = vpop.permute.xlu0 %621
      %623 = vrot.lane.b32.xlu0 %v569, 4
      %v624 = vpop.permute.xlu0 %623
      %625 = vrot.lane.b32.xlu0 %v571, 4
      %v626 = vpop.permute.xlu0 %625
      %627 = vrot.lane.b32.xlu0 %v570, 4
      %v628 = vpop.permute.xlu0 %627
      %629 = vrot.lane.b32.xlu0 %v572, 4
      %v630 = vpop.permute.xlu0 %629
      %631 = vrot.lane.b32.xlu0 %v574, 4
      %v632 = vpop.permute.xlu0 %631
      %633 = vrot.lane.b32.xlu0 %v573, 4
      %v634 = vpop.permute.xlu0 %633
      %635 = vrot.lane.b32.xlu0 %v575, 4
      %v636 = vpop.permute.xlu0 %635
      %637 = vrot.lane.b32.xlu0 %v577, 4
      %v638 = vpop.permute.xlu0 %637
      %639 = vrot.lane.b32.xlu0 %v576, 4
      %v640 = vpop.permute.xlu0 %639
      %641 = vrot.lane.b32.xlu0 %v578, 4
      %v642 = vpop.permute.xlu0 %641
      %643 = vrot.lane.b32.xlu0 %v580, 4
      %v644 = vpop.permute.xlu0 %643
      %645 = vrot.lane.b32.xlu0 %v579, 4
      %v646 = vpop.permute.xlu0 %645
      %647 = vrot.lane.b32.xlu0 %v581, 4
      %v648 = vpop.permute.xlu0 %647
      %649 = vrot.lane.b32.xlu0 %v583, 4
      %v650 = vpop.permute.xlu0 %649
      %651 = vrot.lane.b32.xlu0 %v582, 4
      %v652 = vpop.permute.xlu0 %651
      %653 = vrot.lane.b32.xlu0 %v584, 4
      %v654 = vpop.permute.xlu0 %653
      %655 = vrot.lane.b32.xlu0 %v586, 4
      %v656 = vpop.permute.xlu0 %655
      %657 = vrot.lane.b32.xlu0 %v585, 4
      %v658 = vpop.permute.xlu0 %657
      %659 = vrot.lane.b32.xlu0 %v587, 4
      %v660 = vpop.permute.xlu0 %659
      %661 = vrot.lane.b32.xlu0 %v589, 4
      %v662 = vpop.permute.xlu0 %661
      %663 = vrot.lane.b32.xlu0 %v588, 4
      %v664 = vpop.permute.xlu0 %663
      %665 = vrot.lane.b32.xlu0 %v590, 4
      %v666 = vpop.permute.xlu0 %665
      %667 = vrot.lane.b32.xlu0 %v592, 4
      %v668 = vpop.permute.xlu0 %667
      %669 = vrot.lane.b32.xlu0 %v591, 4
      %v670 = vpop.permute.xlu0 %669
      %671 = vrot.lane.b32.xlu0 %v593, 4
      %v672 = vpop.permute.xlu0 %671
      %673 = vrot.lane.b32.xlu0 %v595, 4
      %v674 = vpop.permute.xlu0 %673
      %675 = vrot.lane.b32.xlu0 %v594, 4
      %v676 = vpop.permute.xlu0 %675
      %677 = vrot.lane.b32.xlu0 %v596, 4
      %v678 = vpop.permute.xlu0 %677
      %679 = vrot.lane.b32.xlu0 %v598, 4
      %v680 = vpop.permute.xlu0 %679
      %681 = vrot.lane.b32.xlu0 %v597, 4
      %v682 = vpop.permute.xlu0 %681
      %683 = vrot.lane.b32.xlu0 %v599, 4
      %v684 = vpop.permute.xlu0 %683
      %685 = vrot.lane.b32.xlu0 %v601, 4
      %v686 = vpop.permute.xlu0 %685
      %687 = vrot.lane.b32.xlu0 %v600, 4
      %v688 = vpop.permute.xlu0 %687
      %689 = vrot.lane.b32.xlu0 %v602, 4
      %v690 = vpop.permute.xlu0 %689
      %691 = vrot.lane.b32.xlu0 %v604, 4
      %v692 = vpop.permute.xlu0 %691
      %693 = vrot.lane.b32.xlu0 %v603, 4
      %v694 = vpop.permute.xlu0 %693
      %695 = vrot.lane.b32.xlu0 %v605, 4
      %v696 = vpop.permute.xlu0 %695
      %697 = vrot.lane.b32.xlu0 %v607, 4
      %v698 = vpop.permute.xlu0 %697
      %699 = vrot.lane.b32.xlu0 %v606, 4
      %v700 = vpop.permute.xlu0 %699
      %701 = vrot.lane.b32.xlu0 %v608, 4
      %v702 = vpop.permute.xlu0 %701
      %703 = vrot.lane.b32.xlu0 %v610, 4
      %v704 = vpop.permute.xlu0 %703
      %705 = vrot.lane.b32.xlu0 %v609, 4
      %v706 = vpop.permute.xlu0 %705
      %vm771 = vcmask 1045504
      %v772 = vrot.slane %v338, 2
      %v773 = vrot.slane %v339, 2
      %v774 = vsel %vm771, %v772, %v773
      %v775 = vrot.slane %v340, 2
      %v776 = vsel %vm771, %v773, %v775
      %v777 = vrot.slane %v342, 2
      %v778 = vrot.slane %v343, 2
      %v779 = vsel %vm771, %v777, %v778
      %v780 = vrot.slane %v344, 2
      %v781 = vsel %vm771, %v778, %v780
      %v782 = vrot.slane %v346, 2
      %v783 = vrot.slane %v347, 2
      %v784 = vsel %vm771, %v782, %v783
      %v785 = vrot.slane %v348, 2
      %v786 = vsel %vm771, %v783, %v785
      %v787 = vrot.slane %v350, 2
      %v788 = vrot.slane %v351, 2
      %v789 = vsel %vm771, %v787, %v788
      %v790 = vrot.slane %v352, 2
      %v791 = vsel %vm771, %v788, %v790
      %v792 = vrot.slane %v354, 2
      %v793 = vrot.slane %v355, 2
      %v794 = vsel %vm771, %v792, %v793
      %v795 = vrot.slane %v356, 2
      %v796 = vsel %vm771, %v793, %v795
      %v797 = vrot.slane %v358, 2
      %v798 = vrot.slane %v359, 2
      %v799 = vsel %vm771, %v797, %v798
      %v800 = vrot.slane %v360, 2
      %v801 = vsel %vm771, %v798, %v800
      %v802 = vrot.slane %v362, 2
      %v803 = vrot.slane %v363, 2
      %v804 = vsel %vm771, %v802, %v803
      %v805 = vrot.slane %v364, 2
      %v806 = vsel %vm771, %v803, %v805
      %v807 = vrot.slane %v366, 2
      %v808 = vrot.slane %v367, 2
      %v809 = vsel %vm771, %v807, %v808
      %v810 = vrot.slane %v368, 2
      %v811 = vsel %vm771, %v808, %v810
      %v812 = vrot.slane %v370, 2
      %v813 = vrot.slane %v371, 2
      %v814 = vsel %vm771, %v812, %v813
      %v815 = vrot.slane %v372, 2
      %v816 = vsel %vm771, %v813, %v815
      %v817 = vrot.slane %v374, 2
      %v818 = vrot.slane %v375, 2
      %v819 = vsel %vm771, %v817, %v818
      %v820 = vrot.slane %v376, 2
      %v821 = vsel %vm771, %v818, %v820
      %v822 = vrot.slane %v378, 2
      %v823 = vrot.slane %v379, 2
      %v824 = vsel %vm771, %v822, %v823
      %v825 = vrot.slane %v380, 2
      %v826 = vsel %vm771, %v823, %v825
      %v827 = vrot.slane %v382, 2
      %v828 = vrot.slane %v383, 2
      %v829 = vsel %vm771, %v827, %v828
      %v830 = vrot.slane %v384, 2
      %v831 = vsel %vm771, %v828, %v830
      %v832 = vrot.slane %v386, 2
      %v833 = vrot.slane %v387, 2
      %v834 = vsel %vm771, %v832, %v833
      %v835 = vrot.slane %v388, 2
      %v836 = vsel %vm771, %v833, %v835
      %v837 = vrot.slane %v390, 2
      %v838 = vrot.slane %v391, 2
      %v839 = vsel %vm771, %v837, %v838
      %v840 = vrot.slane %v392, 2
      %v841 = vsel %vm771, %v838, %v840
      %v842 = vrot.slane %v394, 2
      %v843 = vrot.slane %v395, 2
      %v844 = vsel %vm771, %v842, %v843
      %v845 = vrot.slane %v396, 2
      %v846 = vsel %vm771, %v843, %v845
      %v847 = vrot.slane %v398, 2
      %v848 = vrot.slane %v399, 2
      %v849 = vsel %vm771, %v847, %v848
      %v850 = vrot.slane %v400, 2
      %v851 = vsel %vm771, %v848, %v850
      %852 = vrot.lane.b32.xlu0 %v772, 8
      %v853 = vpop.permute.xlu0 %852
      %854 = vrot.lane.b32.xlu0 %v774, 8
      %v855 = vpop.permute.xlu0 %854
      %856 = vrot.lane.b32.xlu0 %v776, 8
      %v857 = vpop.permute.xlu0 %856
      %858 = vrot.lane.b32.xlu0 %v777, 8
      %v859 = vpop.permute.xlu0 %858
      %860 = vrot.lane.b32.xlu0 %v779, 8
      %v861 = vpop.permute.xlu0 %860
      %862 = vrot.lane.b32.xlu0 %v781, 8
      %v863 = vpop.permute.xlu0 %862
      %864 = vrot.lane.b32.xlu0 %v782, 8
      %v865 = vpop.permute.xlu0 %864
      %866 = vrot.lane.b32.xlu0 %v784, 8
      %v867 = vpop.permute.xlu0 %866
      %868 = vrot.lane.b32.xlu0 %v786, 8
      %v869 = vpop.permute.xlu0 %868
      %870 = vrot.lane.b32.xlu0 %v787, 8
      %v871 = vpop.permute.xlu0 %870
      %872 = vrot.lane.b32.xlu0 %v789, 8
      %v873 = vpop.permute.xlu0 %872
      %874 = vrot.lane.b32.xlu0 %v791, 8
      %v875 = vpop.permute.xlu0 %874
      %876 = vrot.lane.b32.xlu0 %v792, 8
      %v877 = vpop.permute.xlu0 %876
      %878 = vrot.lane.b32.xlu0 %v794, 8
      %v879 = vpop.permute.xlu0 %878
      %880 = vrot.lane.b32.xlu0 %v796, 8
      %v881 = vpop.permute.xlu0 %880
      %882 = vrot.lane.b32.xlu0 %v797, 8
      %v883 = vpop.permute.xlu0 %882
      %884 = vrot.lane.b32.xlu0 %v799, 8
      %v885 = vpop.permute.xlu0 %884
      %886 = vrot.lane.b32.xlu0 %v801, 8
      %v887 = vpop.permute.xlu0 %886
      %888 = vrot.lane.b32.xlu0 %v802, 8
      %v889 = vpop.permute.xlu0 %888
      %890 = vrot.lane.b32.xlu0 %v804, 8
      %v891 = vpop.permute.xlu0 %890
      %892 = vrot.lane.b32.xlu0 %v806, 8
      %v893 = vpop.permute.xlu0 %892
      %894 = vrot.lane.b32.xlu0 %v807, 8
      %v895 = vpop.permute.xlu0 %894
      %896 = vrot.lane.b32.xlu0 %v809, 8
      %v897 = vpop.permute.xlu0 %896
      %898 = vrot.lane.b32.xlu0 %v811, 8
      %v899 = vpop.permute.xlu0 %898
      %900 = vrot.lane.b32.xlu0 %v812, 8
      %v901 = vpop.permute.xlu0 %900
      %902 = vrot.lane.b32.xlu0 %v814, 8
      %v903 = vpop.permute.xlu0 %902
      %904 = vrot.lane.b32.xlu0 %v816, 8
      %v905 = vpop.permute.xlu0 %904
      %906 = vrot.lane.b32.xlu0 %v817, 8
      %v907 = vpop.permute.xlu0 %906
      %908 = vrot.lane.b32.xlu0 %v819, 8
      %v909 = vpop.permute.xlu0 %908
      %910 = vrot.lane.b32.xlu0 %v821, 8
      %v911 = vpop.permute.xlu0 %910
      %912 = vrot.lane.b32.xlu0 %v822, 8
      %v913 = vpop.permute.xlu0 %912
      %914 = vrot.lane.b32.xlu0 %v824, 8
      %v915 = vpop.permute.xlu0 %914
      %916 = vrot.lane.b32.xlu0 %v826, 8
      %v917 = vpop.permute.xlu0 %916
      %918 = vrot.lane.b32.xlu0 %v827, 8
      %v919 = vpop.permute.xlu0 %918
      %920 = vrot.lane.b32.xlu0 %v829, 8
      %v921 = vpop.permute.xlu0 %920
      %922 = vrot.lane.b32.xlu0 %v831, 8
      %v923 = vpop.permute.xlu0 %922
      %924 = vrot.lane.b32.xlu0 %v832, 8
      %v925 = vpop.permute.xlu0 %924
      %926 = vrot.lane.b32.xlu0 %v834, 8
      %v927 = vpop.permute.xlu0 %926
      %928 = vrot.lane.b32.xlu0 %v836, 8
      %v929 = vpop.permute.xlu0 %928
      %930 = vrot.lane.b32.xlu0 %v837, 8
      %v931 = vpop.permute.xlu0 %930
      %932 = vrot.lane.b32.xlu0 %v839, 8
      %v933 = vpop.permute.xlu0 %932
      %934 = vrot.lane.b32.xlu0 %v841, 8
      %v935 = vpop.permute.xlu0 %934
      %936 = vrot.lane.b32.xlu0 %v842, 8
      %v937 = vpop.permute.xlu0 %936
      %938 = vrot.lane.b32.xlu0 %v844, 8
      %v939 = vpop.permute.xlu0 %938
      %940 = vrot.lane.b32.xlu0 %v846, 8
      %v941 = vpop.permute.xlu0 %940
      %942 = vrot.lane.b32.xlu0 %v847, 8
      %v943 = vpop.permute.xlu0 %942
      %944 = vrot.lane.b32.xlu0 %v849, 8
      %v945 = vpop.permute.xlu0 %944
      %946 = vrot.lane.b32.xlu0 %v851, 8
      %v947 = vpop.permute.xlu0 %946
      %1044 = vrot.lane.b32.xlu0 %v401, 12
      %v1045 = vpop.permute.xlu0 %1044
      %1046 = vrot.lane.b32.xlu0 %v402, 12
      %v1047 = vpop.permute.xlu0 %1046
      %1048 = vrot.lane.b32.xlu0 %v403, 12
      %v1049 = vpop.permute.xlu0 %1048
      %1050 = vrot.lane.b32.xlu0 %v405, 12
      %v1051 = vpop.permute.xlu0 %1050
      %1052 = vrot.lane.b32.xlu0 %v406, 12
      %v1053 = vpop.permute.xlu0 %1052
      %1054 = vrot.lane.b32.xlu0 %v407, 12
      %v1055 = vpop.permute.xlu0 %1054
      %1056 = vrot.lane.b32.xlu0 %v409, 12
      %v1057 = vpop.permute.xlu0 %1056
      %1058 = vrot.lane.b32.xlu0 %v410, 12
      %v1059 = vpop.permute.xlu0 %1058
      %1060 = vrot.lane.b32.xlu0 %v411, 12
      %v1061 = vpop.permute.xlu0 %1060
      %1062 = vrot.lane.b32.xlu0 %v413, 12
      %v1063 = vpop.permute.xlu0 %1062
      %1064 = vrot.lane.b32.xlu0 %v414, 12
      %v1065 = vpop.permute.xlu0 %1064
      %1066 = vrot.lane.b32.xlu0 %v415, 12
      %v1067 = vpop.permute.xlu0 %1066
      %1068 = vrot.lane.b32.xlu0 %v417, 12
      %v1069 = vpop.permute.xlu0 %1068
      %1070 = vrot.lane.b32.xlu0 %v418, 12
      %v1071 = vpop.permute.xlu0 %1070
      %1072 = vrot.lane.b32.xlu0 %v419, 12
      %v1073 = vpop.permute.xlu0 %1072
      %1074 = vrot.lane.b32.xlu0 %v421, 12
      %v1075 = vpop.permute.xlu0 %1074
      %1076 = vrot.lane.b32.xlu0 %v422, 12
      %v1077 = vpop.permute.xlu0 %1076
      %1078 = vrot.lane.b32.xlu0 %v423, 12
      %v1079 = vpop.permute.xlu0 %1078
      %1080 = vrot.lane.b32.xlu0 %v425, 12
      %v1081 = vpop.permute.xlu0 %1080
      %1082 = vrot.lane.b32.xlu0 %v426, 12
      %v1083 = vpop.permute.xlu0 %1082
      %1084 = vrot.lane.b32.xlu0 %v427, 12
      %v1085 = vpop.permute.xlu0 %1084
      %1086 = vrot.lane.b32.xlu0 %v429, 12
      %v1087 = vpop.permute.xlu0 %1086
      %1088 = vrot.lane.b32.xlu0 %v430, 12
      %v1089 = vpop.permute.xlu0 %1088
      %1090 = vrot.lane.b32.xlu0 %v431, 12
      %v1091 = vpop.permute.xlu0 %1090
      %1092 = vrot.lane.b32.xlu0 %v433, 12
      %v1093 = vpop.permute.xlu0 %1092
      %1094 = vrot.lane.b32.xlu0 %v434, 12
      %v1095 = vpop.permute.xlu0 %1094
      %1096 = vrot.lane.b32.xlu0 %v435, 12
      %v1097 = vpop.permute.xlu0 %1096
      %1098 = vrot.lane.b32.xlu0 %v437, 12
      %v1099 = vpop.permute.xlu0 %1098
      %1100 = vrot.lane.b32.xlu0 %v438, 12
      %v1101 = vpop.permute.xlu0 %1100
      %1102 = vrot.lane.b32.xlu0 %v439, 12
      %v1103 = vpop.permute.xlu0 %1102
      %1104 = vrot.lane.b32.xlu0 %v441, 12
      %v1105 = vpop.permute.xlu0 %1104
      %1106 = vrot.lane.b32.xlu0 %v442, 12
      %v1107 = vpop.permute.xlu0 %1106
      %1108 = vrot.lane.b32.xlu0 %v443, 12
      %v1109 = vpop.permute.xlu0 %1108
      %1110 = vrot.lane.b32.xlu0 %v445, 12
      %v1111 = vpop.permute.xlu0 %1110
      %1112 = vrot.lane.b32.xlu0 %v446, 12
      %v1113 = vpop.permute.xlu0 %1112
      %1114 = vrot.lane.b32.xlu0 %v447, 12
      %v1115 = vpop.permute.xlu0 %1114
      %1116 = vrot.lane.b32.xlu0 %v449, 12
      %v1117 = vpop.permute.xlu0 %1116
      %1118 = vrot.lane.b32.xlu0 %v450, 12
      %v1119 = vpop.permute.xlu0 %1118
      %1120 = vrot.lane.b32.xlu0 %v451, 12
      %v1121 = vpop.permute.xlu0 %1120
      %1122 = vrot.lane.b32.xlu0 %v453, 12
      %v1123 = vpop.permute.xlu0 %1122
      %1124 = vrot.lane.b32.xlu0 %v454, 12
      %v1125 = vpop.permute.xlu0 %1124
      %1126 = vrot.lane.b32.xlu0 %v455, 12
      %v1127 = vpop.permute.xlu0 %1126
      %1128 = vrot.lane.b32.xlu0 %v457, 12
      %v1129 = vpop.permute.xlu0 %1128
      %1130 = vrot.lane.b32.xlu0 %v458, 12
      %v1131 = vpop.permute.xlu0 %1130
      %1132 = vrot.lane.b32.xlu0 %v459, 12
      %v1133 = vpop.permute.xlu0 %1132
      %1134 = vrot.lane.b32.xlu0 %v461, 12
      %v1135 = vpop.permute.xlu0 %1134
      %1136 = vrot.lane.b32.xlu0 %v462, 12
      %v1137 = vpop.permute.xlu0 %1136
      %1138 = vrot.lane.b32.xlu0 %v463, 12
      %v1139 = vpop.permute.xlu0 %1138
      %v1188 = vrot.slane %v402, 1
      %v1189 = vrot.slane %v403, 1
      %v1190 = vsel %vm562, %v1188, %v1189
      %v1191 = vrot.slane %v406, 1
      %v1192 = vrot.slane %v407, 1
      %v1193 = vsel %vm562, %v1191, %v1192
      %v1194 = vrot.slane %v410, 1
      %v1195 = vrot.slane %v411, 1
      %v1196 = vsel %vm562, %v1194, %v1195
      %v1197 = vrot.slane %v414, 1
      %v1198 = vrot.slane %v415, 1
      %v1199 = vsel %vm562, %v1197, %v1198
      %v1200 = vrot.slane %v418, 1
      %v1201 = vrot.slane %v419, 1
      %v1202 = vsel %vm562, %v1200, %v1201
      %v1203 = vrot.slane %v422, 1
      %v1204 = vrot.slane %v423, 1
      %v1205 = vsel %vm562, %v1203, %v1204
      %v1206 = vrot.slane %v426, 1
      %v1207 = vrot.slane %v427, 1
      %v1208 = vsel %vm562, %v1206, %v1207
      %v1209 = vrot.slane %v430, 1
      %v1210 = vrot.slane %v431, 1
      %v1211 = vsel %vm562, %v1209, %v1210
      %v1212 = vrot.slane %v434, 1
      %v1213 = vrot.slane %v435, 1
      %v1214 = vsel %vm562, %v1212, %v1213
      %v1215 = vrot.slane %v438, 1
      %v1216 = vrot.slane %v439, 1
      %v1217 = vsel %vm562, %v1215, %v1216
      %v1218 = vrot.slane %v442, 1
      %v1219 = vrot.slane %v443, 1
      %v1220 = vsel %vm562, %v1218, %v1219
      %v1221 = vrot.slane %v446, 1
      %v1222 = vrot.slane %v447, 1
      %v1223 = vsel %vm562, %v1221, %v1222
      %v1224 = vrot.slane %v450, 1
      %v1225 = vrot.slane %v451, 1
      %v1226 = vsel %vm562, %v1224, %v1225
      %v1227 = vrot.slane %v454, 1
      %v1228 = vrot.slane %v455, 1
      %v1229 = vsel %vm562, %v1227, %v1228
      %v1230 = vrot.slane %v458, 1
      %v1231 = vrot.slane %v459, 1
      %v1232 = vsel %vm562, %v1230, %v1231
      %v1233 = vrot.slane %v462, 1
      %v1234 = vrot.slane %v463, 1
      %v1235 = vsel %vm562, %v1233, %v1234
      %1236 = vrot.lane.b32.xlu0 %v1188, 16
      %v1237 = vpop.permute.xlu0 %1236
      %1238 = vrot.lane.b32.xlu0 %v1190, 16
      %v1239 = vpop.permute.xlu0 %1238
      %1240 = vrot.lane.b32.xlu0 %v1189, 16
      %v1241 = vpop.permute.xlu0 %1240
      %1242 = vrot.lane.b32.xlu0 %v1191, 16
      %v1243 = vpop.permute.xlu0 %1242
      %1244 = vrot.lane.b32.xlu0 %v1193, 16
      %v1245 = vpop.permute.xlu0 %1244
      %1246 = vrot.lane.b32.xlu0 %v1192, 16
      %v1247 = vpop.permute.xlu0 %1246
      %1248 = vrot.lane.b32.xlu0 %v1194, 16
      %v1249 = vpop.permute.xlu0 %1248
      %1250 = vrot.lane.b32.xlu0 %v1196, 16
      %v1251 = vpop.permute.xlu0 %1250
      %1252 = vrot.lane.b32.xlu0 %v1195, 16
      %v1253 = vpop.permute.xlu0 %1252
      %1254 = vrot.lane.b32.xlu0 %v1197, 16
      %v1255 = vpop.permute.xlu0 %1254
      %1256 = vrot.lane.b32.xlu0 %v1199, 16
      %v1257 = vpop.permute.xlu0 %1256
      %1258 = vrot.lane.b32.xlu0 %v1198, 16
      %v1259 = vpop.permute.xlu0 %1258
      %1260 = vrot.lane.b32.xlu0 %v1200, 16
      %v1261 = vpop.permute.xlu0 %1260
      %1262 = vrot.lane.b32.xlu0 %v1202, 16
      %v1263 = vpop.permute.xlu0 %1262
      %1264 = vrot.lane.b32.xlu0 %v1201, 16
      %v1265 = vpop.permute.xlu0 %1264
      %1266 = vrot.lane.b32.xlu0 %v1203, 16
      %v1267 = vpop.permute.xlu0 %1266
      %1268 = vrot.lane.b32.xlu0 %v1205, 16
      %v1269 = vpop.permute.xlu0 %1268
      %1270 = vrot.lane.b32.xlu0 %v1204, 16
      %v1271 = vpop.permute.xlu0 %1270
      %1272 = vrot.lane.b32.xlu0 %v1206, 16
      %v1273 = vpop.permute.xlu0 %1272
      %1274 = vrot.lane.b32.xlu0 %v1208, 16
      %v1275 = vpop.permute.xlu0 %1274
      %1276 = vrot.lane.b32.xlu0 %v1207, 16
      %v1277 = vpop.permute.xlu0 %1276
      %1278 = vrot.lane.b32.xlu0 %v1209, 16
      %v1279 = vpop.permute.xlu0 %1278
      %1280 = vrot.lane.b32.xlu0 %v1211, 16
      %v1281 = vpop.permute.xlu0 %1280
      %1282 = vrot.lane.b32.xlu0 %v1210, 16
      %v1283 = vpop.permute.xlu0 %1282
      %1284 = vrot.lane.b32.xlu0 %v1212, 16
      %v1285 = vpop.permute.xlu0 %1284
      %1286 = vrot.lane.b32.xlu0 %v1214, 16
      %v1287 = vpop.permute.xlu0 %1286
      %1288 = vrot.lane.b32.xlu0 %v1213, 16
      %v1289 = vpop.permute.xlu0 %1288
      %1290 = vrot.lane.b32.xlu0 %v1215, 16
      %v1291 = vpop.permute.xlu0 %1290
      %1292 = vrot.lane.b32.xlu0 %v1217, 16
      %v1293 = vpop.permute.xlu0 %1292
      %1294 = vrot.lane.b32.xlu0 %v1216, 16
      %v1295 = vpop.permute.xlu0 %1294
      %1296 = vrot.lane.b32.xlu0 %v1218, 16
      %v1297 = vpop.permute.xlu0 %1296
      %1298 = vrot.lane.b32.xlu0 %v1220, 16
      %v1299 = vpop.permute.xlu0 %1298
      %1300 = vrot.lane.b32.xlu0 %v1219, 16
      %v1301 = vpop.permute.xlu0 %1300
      %1302 = vrot.lane.b32.xlu0 %v1221, 16
      %v1303 = vpop.permute.xlu0 %1302
      %1304 = vrot.lane.b32.xlu0 %v1223, 16
      %v1305 = vpop.permute.xlu0 %1304
      %1306 = vrot.lane.b32.xlu0 %v1222, 16
      %v1307 = vpop.permute.xlu0 %1306
      %1308 = vrot.lane.b32.xlu0 %v1224, 16
      %v1309 = vpop.permute.xlu0 %1308
      %1310 = vrot.lane.b32.xlu0 %v1226, 16
      %v1311 = vpop.permute.xlu0 %1310
      %1312 = vrot.lane.b32.xlu0 %v1225, 16
      %v1313 = vpop.permute.xlu0 %1312
      %1314 = vrot.lane.b32.xlu0 %v1227, 16
      %v1315 = vpop.permute.xlu0 %1314
      %1316 = vrot.lane.b32.xlu0 %v1229, 16
      %v1317 = vpop.permute.xlu0 %1316
      %1318 = vrot.lane.b32.xlu0 %v1228, 16
      %v1319 = vpop.permute.xlu0 %1318
      %1320 = vrot.lane.b32.xlu0 %v1230, 16
      %v1321 = vpop.permute.xlu0 %1320
      %1322 = vrot.lane.b32.xlu0 %v1232, 16
      %v1323 = vpop.permute.xlu0 %1322
      %1324 = vrot.lane.b32.xlu0 %v1231, 16
      %v1325 = vpop.permute.xlu0 %1324
      %1326 = vrot.lane.b32.xlu0 %v1233, 16
      %v1327 = vpop.permute.xlu0 %1326
      %1328 = vrot.lane.b32.xlu0 %v1235, 16
      %v1329 = vpop.permute.xlu0 %1328
      %1330 = vrot.lane.b32.xlu0 %v1234, 16
      %v1331 = vpop.permute.xlu0 %1330
      %v1396 = vrot.slane %v402, 2
      %v1397 = vrot.slane %v403, 2
      %v1398 = vsel %vm771, %v1396, %v1397
      %v1399 = vrot.slane %v404, 2
      %v1400 = vsel %vm771, %v1397, %v1399
      %v1401 = vrot.slane %v406, 2
      %v1402 = vrot.slane %v407, 2
      %v1403 = vsel %vm771, %v1401, %v1402
      %v1404 = vrot.slane %v408, 2
      %v1405 = vsel %vm771, %v1402, %v1404
      %v1406 = vrot.slane %v410, 2
      %v1407 = vrot.slane %v411, 2
      %v1408 = vsel %vm771, %v1406, %v1407
      %v1409 = vrot.slane %v412, 2
      %v1410 = vsel %vm771, %v1407, %v1409
      %v1411 = vrot.slane %v414, 2
      %v1412 = vrot.slane %v415, 2
      %v1413 = vsel %vm771, %v1411, %v1412
      %v1414 = vrot.slane %v416, 2
      %v1415 = vsel %vm771, %v1412, %v1414
      %v1416 = vrot.slane %v418, 2
      %v1417 = vrot.slane %v419, 2
      %v1418 = vsel %vm771, %v1416, %v1417
      %v1419 = vrot.slane %v420, 2
      %v1420 = vsel %vm771, %v1417, %v1419
      %v1421 = vrot.slane %v422, 2
      %v1422 = vrot.slane %v423, 2
      %v1423 = vsel %vm771, %v1421, %v1422
      %v1424 = vrot.slane %v424, 2
      %v1425 = vsel %vm771, %v1422, %v1424
      %v1426 = vrot.slane %v426, 2
      %v1427 = vrot.slane %v427, 2
      %v1428 = vsel %vm771, %v1426, %v1427
      %v1429 = vrot.slane %v428, 2
      %v1430 = vsel %vm771, %v1427, %v1429
      %v1431 = vrot.slane %v430, 2
      %v1432 = vrot.slane %v431, 2
      %v1433 = vsel %vm771, %v1431, %v1432
      %v1434 = vrot.slane %v432, 2
      %v1435 = vsel %vm771, %v1432, %v1434
      %v1436 = vrot.slane %v434, 2
      %v1437 = vrot.slane %v435, 2
      %v1438 = vsel %vm771, %v1436, %v1437
      %v1439 = vrot.slane %v436, 2
      %v1440 = vsel %vm771, %v1437, %v1439
      %v1441 = vrot.slane %v438, 2
      %v1442 = vrot.slane %v439, 2
      %v1443 = vsel %vm771, %v1441, %v1442
      %v1444 = vrot.slane %v440, 2
      %v1445 = vsel %vm771, %v1442, %v1444
      %v1446 = vrot.slane %v442, 2
      %v1447 = vrot.slane %v443, 2
      %v1448 = vsel %vm771, %v1446, %v1447
      %v1449 = vrot.slane %v444, 2
      %v1450 = vsel %vm771, %v1447, %v1449
      %v1451 = vrot.slane %v446, 2
      %v1452 = vrot.slane %v447, 2
      %v1453 = vsel %vm771, %v1451, %v1452
      %v1454 = vrot.slane %v448, 2
      %v1455 = vsel %vm771, %v1452, %v1454
      %v1456 = vrot.slane %v450, 2
      %v1457 = vrot.slane %v451, 2
      %v1458 = vsel %vm771, %v1456, %v1457
      %v1459 = vrot.slane %v452, 2
      %v1460 = vsel %vm771, %v1457, %v1459
      %v1461 = vrot.slane %v454, 2
      %v1462 = vrot.slane %v455, 2
      %v1463 = vsel %vm771, %v1461, %v1462
      %v1464 = vrot.slane %v456, 2
      %v1465 = vsel %vm771, %v1462, %v1464
      %v1466 = vrot.slane %v458, 2
      %v1467 = vrot.slane %v459, 2
      %v1468 = vsel %vm771, %v1466, %v1467
      %v1469 = vrot.slane %v460, 2
      %v1470 = vsel %vm771, %v1467, %v1469
      %v1471 = vrot.slane %v462, 2
      %v1472 = vrot.slane %v463, 2
      %v1473 = vsel %vm771, %v1471, %v1472
      %v1474 = vrot.slane %v464, 2
      %v1475 = vsel %vm771, %v1472, %v1474
      %1476 = vrot.lane.b32.xlu0 %v1396, 20
      %v1477 = vpop.permute.xlu0 %1476
      %1478 = vrot.lane.b32.xlu0 %v1398, 20
      %v1479 = vpop.permute.xlu0 %1478
      %1480 = vrot.lane.b32.xlu0 %v1400, 20
      %v1481 = vpop.permute.xlu0 %1480
      %1482 = vrot.lane.b32.xlu0 %v1401, 20
      %v1483 = vpop.permute.xlu0 %1482
      %1484 = vrot.lane.b32.xlu0 %v1403, 20
      %v1485 = vpop.permute.xlu0 %1484
      %1486 = vrot.lane.b32.xlu0 %v1405, 20
      %v1487 = vpop.permute.xlu0 %1486
      %1488 = vrot.lane.b32.xlu0 %v1406, 20
      %v1489 = vpop.permute.xlu0 %1488
      %1490 = vrot.lane.b32.xlu0 %v1408, 20
      %v1491 = vpop.permute.xlu0 %1490
      %1492 = vrot.lane.b32.xlu0 %v1410, 20
      %v1493 = vpop.permute.xlu0 %1492
      %1494 = vrot.lane.b32.xlu0 %v1411, 20
      %v1495 = vpop.permute.xlu0 %1494
      %1496 = vrot.lane.b32.xlu0 %v1413, 20
      %v1497 = vpop.permute.xlu0 %1496
      %1498 = vrot.lane.b32.xlu0 %v1415, 20
      %v1499 = vpop.permute.xlu0 %1498
      %1500 = vrot.lane.b32.xlu0 %v1416, 20
      %v1501 = vpop.permute.xlu0 %1500
      %1502 = vrot.lane.b32.xlu0 %v1418, 20
      %v1503 = vpop.permute.xlu0 %1502
      %1504 = vrot.lane.b32.xlu0 %v1420, 20
      %v1505 = vpop.permute.xlu0 %1504
      %1506 = vrot.lane.b32.xlu0 %v1421, 20
      %v1507 = vpop.permute.xlu0 %1506
      %1508 = vrot.lane.b32.xlu0 %v1423, 20
      %v1509 = vpop.permute.xlu0 %1508
      %1510 = vrot.lane.b32.xlu0 %v1425, 20
      %v1511 = vpop.permute.xlu0 %1510
      %1512 = vrot.lane.b32.xlu0 %v1426, 20
      %v1513 = vpop.permute.xlu0 %1512
      %1514 = vrot.lane.b32.xlu0 %v1428, 20
      %v1515 = vpop.permute.xlu0 %1514
      %1516 = vrot.lane.b32.xlu0 %v1430, 20
      %v1517 = vpop.permute.xlu0 %1516
      %1518 = vrot.lane.b32.xlu0 %v1431, 20
      %v1519 = vpop.permute.xlu0 %1518
      %1520 = vrot.lane.b32.xlu0 %v1433, 20
      %v1521 = vpop.permute.xlu0 %1520
      %1522 = vrot.lane.b32.xlu0 %v1435, 20
      %v1523 = vpop.permute.xlu0 %1522
      %1524 = vrot.lane.b32.xlu0 %v1436, 20
      %v1525 = vpop.permute.xlu0 %1524
      %1526 = vrot.lane.b32.xlu0 %v1438, 20
      %v1527 = vpop.permute.xlu0 %1526
      %1528 = vrot.lane.b32.xlu0 %v1440, 20
      %v1529 = vpop.permute.xlu0 %1528
      %1530 = vrot.lane.b32.xlu0 %v1441, 20
      %v1531 = vpop.permute.xlu0 %1530
      %1532 = vrot.lane.b32.xlu0 %v1443, 20
      %v1533 = vpop.permute.xlu0 %1532
      %1534 = vrot.lane.b32.xlu0 %v1445, 20
      %v1535 = vpop.permute.xlu0 %1534
      %1536 = vrot.lane.b32.xlu0 %v1446, 20
      %v1537 = vpop.permute.xlu0 %1536
      %1538 = vrot.lane.b32.xlu0 %v1448, 20
      %v1539 = vpop.permute.xlu0 %1538
      %1540 = vrot.lane.b32.xlu0 %v1450, 20
      %v1541 = vpop.permute.xlu0 %1540
      %1542 = vrot.lane.b32.xlu0 %v1451, 20
      %v1543 = vpop.permute.xlu0 %1542
      %1544 = vrot.lane.b32.xlu0 %v1453, 20
      %v1545 = vpop.permute.xlu0 %1544
      %1546 = vrot.lane.b32.xlu0 %v1455, 20
      %v1547 = vpop.permute.xlu0 %1546
      %1548 = vrot.lane.b32.xlu0 %v1456, 20
      %v1549 = vpop.permute.xlu0 %1548
      %1550 = vrot.lane.b32.xlu0 %v1458, 20
      %v1551 = vpop.permute.xlu0 %1550
      %1552 = vrot.lane.b32.xlu0 %v1460, 20
      %v1553 = vpop.permute.xlu0 %1552
      %1554 = vrot.lane.b32.xlu0 %v1461, 20
      %v1555 = vpop.permute.xlu0 %1554
      %1556 = vrot.lane.b32.xlu0 %v1463, 20
      %v1557 = vpop.permute.xlu0 %1556
      %1558 = vrot.lane.b32.xlu0 %v1465, 20
      %v1559 = vpop.permute.xlu0 %1558
      %1560 = vrot.lane.b32.xlu0 %v1466, 20
      %v1561 = vpop.permute.xlu0 %1560
      %1562 = vrot.lane.b32.xlu0 %v1468, 20
      %v1563 = vpop.permute.xlu0 %1562
      %1564 = vrot.lane.b32.xlu0 %v1470, 20
      %v1565 = vpop.permute.xlu0 %1564
      %1566 = vrot.lane.b32.xlu0 %v1471, 20
      %v1567 = vpop.permute.xlu0 %1566
      %1568 = vrot.lane.b32.xlu0 %v1473, 20
      %v1569 = vpop.permute.xlu0 %1568
      %1570 = vrot.lane.b32.xlu0 %v1475, 20
      %v1571 = vpop.permute.xlu0 %1570
      %1668 = vrot.lane.b32.xlu0 %v466, 24
      %v1669 = vpop.permute.xlu0 %1668
      %1670 = vrot.lane.b32.xlu0 %v467, 24
      %v1671 = vpop.permute.xlu0 %1670
      %1672 = vrot.lane.b32.xlu0 %v468, 24
      %v1673 = vpop.permute.xlu0 %1672
      %1674 = vrot.lane.b32.xlu0 %v470, 24
      %v1675 = vpop.permute.xlu0 %1674
      %1676 = vrot.lane.b32.xlu0 %v471, 24
      %v1677 = vpop.permute.xlu0 %1676
      %1678 = vrot.lane.b32.xlu0 %v472, 24
      %v1679 = vpop.permute.xlu0 %1678
      %1680 = vrot.lane.b32.xlu0 %v474, 24
      %v1681 = vpop.permute.xlu0 %1680
      %1682 = vrot.lane.b32.xlu0 %v475, 24
      %v1683 = vpop.permute.xlu0 %1682
      %1684 = vrot.lane.b32.xlu0 %v476, 24
      %v1685 = vpop.permute.xlu0 %1684
      %1686 = vrot.lane.b32.xlu0 %v478, 24
      %v1687 = vpop.permute.xlu0 %1686
      %1688 = vrot.lane.b32.xlu0 %v479, 24
      %v1689 = vpop.permute.xlu0 %1688
      %1690 = vrot.lane.b32.xlu0 %v480, 24
      %v1691 = vpop.permute.xlu0 %1690
      %1692 = vrot.lane.b32.xlu0 %v482, 24
      %v1693 = vpop.permute.xlu0 %1692
      %1694 = vrot.lane.b32.xlu0 %v483, 24
      %v1695 = vpop.permute.xlu0 %1694
      %1696 = vrot.lane.b32.xlu0 %v484, 24
      %v1697 = vpop.permute.xlu0 %1696
      %1698 = vrot.lane.b32.xlu0 %v486, 24
      %v1699 = vpop.permute.xlu0 %1698
      %1700 = vrot.lane.b32.xlu0 %v487, 24
      %v1701 = vpop.permute.xlu0 %1700
      %1702 = vrot.lane.b32.xlu0 %v488, 24
      %v1703 = vpop.permute.xlu0 %1702
      %1704 = vrot.lane.b32.xlu0 %v490, 24
      %v1705 = vpop.permute.xlu0 %1704
      %1706 = vrot.lane.b32.xlu0 %v491, 24
      %v1707 = vpop.permute.xlu0 %1706
      %1708 = vrot.lane.b32.xlu0 %v492, 24
      %v1709 = vpop.permute.xlu0 %1708
      %1710 = vrot.lane.b32.xlu0 %v494, 24
      %v1711 = vpop.permute.xlu0 %1710
      %1712 = vrot.lane.b32.xlu0 %v495, 24
      %v1713 = vpop.permute.xlu0 %1712
      %1714 = vrot.lane.b32.xlu0 %v496, 24
      %v1715 = vpop.permute.xlu0 %1714
      %1716 = vrot.lane.b32.xlu0 %v498, 24
      %v1717 = vpop.permute.xlu0 %1716
      %1718 = vrot.lane.b32.xlu0 %v499, 24
      %v1719 = vpop.permute.xlu0 %1718
      %1720 = vrot.lane.b32.xlu0 %v500, 24
      %v1721 = vpop.permute.xlu0 %1720
      %1722 = vrot.lane.b32.xlu0 %v502, 24
      %v1723 = vpop.permute.xlu0 %1722
      %1724 = vrot.lane.b32.xlu0 %v503, 24
      %v1725 = vpop.permute.xlu0 %1724
      %1726 = vrot.lane.b32.xlu0 %v504, 24
      %v1727 = vpop.permute.xlu0 %1726
      %1728 = vrot.lane.b32.xlu0 %v506, 24
      %v1729 = vpop.permute.xlu0 %1728
      %1730 = vrot.lane.b32.xlu0 %v507, 24
      %v1731 = vpop.permute.xlu0 %1730
      %1732 = vrot.lane.b32.xlu0 %v508, 24
      %v1733 = vpop.permute.xlu0 %1732
      %1734 = vrot.lane.b32.xlu0 %v510, 24
      %v1735 = vpop.permute.xlu0 %1734
      %1736 = vrot.lane.b32.xlu0 %v511, 24
      %v1737 = vpop.permute.xlu0 %1736
      %1738 = vrot.lane.b32.xlu0 %v512, 24
      %v1739 = vpop.permute.xlu0 %1738
      %1740 = vrot.lane.b32.xlu0 %v514, 24
      %v1741 = vpop.permute.xlu0 %1740
      %1742 = vrot.lane.b32.xlu0 %v515, 24
      %v1743 = vpop.permute.xlu0 %1742
      %1744 = vrot.lane.b32.xlu0 %v516, 24
      %v1745 = vpop.permute.xlu0 %1744
      %1746 = vrot.lane.b32.xlu0 %v518, 24
      %v1747 = vpop.permute.xlu0 %1746
      %1748 = vrot.lane.b32.xlu0 %v519, 24
      %v1749 = vpop.permute.xlu0 %1748
      %1750 = vrot.lane.b32.xlu0 %v520, 24
      %v1751 = vpop.permute.xlu0 %1750
      %1752 = vrot.lane.b32.xlu0 %v522, 24
      %v1753 = vpop.permute.xlu0 %1752
      %1754 = vrot.lane.b32.xlu0 %v523, 24
      %v1755 = vpop.permute.xlu0 %1754
      %1756 = vrot.lane.b32.xlu0 %v524, 24
      %v1757 = vpop.permute.xlu0 %1756
      %1758 = vrot.lane.b32.xlu0 %v526, 24
      %v1759 = vpop.permute.xlu0 %1758
      %1760 = vrot.lane.b32.xlu0 %v527, 24
      %v1761 = vpop.permute.xlu0 %1760
      %1762 = vrot.lane.b32.xlu0 %v528, 24
      %v1763 = vpop.permute.xlu0 %1762
      %v1812 = vrot.slane %v467, 1
      %v1813 = vrot.slane %v468, 1
      %v1814 = vsel %vm562, %v1812, %v1813
      %v1815 = vrot.slane %v471, 1
      %v1816 = vrot.slane %v472, 1
      %v1817 = vsel %vm562, %v1815, %v1816
      %v1818 = vrot.slane %v475, 1
      %v1819 = vrot.slane %v476, 1
      %v1820 = vsel %vm562, %v1818, %v1819
      %v1821 = vrot.slane %v479, 1
      %v1822 = vrot.slane %v480, 1
      %v1823 = vsel %vm562, %v1821, %v1822
      %v1824 = vrot.slane %v483, 1
      %v1825 = vrot.slane %v484, 1
      %v1826 = vsel %vm562, %v1824, %v1825
      %v1827 = vrot.slane %v487, 1
      %v1828 = vrot.slane %v488, 1
      %v1829 = vsel %vm562, %v1827, %v1828
      %v1830 = vrot.slane %v491, 1
      %v1831 = vrot.slane %v492, 1
      %v1832 = vsel %vm562, %v1830, %v1831
      %v1833 = vrot.slane %v495, 1
      %v1834 = vrot.slane %v496, 1
      %v1835 = vsel %vm562, %v1833, %v1834
      %v1836 = vrot.slane %v499, 1
      %v1837 = vrot.slane %v500, 1
      %v1838 = vsel %vm562, %v1836, %v1837
      %v1839 = vrot.slane %v503, 1
      %v1840 = vrot.slane %v504, 1
      %v1841 = vsel %vm562, %v1839, %v1840
      %v1842 = vrot.slane %v507, 1
      %v1843 = vrot.slane %v508, 1
      %v1844 = vsel %vm562, %v1842, %v1843
      %v1845 = vrot.slane %v511, 1
      %v1846 = vrot.slane %v512, 1
      %v1847 = vsel %vm562, %v1845, %v1846
      %v1848 = vrot.slane %v515, 1
      %v1849 = vrot.slane %v516, 1
      %v1850 = vsel %vm562, %v1848, %v1849
      %v1851 = vrot.slane %v519, 1
      %v1852 = vrot.slane %v520, 1
      %v1853 = vsel %vm562, %v1851, %v1852
      %v1854 = vrot.slane %v523, 1
      %v1855 = vrot.slane %v524, 1
      %v1856 = vsel %vm562, %v1854, %v1855
      %v1857 = vrot.slane %v527, 1
      %v1858 = vrot.slane %v528, 1
      %v1859 = vsel %vm562, %v1857, %v1858
      %1860 = vrot.lane.b32.xlu0 %v1812, 28
      %v1861 = vpop.permute.xlu0 %1860
      %1862 = vrot.lane.b32.xlu0 %v1814, 28
      %v1863 = vpop.permute.xlu0 %1862
      %1864 = vrot.lane.b32.xlu0 %v1813, 28
      %v1865 = vpop.permute.xlu0 %1864
      %1866 = vrot.lane.b32.xlu0 %v1815, 28
      %v1867 = vpop.permute.xlu0 %1866
      %1868 = vrot.lane.b32.xlu0 %v1817, 28
      %v1869 = vpop.permute.xlu0 %1868
      %1870 = vrot.lane.b32.xlu0 %v1816, 28
      %v1871 = vpop.permute.xlu0 %1870
      %1872 = vrot.lane.b32.xlu0 %v1818, 28
      %v1873 = vpop.permute.xlu0 %1872
      %1874 = vrot.lane.b32.xlu0 %v1820, 28
      %v1875 = vpop.permute.xlu0 %1874
      %1876 = vrot.lane.b32.xlu0 %v1819, 28
      %v1877 = vpop.permute.xlu0 %1876
      %1878 = vrot.lane.b32.xlu0 %v1821, 28
      %v1879 = vpop.permute.xlu0 %1878
      %1880 = vrot.lane.b32.xlu0 %v1823, 28
      %v1881 = vpop.permute.xlu0 %1880
      %1882 = vrot.lane.b32.xlu0 %v1822, 28
      %v1883 = vpop.permute.xlu0 %1882
      %1884 = vrot.lane.b32.xlu0 %v1824, 28
      %v1885 = vpop.permute.xlu0 %1884
      %1886 = vrot.lane.b32.xlu0 %v1826, 28
      %v1887 = vpop.permute.xlu0 %1886
      %1888 = vrot.lane.b32.xlu0 %v1825, 28
      %v1889 = vpop.permute.xlu0 %1888
      %1890 = vrot.lane.b32.xlu0 %v1827, 28
      %v1891 = vpop.permute.xlu0 %1890
      %1892 = vrot.lane.b32.xlu0 %v1829, 28
      %v1893 = vpop.permute.xlu0 %1892
      %1894 = vrot.lane.b32.xlu0 %v1828, 28
      %v1895 = vpop.permute.xlu0 %1894
      %1896 = vrot.lane.b32.xlu0 %v1830, 28
      %v1897 = vpop.permute.xlu0 %1896
      %1898 = vrot.lane.b32.xlu0 %v1832, 28
      %v1899 = vpop.permute.xlu0 %1898
      %1900 = vrot.lane.b32.xlu0 %v1831, 28
      %v1901 = vpop.permute.xlu0 %1900
      %1902 = vrot.lane.b32.xlu0 %v1833, 28
      %v1903 = vpop.permute.xlu0 %1902
      %1904 = vrot.lane.b32.xlu0 %v1835, 28
      %v1905 = vpop.permute.xlu0 %1904
      %1906 = vrot.lane.b32.xlu0 %v1834, 28
      %v1907 = vpop.permute.xlu0 %1906
      %1908 = vrot.lane.b32.xlu0 %v1836, 28
      %v1909 = vpop.permute.xlu0 %1908
      %1910 = vrot.lane.b32.xlu0 %v1838, 28
      %v1911 = vpop.permute.xlu0 %1910
      %1912 = vrot.lane.b32.xlu0 %v1837, 28
      %v1913 = vpop.permute.xlu0 %1912
      %1914 = vrot.lane.b32.xlu0 %v1839, 28
      %v1915 = vpop.permute.xlu0 %1914
      %1916 = vrot.lane.b32.xlu0 %v1841, 28
      %v1917 = vpop.permute.xlu0 %1916
      %1918 = vrot.lane.b32.xlu0 %v1840, 28
      %v1919 = vpop.permute.xlu0 %1918
      %1920 = vrot.lane.b32.xlu0 %v1842, 28
      %v1921 = vpop.permute.xlu0 %1920
      %1922 = vrot.lane.b32.xlu0 %v1844, 28
      %v1923 = vpop.permute.xlu0 %1922
      %1924 = vrot.lane.b32.xlu0 %v1843, 28
      %v1925 = vpop.permute.xlu0 %1924
      %1926 = vrot.lane.b32.xlu0 %v1845, 28
      %v1927 = vpop.permute.xlu0 %1926
      %1928 = vrot.lane.b32.xlu0 %v1847, 28
      %v1929 = vpop.permute.xlu0 %1928
      %1930 = vrot.lane.b32.xlu0 %v1846, 28
      %v1931 = vpop.permute.xlu0 %1930
      %1932 = vrot.lane.b32.xlu0 %v1848, 28
      %v1933 = vpop.permute.xlu0 %1932
      %1934 = vrot.lane.b32.xlu0 %v1850, 28
      %v1935 = vpop.permute.xlu0 %1934
      %1936 = vrot.lane.b32.xlu0 %v1849, 28
      %v1937 = vpop.permute.xlu0 %1936
      %1938 = vrot.lane.b32.xlu0 %v1851, 28
      %v1939 = vpop.permute.xlu0 %1938
      %1940 = vrot.lane.b32.xlu0 %v1853, 28
      %v1941 = vpop.permute.xlu0 %1940
      %1942 = vrot.lane.b32.xlu0 %v1852, 28
      %v1943 = vpop.permute.xlu0 %1942
      %1944 = vrot.lane.b32.xlu0 %v1854, 28
      %v1945 = vpop.permute.xlu0 %1944
      %1946 = vrot.lane.b32.xlu0 %v1856, 28
      %v1947 = vpop.permute.xlu0 %1946
      %1948 = vrot.lane.b32.xlu0 %v1855, 28
      %v1949 = vpop.permute.xlu0 %1948
      %1950 = vrot.lane.b32.xlu0 %v1857, 28
      %v1951 = vpop.permute.xlu0 %1950
      %1952 = vrot.lane.b32.xlu0 %v1859, 28
      %v1953 = vpop.permute.xlu0 %1952
      %1954 = vrot.lane.b32.xlu0 %v1858, 28
      %v1955 = vpop.permute.xlu0 %1954
      %v2020 = vrot.slane %v467, 2
      %v2021 = vrot.slane %v468, 2
      %v2022 = vsel %vm771, %v2020, %v2021
      %v2023 = vrot.slane %v469, 2
      %v2024 = vsel %vm771, %v2021, %v2023
      %v2025 = vrot.slane %v471, 2
      %v2026 = vrot.slane %v472, 2
      %v2027 = vsel %vm771, %v2025, %v2026
      %v2028 = vrot.slane %v473, 2
      %v2029 = vsel %vm771, %v2026, %v2028
      %v2030 = vrot.slane %v475, 2
      %v2031 = vrot.slane %v476, 2
      %v2032 = vsel %vm771, %v2030, %v2031
      %v2033 = vrot.slane %v477, 2
      %v2034 = vsel %vm771, %v2031, %v2033
      %v2035 = vrot.slane %v479, 2
      %v2036 = vrot.slane %v480, 2
      %v2037 = vsel %vm771, %v2035, %v2036
      %v2038 = vrot.slane %v481, 2
      %v2039 = vsel %vm771, %v2036, %v2038
      %v2040 = vrot.slane %v483, 2
      %v2041 = vrot.slane %v484, 2
      %v2042 = vsel %vm771, %v2040, %v2041
      %v2043 = vrot.slane %v485, 2
      %v2044 = vsel %vm771, %v2041, %v2043
      %v2045 = vrot.slane %v487, 2
      %v2046 = vrot.slane %v488, 2
      %v2047 = vsel %vm771, %v2045, %v2046
      %v2048 = vrot.slane %v489, 2
      %v2049 = vsel %vm771, %v2046, %v2048
      %v2050 = vrot.slane %v491, 2
      %v2051 = vrot.slane %v492, 2
      %v2052 = vsel %vm771, %v2050, %v2051
      %v2053 = vrot.slane %v493, 2
      %v2054 = vsel %vm771, %v2051, %v2053
      %v2055 = vrot.slane %v495, 2
      %v2056 = vrot.slane %v496, 2
      %v2057 = vsel %vm771, %v2055, %v2056
      %v2058 = vrot.slane %v497, 2
      %v2059 = vsel %vm771, %v2056, %v2058
      %v2060 = vrot.slane %v499, 2
      %v2061 = vrot.slane %v500, 2
      %v2062 = vsel %vm771, %v2060, %v2061
      %v2063 = vrot.slane %v501, 2
      %v2064 = vsel %vm771, %v2061, %v2063
      %v2065 = vrot.slane %v503, 2
      %v2066 = vrot.slane %v504, 2
      %v2067 = vsel %vm771, %v2065, %v2066
      %v2068 = vrot.slane %v505, 2
      %v2069 = vsel %vm771, %v2066, %v2068
      %v2070 = vrot.slane %v507, 2
      %v2071 = vrot.slane %v508, 2
      %v2072 = vsel %vm771, %v2070, %v2071
      %v2073 = vrot.slane %v509, 2
      %v2074 = vsel %vm771, %v2071, %v2073
      %v2075 = vrot.slane %v511, 2
      %v2076 = vrot.slane %v512, 2
      %v2077 = vsel %vm771, %v2075, %v2076
      %v2078 = vrot.slane %v513, 2
      %v2079 = vsel %vm771, %v2076, %v2078
      %v2080 = vrot.slane %v515, 2
      %v2081 = vrot.slane %v516, 2
      %v2082 = vsel %vm771, %v2080, %v2081
      %v2083 = vrot.slane %v517, 2
      %v2084 = vsel %vm771, %v2081, %v2083
      %v2085 = vrot.slane %v519, 2
      %v2086 = vrot.slane %v520, 2
      %v2087 = vsel %vm771, %v2085, %v2086
      %v2088 = vrot.slane %v521, 2
      %v2089 = vsel %vm771, %v2086, %v2088
      %v2090 = vrot.slane %v523, 2
      %v2091 = vrot.slane %v524, 2
      %v2092 = vsel %vm771, %v2090, %v2091
      %v2093 = vrot.slane %v525, 2
      %v2094 = vsel %vm771, %v2091, %v2093
      %v2095 = vrot.slane %v527, 2
      %v2096 = vrot.slane %v528, 2
      %v2097 = vsel %vm771, %v2095, %v2096
      %v2098 = vrot.slane %v529, 2
      %v2099 = vsel %vm771, %v2096, %v2098
      %2100 = vrot.lane.b32.xlu0 %v2020, 32
      %v2101 = vpop.permute.xlu0 %2100
      %2102 = vrot.lane.b32.xlu0 %v2022, 32
      %v2103 = vpop.permute.xlu0 %2102
      %2104 = vrot.lane.b32.xlu0 %v2024, 32
      %v2105 = vpop.permute.xlu0 %2104
      %2106 = vrot.lane.b32.xlu0 %v2025, 32
      %v2107 = vpop.permute.xlu0 %2106
      %2108 = vrot.lane.b32.xlu0 %v2027, 32
      %v2109 = vpop.permute.xlu0 %2108
      %2110 = vrot.lane.b32.xlu0 %v2029, 32
      %v2111 = vpop.permute.xlu0 %2110
      %2112 = vrot.lane.b32.xlu0 %v2030, 32
      %v2113 = vpop.permute.xlu0 %2112
      %2114 = vrot.lane.b32.xlu0 %v2032, 32
      %v2115 = vpop.permute.xlu0 %2114
      %2116 = vrot.lane.b32.xlu0 %v2034, 32
      %v2117 = vpop.permute.xlu0 %2116
      %2118 = vrot.lane.b32.xlu0 %v2035, 32
      %v2119 = vpop.permute.xlu0 %2118
      %2120 = vrot.lane.b32.xlu0 %v2037, 32
      %v2121 = vpop.permute.xlu0 %2120
      %2122 = vrot.lane.b32.xlu0 %v2039, 32
      %v2123 = vpop.permute.xlu0 %2122
      %2124 = vrot.lane.b32.xlu0 %v2040, 32
      %v2125 = vpop.permute.xlu0 %2124
      %2126 = vrot.lane.b32.xlu0 %v2042, 32
      %v2127 = vpop.permute.xlu0 %2126
      %2128 = vrot.lane.b32.xlu0 %v2044, 32
      %v2129 = vpop.permute.xlu0 %2128
      %2130 = vrot.lane.b32.xlu0 %v2045, 32
      %v2131 = vpop.permute.xlu0 %2130
      %2132 = vrot.lane.b32.xlu0 %v2047, 32
      %v2133 = vpop.permute.xlu0 %2132
      %2134 = vrot.lane.b32.xlu0 %v2049, 32
      %v2135 = vpop.permute.xlu0 %2134
      %2136 = vrot.lane.b32.xlu0 %v2050, 32
      %v2137 = vpop.permute.xlu0 %2136
      %2138 = vrot.lane.b32.xlu0 %v2052, 32
      %v2139 = vpop.permute.xlu0 %2138
      %2140 = vrot.lane.b32.xlu0 %v2054, 32
      %v2141 = vpop.permute.xlu0 %2140
      %2142 = vrot.lane.b32.xlu0 %v2055, 32
      %v2143 = vpop.permute.xlu0 %2142
      %2144 = vrot.lane.b32.xlu0 %v2057, 32
      %v2145 = vpop.permute.xlu0 %2144
      %2146 = vrot.lane.b32.xlu0 %v2059, 32
      %v2147 = vpop.permute.xlu0 %2146
      %2148 = vrot.lane.b32.xlu0 %v2060, 32
      %v2149 = vpop.permute.xlu0 %2148
      %2150 = vrot.lane.b32.xlu0 %v2062, 32
      %v2151 = vpop.permute.xlu0 %2150
      %2152 = vrot.lane.b32.xlu0 %v2064, 32
      %v2153 = vpop.permute.xlu0 %2152
      %2154 = vrot.lane.b32.xlu0 %v2065, 32
      %v2155 = vpop.permute.xlu0 %2154
      %2156 = vrot.lane.b32.xlu0 %v2067, 32
      %v2157 = vpop.permute.xlu0 %2156
      %2158 = vrot.lane.b32.xlu0 %v2069, 32
      %v2159 = vpop.permute.xlu0 %2158
      %2160 = vrot.lane.b32.xlu0 %v2070, 32
      %v2161 = vpop.permute.xlu0 %2160
      %2162 = vrot.lane.b32.xlu0 %v2072, 32
      %v2163 = vpop.permute.xlu0 %2162
      %2164 = vrot.lane.b32.xlu0 %v2074, 32
      %v2165 = vpop.permute.xlu0 %2164
      %2166 = vrot.lane.b32.xlu0 %v2075, 32
      %v2167 = vpop.permute.xlu0 %2166
      %2168 = vrot.lane.b32.xlu0 %v2077, 32
      %v2169 = vpop.permute.xlu0 %2168
      %2170 = vrot.lane.b32.xlu0 %v2079, 32
      %v2171 = vpop.permute.xlu0 %2170
      %2172 = vrot.lane.b32.xlu0 %v2080, 32
      %v2173 = vpop.permute.xlu0 %2172
      %2174 = vrot.lane.b32.xlu0 %v2082, 32
      %v2175 = vpop.permute.xlu0 %2174
      %2176 = vrot.lane.b32.xlu0 %v2084, 32
      %v2177 = vpop.permute.xlu0 %2176
      %2178 = vrot.lane.b32.xlu0 %v2085, 32
      %v2179 = vpop.permute.xlu0 %2178
      %2180 = vrot.lane.b32.xlu0 %v2087, 32
      %v2181 = vpop.permute.xlu0 %2180
      %2182 = vrot.lane.b32.xlu0 %v2089, 32
      %v2183 = vpop.permute.xlu0 %2182
      %2184 = vrot.lane.b32.xlu0 %v2090, 32
      %v2185 = vpop.permute.xlu0 %2184
      %2186 = vrot.lane.b32.xlu0 %v2092, 32
      %v2187 = vpop.permute.xlu0 %2186
      %2188 = vrot.lane.b32.xlu0 %v2094, 32
      %v2189 = vpop.permute.xlu0 %2188
      %2190 = vrot.lane.b32.xlu0 %v2095, 32
      %v2191 = vpop.permute.xlu0 %2190
      %2192 = vrot.lane.b32.xlu0 %v2097, 32
      %v2193 = vpop.permute.xlu0 %2192
      %2194 = vrot.lane.b32.xlu0 %v2099, 32
      %v2195 = vpop.permute.xlu0 %2194
      %v2244 = vsel %vm257, %v337, %v612
      %v2245 = vsel %vm257, %v338, %v614
      %v2246 = vsel %vm257, %v339, %v616
      %v2247 = vsel %vm257, %v341, %v618
      %v2248 = vsel %vm257, %v342, %v620
      %v2249 = vsel %vm257, %v343, %v622
      %v2250 = vsel %vm257, %v345, %v624
      %v2251 = vsel %vm257, %v346, %v626
      %v2252 = vsel %vm257, %v347, %v628
      %v2253 = vsel %vm257, %v349, %v630
      %v2254 = vsel %vm257, %v350, %v632
      %v2255 = vsel %vm257, %v351, %v634
      %v2256 = vsel %vm257, %v353, %v636
      %v2257 = vsel %vm257, %v354, %v638
      %v2258 = vsel %vm257, %v355, %v640
      %v2259 = vsel %vm257, %v357, %v642
      %v2260 = vsel %vm257, %v358, %v644
      %v2261 = vsel %vm257, %v359, %v646
      %v2262 = vsel %vm257, %v361, %v648
      %v2263 = vsel %vm257, %v362, %v650
      %v2264 = vsel %vm257, %v363, %v652
      %v2265 = vsel %vm257, %v365, %v654
      %v2266 = vsel %vm257, %v366, %v656
      %v2267 = vsel %vm257, %v367, %v658
      %v2268 = vsel %vm257, %v369, %v660
      %v2269 = vsel %vm257, %v370, %v662
      %v2270 = vsel %vm257, %v371, %v664
      %v2271 = vsel %vm257, %v373, %v666
      %v2272 = vsel %vm257, %v374, %v668
      %v2273 = vsel %vm257, %v375, %v670
      %v2274 = vsel %vm257, %v377, %v672
      %v2275 = vsel %vm257, %v378, %v674
      %v2276 = vsel %vm257, %v379, %v676
      %v2277 = vsel %vm257, %v381, %v678
      %v2278 = vsel %vm257, %v382, %v680
      %v2279 = vsel %vm257, %v383, %v682
      %v2280 = vsel %vm257, %v385, %v684
      %v2281 = vsel %vm257, %v386, %v686
      %v2282 = vsel %vm257, %v387, %v688
      %v2283 = vsel %vm257, %v389, %v690
      %v2284 = vsel %vm257, %v390, %v692
      %v2285 = vsel %vm257, %v391, %v694
      %v2286 = vsel %vm257, %v393, %v696
      %v2287 = vsel %vm257, %v394, %v698
      %v2288 = vsel %vm257, %v395, %v700
      %v2289 = vsel %vm257, %v397, %v702
      %v2290 = vsel %vm257, %v398, %v704
      %v2291 = vsel %vm257, %v399, %v706
      %vm2292 = vcmask 64512
      %v2293 = vsel %vm2292, %v2244, %v853
      %v2294 = vsel %vm2292, %v2245, %v855
      %v2295 = vsel %vm2292, %v2246, %v857
      %v2296 = vsel %vm2292, %v2247, %v859
      %v2297 = vsel %vm2292, %v2248, %v861
      %v2298 = vsel %vm2292, %v2249, %v863
      %v2299 = vsel %vm2292, %v2250, %v865
      %v2300 = vsel %vm2292, %v2251, %v867
      %v2301 = vsel %vm2292, %v2252, %v869
      %v2302 = vsel %vm2292, %v2253, %v871
      %v2303 = vsel %vm2292, %v2254, %v873
      %v2304 = vsel %vm2292, %v2255, %v875
      %v2305 = vsel %vm2292, %v2256, %v877
      %v2306 = vsel %vm2292, %v2257, %v879
      %v2307 = vsel %vm2292, %v2258, %v881
      %v2308 = vsel %vm2292, %v2259, %v883
      %v2309 = vsel %vm2292, %v2260, %v885
      %v2310 = vsel %vm2292, %v2261, %v887
      %v2311 = vsel %vm2292, %v2262, %v889
      %v2312 = vsel %vm2292, %v2263, %v891
      %v2313 = vsel %vm2292, %v2264, %v893
      %v2314 = vsel %vm2292, %v2265, %v895
      %v2315 = vsel %vm2292, %v2266, %v897
      %v2316 = vsel %vm2292, %v2267, %v899
      %v2317 = vsel %vm2292, %v2268, %v901
      %v2318 = vsel %vm2292, %v2269, %v903
      %v2319 = vsel %vm2292, %v2270, %v905
      %v2320 = vsel %vm2292, %v2271, %v907
      %v2321 = vsel %vm2292, %v2272, %v909
      %v2322 = vsel %vm2292, %v2273, %v911
      %v2323 = vsel %vm2292, %v2274, %v913
      %v2324 = vsel %vm2292, %v2275, %v915
      %v2325 = vsel %vm2292, %v2276, %v917
      %v2326 = vsel %vm2292, %v2277, %v919
      %v2327 = vsel %vm2292, %v2278, %v921
      %v2328 = vsel %vm2292, %v2279, %v923
      %v2329 = vsel %vm2292, %v2280, %v925
      %v2330 = vsel %vm2292, %v2281, %v927
      %v2331 = vsel %vm2292, %v2282, %v929
      %v2332 = vsel %vm2292, %v2283, %v931
      %v2333 = vsel %vm2292, %v2284, %v933
      %v2334 = vsel %vm2292, %v2285, %v935
      %v2335 = vsel %vm2292, %v2286, %v937
      %v2336 = vsel %vm2292, %v2287, %v939
      %v2337 = vsel %vm2292, %v2288, %v941
      %v2338 = vsel %vm2292, %v2289, %v943
      %v2339 = vsel %vm2292, %v2290, %v945
      %v2340 = vsel %vm2292, %v2291, %v947
      %vm2341 = vcmask 97280
      %v2342 = vsel %vm2341, %v2293, %v1045
      %v2343 = vsel %vm2341, %v2294, %v1047
      %v2344 = vsel %vm2341, %v2295, %v1049
      %v2345 = vsel %vm2341, %v2296, %v1051
      %v2346 = vsel %vm2341, %v2297, %v1053
      %v2347 = vsel %vm2341, %v2298, %v1055
      %v2348 = vsel %vm2341, %v2299, %v1057
      %v2349 = vsel %vm2341, %v2300, %v1059
      %v2350 = vsel %vm2341, %v2301, %v1061
      %v2351 = vsel %vm2341, %v2302, %v1063
      %v2352 = vsel %vm2341, %v2303, %v1065
      %v2353 = vsel %vm2341, %v2304, %v1067
      %v2354 = vsel %vm2341, %v2305, %v1069
      %v2355 = vsel %vm2341, %v2306, %v1071
      %v2356 = vsel %vm2341, %v2307, %v1073
      %v2357 = vsel %vm2341, %v2308, %v1075
      %v2358 = vsel %vm2341, %v2309, %v1077
      %v2359 = vsel %vm2341, %v2310, %v1079
      %v2360 = vsel %vm2341, %v2311, %v1081
      %v2361 = vsel %vm2341, %v2312, %v1083
      %v2362 = vsel %vm2341, %v2313, %v1085
      %v2363 = vsel %vm2341, %v2314, %v1087
      %v2364 = vsel %vm2341, %v2315, %v1089
      %v2365 = vsel %vm2341, %v2316, %v1091
      %v2366 = vsel %vm2341, %v2317, %v1093
      %v2367 = vsel %vm2341, %v2318, %v1095
      %v2368 = vsel %vm2341, %v2319, %v1097
      %v2369 = vsel %vm2341, %v2320, %v1099
      %v2370 = vsel %vm2341, %v2321, %v1101
      %v2371 = vsel %vm2341, %v2322, %v1103
      %v2372 = vsel %vm2341, %v2323, %v1105
      %v2373 = vsel %vm2341, %v2324, %v1107
      %v2374 = vsel %vm2341, %v2325, %v1109
      %v2375 = vsel %vm2341, %v2326, %v1111
      %v2376 = vsel %vm2341, %v2327, %v1113
      %v2377 = vsel %vm2341, %v2328, %v1115
      %v2378 = vsel %vm2341, %v2329, %v1117
      %v2379 = vsel %vm2341, %v2330, %v1119
      %v2380 = vsel %vm2341, %v2331, %v1121
      %v2381 = vsel %vm2341, %v2332, %v1123
      %v2382 = vsel %vm2341, %v2333, %v1125
      %v2383 = vsel %vm2341, %v2334, %v1127
      %v2384 = vsel %vm2341, %v2335, %v1129
      %v2385 = vsel %vm2341, %v2336, %v1131
      %v2386 = vsel %vm2341, %v2337, %v1133
      %v2387 = vsel %vm2341, %v2338, %v1135
      %v2388 = vsel %vm2341, %v2339, %v1137
      %v2389 = vsel %vm2341, %v2340, %v1139
      %vm2390 = vcmask 130048
      %v2391 = vsel %vm2390, %v2342, %v1237
      %v2392 = vsel %vm2390, %v2343, %v1239
      %v2393 = vsel %vm2390, %v2344, %v1241
      %v2394 = vsel %vm2390, %v2345, %v1243
      %v2395 = vsel %vm2390, %v2346, %v1245
      %v2396 = vsel %vm2390, %v2347, %v1247
      %v2397 = vsel %vm2390, %v2348, %v1249
      %v2398 = vsel %vm2390, %v2349, %v1251
      %v2399 = vsel %vm2390, %v2350, %v1253
      %v2400 = vsel %vm2390, %v2351, %v1255
      %v2401 = vsel %vm2390, %v2352, %v1257
      %v2402 = vsel %vm2390, %v2353, %v1259
      %v2403 = vsel %vm2390, %v2354, %v1261
      %v2404 = vsel %vm2390, %v2355, %v1263
      %v2405 = vsel %vm2390, %v2356, %v1265
      %v2406 = vsel %vm2390, %v2357, %v1267
      %v2407 = vsel %vm2390, %v2358, %v1269
      %v2408 = vsel %vm2390, %v2359, %v1271
      %v2409 = vsel %vm2390, %v2360, %v1273
      %v2410 = vsel %vm2390, %v2361, %v1275
      %v2411 = vsel %vm2390, %v2362, %v1277
      %v2412 = vsel %vm2390, %v2363, %v1279
      %v2413 = vsel %vm2390, %v2364, %v1281
      %v2414 = vsel %vm2390, %v2365, %v1283
      %v2415 = vsel %vm2390, %v2366, %v1285
      %v2416 = vsel %vm2390, %v2367, %v1287
      %v2417 = vsel %vm2390, %v2368, %v1289
      %v2418 = vsel %vm2390, %v2369, %v1291
      %v2419 = vsel %vm2390, %v2370, %v1293
      %v2420 = vsel %vm2390, %v2371, %v1295
      %v2421 = vsel %vm2390, %v2372, %v1297
      %v2422 = vsel %vm2390, %v2373, %v1299
      %v2423 = vsel %vm2390, %v2374, %v1301
      %v2424 = vsel %vm2390, %v2375, %v1303
      %v2425 = vsel %vm2390, %v2376, %v1305
      %v2426 = vsel %vm2390, %v2377, %v1307
      %v2427 = vsel %vm2390, %v2378, %v1309
      %v2428 = vsel %vm2390, %v2379, %v1311
      %v2429 = vsel %vm2390, %v2380, %v1313
      %v2430 = vsel %vm2390, %v2381, %v1315
      %v2431 = vsel %vm2390, %v2382, %v1317
      %v2432 = vsel %vm2390, %v2383, %v1319
      %v2433 = vsel %vm2390, %v2384, %v1321
      %v2434 = vsel %vm2390, %v2385, %v1323
      %v2435 = vsel %vm2390, %v2386, %v1325
      %v2436 = vsel %vm2390, %v2387, %v1327
      %v2437 = vsel %vm2390, %v2388, %v1329
      %v2438 = vsel %vm2390, %v2389, %v1331
      %vm2439 = vcmask 162816
      %v2440 = vsel %vm2439, %v2391, %v1477
      %v2441 = vsel %vm2439, %v2392, %v1479
      %v2442 = vsel %vm2439, %v2393, %v1481
      %v2443 = vsel %vm2439, %v2394, %v1483
      %v2444 = vsel %vm2439, %v2395, %v1485
      %v2445 = vsel %vm2439, %v2396, %v1487
      %v2446 = vsel %vm2439, %v2397, %v1489
      %v2447 = vsel %vm2439, %v2398, %v1491
      %v2448 = vsel %vm2439, %v2399, %v1493
      %v2449 = vsel %vm2439, %v2400, %v1495
      %v2450 = vsel %vm2439, %v2401, %v1497
      %v2451 = vsel %vm2439, %v2402, %v1499
      %v2452 = vsel %vm2439, %v2403, %v1501
      %v2453 = vsel %vm2439, %v2404, %v1503
      %v2454 = vsel %vm2439, %v2405, %v1505
      %v2455 = vsel %vm2439, %v2406, %v1507
      %v2456 = vsel %vm2439, %v2407, %v1509
      %v2457 = vsel %vm2439, %v2408, %v1511
      %v2458 = vsel %vm2439, %v2409, %v1513
      %v2459 = vsel %vm2439, %v2410, %v1515
      %v2460 = vsel %vm2439, %v2411, %v1517
      %v2461 = vsel %vm2439, %v2412, %v1519
      %v2462 = vsel %vm2439, %v2413, %v1521
      %v2463 = vsel %vm2439, %v2414, %v1523
      %v2464 = vsel %vm2439, %v2415, %v1525
      %v2465 = vsel %vm2439, %v2416, %v1527
      %v2466 = vsel %vm2439, %v2417, %v1529
      %v2467 = vsel %vm2439, %v2418, %v1531
      %v2468 = vsel %vm2439, %v2419, %v1533
      %v2469 = vsel %vm2439, %v2420, %v1535
      %v2470 = vsel %vm2439, %v2421, %v1537
      %v2471 = vsel %vm2439, %v2422, %v1539
      %v2472 = vsel %vm2439, %v2423, %v1541
      %v2473 = vsel %vm2439, %v2424, %v1543
      %v2474 = vsel %vm2439, %v2425, %v1545
      %v2475 = vsel %vm2439, %v2426, %v1547
      %v2476 = vsel %vm2439, %v2427, %v1549
      %v2477 = vsel %vm2439, %v2428, %v1551
      %v2478 = vsel %vm2439, %v2429, %v1553
      %v2479 = vsel %vm2439, %v2430, %v1555
      %v2480 = vsel %vm2439, %v2431, %v1557
      %v2481 = vsel %vm2439, %v2432, %v1559
      %v2482 = vsel %vm2439, %v2433, %v1561
      %v2483 = vsel %vm2439, %v2434, %v1563
      %v2484 = vsel %vm2439, %v2435, %v1565
      %v2485 = vsel %vm2439, %v2436, %v1567
      %v2486 = vsel %vm2439, %v2437, %v1569
      %v2487 = vsel %vm2439, %v2438, %v1571
      %vm2488 = vcmask 195584
      %v2489 = vsel %vm2488, %v2440, %v1669
      %v2490 = vsel %vm2488, %v2441, %v1671
      %v2491 = vsel %vm2488, %v2442, %v1673
      %v2492 = vsel %vm2488, %v2443, %v1675
      %v2493 = vsel %vm2488, %v2444, %v1677
      %v2494 = vsel %vm2488, %v2445, %v1679
      %v2495 = vsel %vm2488, %v2446, %v1681
      %v2496 = vsel %vm2488, %v2447, %v1683
      %v2497 = vsel %vm2488, %v2448, %v1685
      %v2498 = vsel %vm2488, %v2449, %v1687
      %v2499 = vsel %vm2488, %v2450, %v1689
      %v2500 = vsel %vm2488, %v2451, %v1691
      %v2501 = vsel %vm2488, %v2452, %v1693
      %v2502 = vsel %vm2488, %v2453, %v1695
      %v2503 = vsel %vm2488, %v2454, %v1697
      %v2504 = vsel %vm2488, %v2455, %v1699
      %v2505 = vsel %vm2488, %v2456, %v1701
      %v2506 = vsel %vm2488, %v2457, %v1703
      %v2507 = vsel %vm2488, %v2458, %v1705
      %v2508 = vsel %vm2488, %v2459, %v1707
      %v2509 = vsel %vm2488, %v2460, %v1709
      %v2510 = vsel %vm2488, %v2461, %v1711
      %v2511 = vsel %vm2488, %v2462, %v1713
      %v2512 = vsel %vm2488, %v2463, %v1715
      %v2513 = vsel %vm2488, %v2464, %v1717
      %v2514 = vsel %vm2488, %v2465, %v1719
      %v2515 = vsel %vm2488, %v2466, %v1721
      %v2516 = vsel %vm2488, %v2467, %v1723
      %v2517 = vsel %vm2488, %v2468, %v1725
      %v2518 = vsel %vm2488, %v2469, %v1727
      %v2519 = vsel %vm2488, %v2470, %v1729
      %v2520 = vsel %vm2488, %v2471, %v1731
      %v2521 = vsel %vm2488, %v2472, %v1733
      %v2522 = vsel %vm2488, %v2473, %v1735
      %v2523 = vsel %vm2488, %v2474, %v1737
      %v2524 = vsel %vm2488, %v2475, %v1739
      %v2525 = vsel %vm2488, %v2476, %v1741
      %v2526 = vsel %vm2488, %v2477, %v1743
      %v2527 = vsel %vm2488, %v2478, %v1745
      %v2528 = vsel %vm2488, %v2479, %v1747
      %v2529 = vsel %vm2488, %v2480, %v1749
      %v2530 = vsel %vm2488, %v2481, %v1751
      %v2531 = vsel %vm2488, %v2482, %v1753
      %v2532 = vsel %vm2488, %v2483, %v1755
      %v2533 = vsel %vm2488, %v2484, %v1757
      %v2534 = vsel %vm2488, %v2485, %v1759
      %v2535 = vsel %vm2488, %v2486, %v1761
      %v2536 = vsel %vm2488, %v2487, %v1763
      %vm2537 = vcmask 228352
      %v2538 = vsel %vm2537, %v2489, %v1861
      %v2539 = vsel %vm2537, %v2490, %v1863
      %v2540 = vsel %vm2537, %v2491, %v1865
      %v2541 = vsel %vm2537, %v2492, %v1867
      %v2542 = vsel %vm2537, %v2493, %v1869
      %v2543 = vsel %vm2537, %v2494, %v1871
      %v2544 = vsel %vm2537, %v2495, %v1873
      %v2545 = vsel %vm2537, %v2496, %v1875
      %v2546 = vsel %vm2537, %v2497, %v1877
      %v2547 = vsel %vm2537, %v2498, %v1879
      %v2548 = vsel %vm2537, %v2499, %v1881
      %v2549 = vsel %vm2537, %v2500, %v1883
      %v2550 = vsel %vm2537, %v2501, %v1885
      %v2551 = vsel %vm2537, %v2502, %v1887
      %v2552 = vsel %vm2537, %v2503, %v1889
      %v2553 = vsel %vm2537, %v2504, %v1891
      %v2554 = vsel %vm2537, %v2505, %v1893
      %v2555 = vsel %vm2537, %v2506, %v1895
      %v2556 = vsel %vm2537, %v2507, %v1897
      %v2557 = vsel %vm2537, %v2508, %v1899
      %v2558 = vsel %vm2537, %v2509, %v1901
      %v2559 = vsel %vm2537, %v2510, %v1903
      %v2560 = vsel %vm2537, %v2511, %v1905
      %v2561 = vsel %vm2537, %v2512, %v1907
      %v2562 = vsel %vm2537, %v2513, %v1909
      %v2563 = vsel %vm2537, %v2514, %v1911
      %v2564 = vsel %vm2537, %v2515, %v1913
      %v2565 = vsel %vm2537, %v2516, %v1915
      %v2566 = vsel %vm2537, %v2517, %v1917
      %v2567 = vsel %vm2537, %v2518, %v1919
      %v2568 = vsel %vm2537, %v2519, %v1921
      %v2569 = vsel %vm2537, %v2520, %v1923
      %v2570 = vsel %vm2537, %v2521, %v1925
      %v2571 = vsel %vm2537, %v2522, %v1927
      %v2572 = vsel %vm2537, %v2523, %v1929
      %v2573 = vsel %vm2537, %v2524, %v1931
      %v2574 = vsel %vm2537, %v2525, %v1933
      %v2575 = vsel %vm2537, %v2526, %v1935
      %v2576 = vsel %vm2537, %v2527, %v1937
      %v2577 = vsel %vm2537, %v2528, %v1939
      %v2578 = vsel %vm2537, %v2529, %v1941
      %v2579 = vsel %vm2537, %v2530, %v1943
      %v2580 = vsel %vm2537, %v2531, %v1945
      %v2581 = vsel %vm2537, %v2532, %v1947
      %v2582 = vsel %vm2537, %v2533, %v1949
      %v2583 = vsel %vm2537, %v2534, %v1951
      %v2584 = vsel %vm2537, %v2535, %v1953
      %v2585 = vsel %vm2537, %v2536, %v1955
      %vm2586 = vcmask 261120
      %v2587 = vsel %vm2586, %v2538, %v2101
      %v2588 = vsel %vm2586, %v2539, %v2103
      %v2589 = vsel %vm2586, %v2540, %v2105
      %v2590 = vsel %vm2586, %v2541, %v2107
      %v2591 = vsel %vm2586, %v2542, %v2109
      %v2592 = vsel %vm2586, %v2543, %v2111
      %v2593 = vsel %vm2586, %v2544, %v2113
      %v2594 = vsel %vm2586, %v2545, %v2115
      %v2595 = vsel %vm2586, %v2546, %v2117
      %v2596 = vsel %vm2586, %v2547, %v2119
      %v2597 = vsel %vm2586, %v2548, %v2121
      %v2598 = vsel %vm2586, %v2549, %v2123
      %v2599 = vsel %vm2586, %v2550, %v2125
      %v2600 = vsel %vm2586, %v2551, %v2127
      %v2601 = vsel %vm2586, %v2552, %v2129
      %v2602 = vsel %vm2586, %v2553, %v2131
      %v2603 = vsel %vm2586, %v2554, %v2133
      %v2604 = vsel %vm2586, %v2555, %v2135
      %v2605 = vsel %vm2586, %v2556, %v2137
      %v2606 = vsel %vm2586, %v2557, %v2139
      %v2607 = vsel %vm2586, %v2558, %v2141
      %v2608 = vsel %vm2586, %v2559, %v2143
      %v2609 = vsel %vm2586, %v2560, %v2145
      %v2610 = vsel %vm2586, %v2561, %v2147
      %v2611 = vsel %vm2586, %v2562, %v2149
      %v2612 = vsel %vm2586, %v2563, %v2151
      %v2613 = vsel %vm2586, %v2564, %v2153
      %v2614 = vsel %vm2586, %v2565, %v2155
      %v2615 = vsel %vm2586, %v2566, %v2157
      %v2616 = vsel %vm2586, %v2567, %v2159
      %v2617 = vsel %vm2586, %v2568, %v2161
      %v2618 = vsel %vm2586, %v2569, %v2163
      %v2619 = vsel %vm2586, %v2570, %v2165
      %v2620 = vsel %vm2586, %v2571, %v2167
      %v2621 = vsel %vm2586, %v2572, %v2169
      %v2622 = vsel %vm2586, %v2573, %v2171
      %v2623 = vsel %vm2586, %v2574, %v2173
      %v2624 = vsel %vm2586, %v2575, %v2175
      %v2625 = vsel %vm2586, %v2576, %v2177
      %v2626 = vsel %vm2586, %v2577, %v2179
      %v2627 = vsel %vm2586, %v2578, %v2181
      %v2628 = vsel %vm2586, %v2579, %v2183
      %v2629 = vsel %vm2586, %v2580, %v2185
      %v2630 = vsel %vm2586, %v2581, %v2187
      %v2631 = vsel %vm2586, %v2582, %v2189
      %v2632 = vsel %vm2586, %v2583, %v2191
      %v2633 = vsel %vm2586, %v2584, %v2193
      %v2634 = vsel %vm2586, %v2585, %v2195
      %vm2683 = vcmask 1040384
      %v2684 = vrot.slane %v2587, 7
      %v2685 = vrot.slane %v2588, 7
      %v2686 = vsel %vm2683, %v2684, %v2685
      %v2687 = vrot.slane %v2589, 7
      %v2688 = vsel %vm2683, %v2685, %v2687
      %v2689 = vrot.slane %v2590, 7
      %v2690 = vrot.slane %v2591, 7
      %v2691 = vsel %vm2683, %v2689, %v2690
      %v2692 = vrot.slane %v2592, 7
      %v2693 = vsel %vm2683, %v2690, %v2692
      %v2694 = vrot.slane %v2593, 7
      %v2695 = vrot.slane %v2594, 7
      %v2696 = vsel %vm2683, %v2694, %v2695
      %v2697 = vrot.slane %v2595, 7
      %v2698 = vsel %vm2683, %v2695, %v2697
      %v2699 = vrot.slane %v2596, 7
      %v2700 = vrot.slane %v2597, 7
      %v2701 = vsel %vm2683, %v2699, %v2700
      %v2702 = vrot.slane %v2598, 7
      %v2703 = vsel %vm2683, %v2700, %v2702
      %v2704 = vrot.slane %v2599, 7
      %v2705 = vrot.slane %v2600, 7
      %v2706 = vsel %vm2683, %v2704, %v2705
      %v2707 = vrot.slane %v2601, 7
      %v2708 = vsel %vm2683, %v2705, %v2707
      %v2709 = vrot.slane %v2602, 7
      %v2710 = vrot.slane %v2603, 7
      %v2711 = vsel %vm2683, %v2709, %v2710
      %v2712 = vrot.slane %v2604, 7
      %v2713 = vsel %vm2683, %v2710, %v2712
      %v2714 = vrot.slane %v2605, 7
      %v2715 = vrot.slane %v2606, 7
      %v2716 = vsel %vm2683, %v2714, %v2715
      %v2717 = vrot.slane %v2607, 7
      %v2718 = vsel %vm2683, %v2715, %v2717
      %v2719 = vrot.slane %v2608, 7
      %v2720 = vrot.slane %v2609, 7
      %v2721 = vsel %vm2683, %v2719, %v2720
      %v2722 = vrot.slane %v2610, 7
      %v2723 = vsel %vm2683, %v2720, %v2722
      %v2724 = vrot.slane %v2611, 7
      %v2725 = vrot.slane %v2612, 7
      %v2726 = vsel %vm2683, %v2724, %v2725
      %v2727 = vrot.slane %v2613, 7
      %v2728 = vsel %vm2683, %v2725, %v2727
      %v2729 = vrot.slane %v2614, 7
      %v2730 = vrot.slane %v2615, 7
      %v2731 = vsel %vm2683, %v2729, %v2730
      %v2732 = vrot.slane %v2616, 7
      %v2733 = vsel %vm2683, %v2730, %v2732
      %v2734 = vrot.slane %v2617, 7
      %v2735 = vrot.slane %v2618, 7
      %v2736 = vsel %vm2683, %v2734, %v2735
      %v2737 = vrot.slane %v2619, 7
      %v2738 = vsel %vm2683, %v2735, %v2737
      %v2739 = vrot.slane %v2620, 7
      %v2740 = vrot.slane %v2621, 7
      %v2741 = vsel %vm2683, %v2739, %v2740
      %v2742 = vrot.slane %v2622, 7
      %v2743 = vsel %vm2683, %v2740, %v2742
      %v2744 = vrot.slane %v2623, 7
      %v2745 = vrot.slane %v2624, 7
      %v2746 = vsel %vm2683, %v2744, %v2745
      %v2747 = vrot.slane %v2625, 7
      %v2748 = vsel %vm2683, %v2745, %v2747
      %v2749 = vrot.slane %v2626, 7
      %v2750 = vrot.slane %v2627, 7
      %v2751 = vsel %vm2683, %v2749, %v2750
      %v2752 = vrot.slane %v2628, 7
      %v2753 = vsel %vm2683, %v2750, %v2752
      %v2754 = vrot.slane %v2629, 7
      %v2755 = vrot.slane %v2630, 7
      %v2756 = vsel %vm2683, %v2754, %v2755
      %v2757 = vrot.slane %v2631, 7
      %v2758 = vsel %vm2683, %v2755, %v2757
      %v2759 = vrot.slane %v2632, 7
      %v2760 = vrot.slane %v2633, 7
      %v2761 = vsel %vm2683, %v2759, %v2760
      %v2762 = vrot.slane %v2634, 7
      %v2763 = vsel %vm2683, %v2760, %v2762
      %v2764 = vld [vmem:[%s1] sm:$0xff]
      %v2765 = vld [vmem:[%s1 + $0x8] sm:$0xff]
      %v2766 = vld [vmem:[%s1 + $0x10] sm:$0xff]
      %v2767 = vld [vmem:[%s1 + $0x18] sm:$0xff]
      %v2768 = vld [vmem:[%s1 + $0x20] sm:$0xf]
      %v2769 = vld [vmem:[%s2] sm:$0x1]
      %v2771 = vlaneseq
      %v2772 = vshrl.u32 %v2771, 7
      %v2773 = vsub.s32 0, %v2772
      %v2774 = vrot.slane %v2769, %v2773
      %vm2776 = vcmask 293888
      %v2777 = vsel %vm2776, %v2686, 0
      %v2779 = vsel %vm2776, %v2688, 0
      %v2781 = vsel %vm2776, %v2691, 0
      %v2783 = vsel %vm2776, %v2693, 0
      %v2785 = vsel %vm2776, %v2696, 0
      %v2787 = vsel %vm2776, %v2698, 0
      %v2789 = vsel %vm2776, %v2701, 0
      %v2791 = vsel %vm2776, %v2703, 0
      %v2793 = vsel %vm2776, %v2706, 0
      %v2795 = vsel %vm2776, %v2708, 0
      %v2797 = vsel %vm2776, %v2711, 0
      %v2799 = vsel %vm2776, %v2713, 0
      %v2801 = vsel %vm2776, %v2716, 0
      %v2803 = vsel %vm2776, %v2718, 0
      %v2805 = vsel %vm2776, %v2721, 0
      %v2807 = vsel %vm2776, %v2723, 0
      %v2809 = vsel %vm2776, %v2726, 0
      %v2811 = vsel %vm2776, %v2728, 0
      %v2813 = vsel %vm2776, %v2731, 0
      %v2815 = vsel %vm2776, %v2733, 0
      %v2817 = vsel %vm2776, %v2736, 0
      %v2819 = vsel %vm2776, %v2738, 0
      %v2821 = vsel %vm2776, %v2741, 0
      %v2823 = vsel %vm2776, %v2743, 0
      %v2825 = vsel %vm2776, %v2746, 0
      %v2827 = vsel %vm2776, %v2748, 0
      %v2829 = vsel %vm2776, %v2751, 0
      %v2831 = vsel %vm2776, %v2753, 0
      %v2833 = vsel %vm2776, %v2756, 0
      %v2835 = vsel %vm2776, %v2758, 0
      %v2837 = vsel %vm2776, %v2761, 0
      %v2839 = vsel %vm2776, %v2763, 0
      %vm2841 = vcmask 1043456
      %v2843 = vsel %vm2841, %v2768, 0
      %2845 = vmatprep.subr.mxu0 0.0
      %2846 = vmatpush1.msra.mxu0 %v2764
      %2847 = vmatprep.subr.mxu0 0.0
      %2848 = vmatpush1.msra.mxu0 %v2765
      %2849 = vmatprep.subr.mxu0 0.0
      %2850 = vmatpush1.msra.mxu0 %v2766
      %2851 = vmatprep.subr.mxu0 0.0
      %2852 = vmatpush1.msra.mxu0 %v2767
      %2853 = vmatprep.subr.mxu0 0.0
      %2854 = vmatpush1.msra.mxu0 %v2843
      %2855 = vmatprep.subr.mxu0 0.0
      %2856 = vmatpush1.msra.mxu0 0.0
      %2857 = vmatprep.subr.mxu0 0.0
      %2858 = vmatpush1.msra.mxu0 0.0
      %2859 = vmatprep.subr.mxu0 0.0
      %2860 = vmatpush1.msra.mxu0 0.0
      %2861 = vmatprep.subr.mxu0 0.0
      %2862 = vmatpush1.msra.mxu0 0.0
      %2863 = vmatprep.subr.mxu0 0.0
      %2864 = vmatpush1.msra.mxu0 0.0
      %2865 = vmatprep.subr.mxu0 0.0
      %2866 = vmatpush1.msra.mxu0 0.0
      %2867 = vmatprep.subr.mxu0 0.0
      %2868 = vmatpush1.msra.mxu0 0.0
      %2869 = vmatprep.subr.mxu0 0.0
      %2870 = vmatpush1.msra.mxu0 0.0
      %2871 = vmatprep.subr.mxu0 0.0
      %2872 = vmatpush1.msra.mxu0 0.0
      %2873 = vmatprep.subr.mxu0 0.0
      %2874 = vmatpush1.msra.mxu0 0.0
      %2875 = vmatprep.subr.mxu0 0.0
      %2876 = vmatpush1.msra.mxu0 0.0
      %2877 = vmatprep.subr.mxu0 0.0
      %2878 = vmatpush1.msra.mxu0 0.0
      %2879 = vmatprep.subr.mxu0 0.0
      %2880 = vmatpush1.msra.mxu0 0.0
      %2881 = vmatprep.subr.mxu0 0.0
      %2882 = vmatpush1.msra.mxu0 0.0
      %2883 = vmatprep.subr.mxu0 0.0
      %2884 = vmatpush1.msra.mxu0 0.0
      %2885 = vmatprep.subr.mxu0 0.0
      %2886 = vmatpush1.msra.mxu0 0.0
      %2887 = vmatprep.subr.mxu0 0.0
      %2888 = vmatpush1.msra.mxu0 0.0
      %2889 = vmatprep.subr.mxu0 0.0
      %2890 = vmatpush1.msra.mxu0 0.0
      %2891 = vmatprep.subr.mxu0 0.0
      %2892 = vmatpush1.msra.mxu0 0.0
      %2893 = vmatprep.subr.mxu0 0.0
      %2894 = vmatpush1.msra.mxu0 0.0
      %2895 = vmatprep.subr.mxu0 0.0
      %2896 = vmatpush1.msra.mxu0 0.0
      %2897 = vmatprep.subr.mxu0 0.0
      %2898 = vmatpush1.msra.mxu0 0.0
      %2899 = vmatprep.subr.mxu0 0.0
      %2900 = vmatpush1.msra.mxu0 0.0
      %2901 = vmatprep.subr.mxu0 0.0
      %2902 = vmatpush1.msra.mxu0 0.0
      %2903 = vmatprep.subr.mxu0 0.0
      %2904 = vmatpush1.msra.mxu0 0.0
      %2905 = vmatprep.subr.mxu0 0.0
      %2906 = vmatpush1.msra.mxu0 0.0
      %2907 = vmatprep.subr.mxu0 0.0
      %2908 = vmatpush1.msra.mxu0 0.0
      %2909 = vmatprep.mubr.f32.mxu0 0.0
      %2910 = vmatmul.mubr.f32.gmra.mrb[0].mxu0 %v2777
      %v2911 = vpop.f32.mrb[0].mxu0
      %v2912 = vadd.f32 %v2774, %v2911
      %v2913 = vpop.f32.mrb[0].mxu0
      %2914 = vmatprep.mubr.f32.mxu0 0.0
      %2915 = vmatmul.mubr.f32.gmra.mrb[0].mxu0 %v2779
      %v2916 = vpop.f32.mrb[0].mxu0
      %v2917 = vadd.f32 %v2774, %v2916
      %v2918 = vpop.f32.mrb[0].mxu0
      %2919 = vmatprep.mubr.f32.mxu0 0.0
      %2920 = vmatmul.mubr.f32.gmra.mrb[0].mxu0 %v2781
      %v2921 = vpop.f32.mrb[0].mxu0
      %v2922 = vadd.f32 %v2774, %v2921
      %v2923 = vpop.f32.mrb[0].mxu0
      %2924 = vmatprep.mubr.f32.mxu0 0.0
      %2925 = vmatmul.mubr.f32.gmra.mrb[0].mxu0 %v2783
      %v2926 = vpop.f32.mrb[0].mxu0
      %v2927 = vadd.f32 %v2774, %v2926
      %v2928 = vpop.f32.mrb[0].mxu0
      %2929 = vmatprep.mubr.f32.mxu0 0.0
      %2930 = vmatmul.mubr.f32.gmra.mrb[0].mxu0 %v2785
      %v2931 = vpop.f32.mrb[0].mxu0
      %v2932 = vadd.f32 %v2774, %v2931
      %v2933 = vpop.f32.mrb[0].mxu0
      %2934 = vmatprep.mubr.f32.mxu0 0.0
      %2935 = vmatmul.mubr.f32.gmra.mrb[0].mxu0 %v2787
      %v2936 = vpop.f32.mrb[0].mxu0
      %v2937 = vadd.f32 %v2774, %v2936
      %v2938 = vpop.f32.mrb[0].mxu0
      %2939 = vmatprep.mubr.f32.mxu0 0.0
      %2940 = vmatmul.mubr.f32.gmra.mrb[0].mxu0 %v2789
      %v2941 = vpop.f32.mrb[0].mxu0
      %v2942 = vadd.f32 %v2774, %v2941
      %v2943 = vpop.f32.mrb[0].mxu0
      %2944 = vmatprep.mubr.f32.mxu0 0.0
      %2945 = vmatmul.mubr.f32.gmra.mrb[0].mxu0 %v2791
      %v2946 = vpop.f32.mrb[0].mxu0
      %v2947 = vadd.f32 %v2774, %v2946
      %v2948 = vpop.f32.mrb[0].mxu0
      %2949 = vmatprep.mubr.f32.mxu0 0.0
      %2950 = vmatmul.mubr.f32.gmra.mrb[0].mxu0 %v2793
      %v2951 = vpop.f32.mrb[0].mxu0
      %v2952 = vadd.f32 %v2774, %v2951
      %v2953 = vpop.f32.mrb[0].mxu0
      %2954 = vmatprep.mubr.f32.mxu0 0.0
      %2955 = vmatmul.mubr.f32.gmra.mrb[0].mxu0 %v2795
      %v2956 = vpop.f32.mrb[0].mxu0
      %v2957 = vadd.f32 %v2774, %v2956
      %v2958 = vpop.f32.mrb[0].mxu0
      %2959 = vmatprep.mubr.f32.mxu0 0.0
      %2960 = vmatmul.mubr.f32.gmra.mrb[0].mxu0 %v2797
      %v2961 = vpop.f32.mrb[0].mxu0
      %v2962 = vadd.f32 %v2774, %v2961
      %v2963 = vpop.f32.mrb[0].mxu0
      %2964 = vmatprep.mubr.f32.mxu0 0.0
      %2965 = vmatmul.mubr.f32.gmra.mrb[0].mxu0 %v2799
      %v2966 = vpop.f32.mrb[0].mxu0
      %v2967 = vadd.f32 %v2774, %v2966
      %v2968 = vpop.f32.mrb[0].mxu0
      %2969 = vmatprep.mubr.f32.mxu0 0.0
      %2970 = vmatmul.mubr.f32.gmra.mrb[0].mxu0 %v2801
      %v2971 = vpop.f32.mrb[0].mxu0
      %v2972 = vadd.f32 %v2774, %v2971
      %v2973 = vpop.f32.mrb[0].mxu0
      %2974 = vmatprep.mubr.f32.mxu0 0.0
      %2975 = vmatmul.mubr.f32.gmra.mrb[0].mxu0 %v2803
      %v2976 = vpop.f32.mrb[0].mxu0
      %v2977 = vadd.f32 %v2774, %v2976
      %v2978 = vpop.f32.mrb[0].mxu0
      %2979 = vmatprep.mubr.f32.mxu0 0.0
      %2980 = vmatmul.mubr.f32.gmra.mrb[0].mxu0 %v2805
      %v2981 = vpop.f32.mrb[0].mxu0
      %v2982 = vadd.f32 %v2774, %v2981
      %v2983 = vpop.f32.mrb[0].mxu0
      %2984 = vmatprep.mubr.f32.mxu0 0.0
      %2985 = vmatmul.mubr.f32.gmra.mrb[0].mxu0 %v2807
      %v2986 = vpop.f32.mrb[0].mxu0
      %v2987 = vadd.f32 %v2774, %v2986
      %v2988 = vpop.f32.mrb[0].mxu0
      %2989 = vmatprep.mubr.f32.mxu0 0.0
      %2990 = vmatmul.mubr.f32.gmra.mrb[0].mxu0 %v2809
      %v2991 = vpop.f32.mrb[0].mxu0
      %v2992 = vadd.f32 %v2774, %v2991
      %v2993 = vpop.f32.mrb[0].mxu0
      %2994 = vmatprep.mubr.f32.mxu0 0.0
      %2995 = vmatmul.mubr.f32.gmra.mrb[0].mxu0 %v2811
      %v2996 = vpop.f32.mrb[0].mxu0
      %v2997 = vadd.f32 %v2774, %v2996
      %v2998 = vpop.f32.mrb[0].mxu0
      %2999 = vmatprep.mubr.f32.mxu0 0.0
      %3000 = vmatmul.mubr.f32.gmra.mrb[0].mxu0 %v2813
      %v3001 = vpop.f32.mrb[0].mxu0
      %v3002 = vadd.f32 %v2774, %v3001
      %v3003 = vpop.f32.mrb[0].mxu0
      %3004 = vmatprep.mubr.f32.mxu0 0.0
      %3005 = vmatmul.mubr.f32.gmra.mrb[0].mxu0 %v2815
      %v3006 = vpop.f32.mrb[0].mxu0
      %v3007 = vadd.f32 %v2774, %v3006
      %v3008 = vpop.f32.mrb[0].mxu0
      %3009 = vmatprep.mubr.f32.mxu0 0.0
      %3010 = vmatmul.mubr.f32.gmra.mrb[0].mxu0 %v2817
      %v3011 = vpop.f32.mrb[0].mxu0
      %v3012 = vadd.f32 %v2774, %v3011
      %v3013 = vpop.f32.mrb[0].mxu0
      %3014 = vmatprep.mubr.f32.mxu0 0.0
      %3015 = vmatmul.mubr.f32.gmra.mrb[0].mxu0 %v2819
      %v3016 = vpop.f32.mrb[0].mxu0
      %v3017 = vadd.f32 %v2774, %v3016
      %v3018 = vpop.f32.mrb[0].mxu0
      %3019 = vmatprep.mubr.f32.mxu0 0.0
      %3020 = vmatmul.mubr.f32.gmra.mrb[0].mxu0 %v2821
      %v3021 = vpop.f32.mrb[0].mxu0
      %v3022 = vadd.f32 %v2774, %v3021
      %v3023 = vpop.f32.mrb[0].mxu0
      %3024 = vmatprep.mubr.f32.mxu0 0.0
      %3025 = vmatmul.mubr.f32.gmra.mrb[0].mxu0 %v2823
      %v3026 = vpop.f32.mrb[0].mxu0
      %v3027 = vadd.f32 %v2774, %v3026
      %v3028 = vpop.f32.mrb[0].mxu0
      %3029 = vmatprep.mubr.f32.mxu0 0.0
      %3030 = vmatmul.mubr.f32.gmra.mrb[0].mxu0 %v2825
      %v3031 = vpop.f32.mrb[0].mxu0
      %v3032 = vadd.f32 %v2774, %v3031
      %v3033 = vpop.f32.mrb[0].mxu0
      %3034 = vmatprep.mubr.f32.mxu0 0.0
      %3035 = vmatmul.mubr.f32.gmra.mrb[0].mxu0 %v2827
      %v3036 = vpop.f32.mrb[0].mxu0
      %v3037 = vadd.f32 %v2774, %v3036
      %v3038 = vpop.f32.mrb[0].mxu0
      %3039 = vmatprep.mubr.f32.mxu0 0.0
      %3040 = vmatmul.mubr.f32.gmra.mrb[0].mxu0 %v2829
      %v3041 = vpop.f32.mrb[0].mxu0
      %v3042 = vadd.f32 %v2774, %v3041
      %v3043 = vpop.f32.mrb[0].mxu0
      %3044 = vmatprep.mubr.f32.mxu0 0.0
      %3045 = vmatmul.mubr.f32.gmra.mrb[0].mxu0 %v2831
      %v3046 = vpop.f32.mrb[0].mxu0
      %v3047 = vadd.f32 %v2774, %v3046
      %v3048 = vpop.f32.mrb[0].mxu0
      %3049 = vmatprep.mubr.f32.mxu0 0.0
      %3050 = vmatmul.mubr.f32.gmra.mrb[0].mxu0 %v2833
      %v3051 = vpop.f32.mrb[0].mxu0
      %v3052 = vadd.f32 %v2774, %v3051
      %v3053 = vpop.f32.mrb[0].mxu0
      %3054 = vmatprep.mubr.f32.mxu0 0.0
      %3055 = vmatmul.mubr.f32.gmra.mrb[0].mxu0 %v2835
      %v3056 = vpop.f32.mrb[0].mxu0
      %v3057 = vadd.f32 %v2774, %v3056
      %v3058 = vpop.f32.mrb[0].mxu0
      %3059 = vmatprep.mubr.f32.mxu0 0.0
      %3060 = vmatmul.mubr.f32.gmra.mrb[0].mxu0 %v2837
      %v3061 = vpop.f32.mrb[0].mxu0
      %v3062 = vadd.f32 %v2774, %v3061
      %v3063 = vpop.f32.mrb[0].mxu0
      %3064 = vmatprep.mubr.f32.mxu0 0.0
      %3065 = vmatmul.mubr.f32.gmra.mrb[0].mxu0 %v2839
      %v3066 = vpop.f32.mrb[0].mxu0
      %v3067 = vadd.f32 %v2774, %v3066
      %v3068 = vpop.f32.mrb[0].mxu0
      %3069 = vdwg.mxu0
      %v3070 = vmax.f32 %v2912, 0.0
      %v3071 = vmax.f32 %v2917, 0.0
      %v3072 = vmax.f32 %v2922, 0.0
      %v3073 = vmax.f32 %v2927, 0.0
      %v3074 = vmax.f32 %v2932, 0.0
      %v3075 = vmax.f32 %v2937, 0.0
      %v3076 = vmax.f32 %v2942, 0.0
      %v3077 = vmax.f32 %v2947, 0.0
      %v3078 = vmax.f32 %v2952, 0.0
      %v3079 = vmax.f32 %v2957, 0.0
      %v3080 = vmax.f32 %v2962, 0.0
      %v3081 = vmax.f32 %v2967, 0.0
      %v3082 = vmax.f32 %v2972, 0.0
      %v3083 = vmax.f32 %v2977, 0.0
      %v3084 = vmax.f32 %v2982, 0.0
      %v3085 = vmax.f32 %v2987, 0.0
      %v3086 = vmax.f32 %v2992, 0.0
      %v3087 = vmax.f32 %v2997, 0.0
      %v3088 = vmax.f32 %v3002, 0.0
      %v3089 = vmax.f32 %v3007, 0.0
      %v3090 = vmax.f32 %v3012, 0.0
      %v3091 = vmax.f32 %v3017, 0.0
      %v3092 = vmax.f32 %v3022, 0.0
      %v3093 = vmax.f32 %v3027, 0.0
      %v3094 = vmax.f32 %v3032, 0.0
      %v3095 = vmax.f32 %v3037, 0.0
      %v3096 = vmax.f32 %v3042, 0.0
      %v3097 = vmax.f32 %v3047, 0.0
      %v3098 = vmax.f32 %v3052, 0.0
      %v3099 = vmax.f32 %v3057, 0.0
      %v3100 = vmax.f32 %v3062, 0.0
      %v3101 = vmax.f32 %v3067, 0.0
      %3102 = vst.msk [vmem:[#allocation3] sm:$0xff] %vm2292, 0.0
      %3103 = vst.msk [vmem:[#allocation3 + $0x8] sm:$0xff] %vm2292, 0.0
      %3104 = vst.msk [vmem:[#allocation3 + $0x10] sm:$0xff] %vm2292, 0.0
      %3105 = vst.msk [vmem:[#allocation3 + $0x18] sm:$0xff] %vm2292, 0.0
      %s3106 = scalar_lea.vmem [#allocation3], 544
      %3107 = vst.msk [vmem:[%s3106] sm:$0xff] %vm2292, 0.0
      %3108 = vst.msk [vmem:[%s3106 + $0x8] sm:$0xff] %vm2292, 0.0
      %3109 = vst.msk [vmem:[%s3106 + $0x10] sm:$0xff] %vm2292, 0.0
      %3110 = vst.msk [vmem:[%s3106 + $0x18] sm:$0xff] %vm2292, 0.0
      %vm3111 = vcmask 57344
      %3112 = vst.msk [vmem:[#allocation3 + $0x7] sm:$0x1] %vm3111, 0.0
      %3113 = vst.msk [vmem:[#allocation3 + $0x27] sm:$0x1] %vm3111, 0.0
      %3114 = vst.msk [vmem:[#allocation3 + $0x47] sm:$0x1] %vm3111, 0.0
      %3115 = vst.msk [vmem:[#allocation3 + $0x67] sm:$0x1] %vm3111, 0.0
      %3116 = vst.msk [vmem:[#allocation3 + $0x87] sm:$0x1] %vm3111, 0.0
      %3117 = vst.msk [vmem:[#allocation3 + $0xa7] sm:$0x1] %vm3111, 0.0
      %3118 = vst.msk [vmem:[#allocation3 + $0xc7] sm:$0x1] %vm3111, 0.0
      %3119 = vst.msk [vmem:[#allocation3 + $0xe7] sm:$0x1] %vm3111, 0.0
      %3120 = vst.msk [vmem:[#allocation3 + $0x107] sm:$0x1] %vm3111, 0.0
      %3121 = vst.msk [vmem:[#allocation3 + $0x127] sm:$0x1] %vm3111, 0.0
      %3122 = vst.msk [vmem:[#allocation3 + $0x147] sm:$0x1] %vm3111, 0.0
      %3123 = vst.msk [vmem:[#allocation3 + $0x167] sm:$0x1] %vm3111, 0.0
      %3124 = vst.msk [vmem:[#allocation3 + $0x187] sm:$0x1] %vm3111, 0.0
      %3125 = vst.msk [vmem:[#allocation3 + $0x1a7] sm:$0x1] %vm3111, 0.0
      %3126 = vst.msk [vmem:[#allocation3 + $0x1c7] sm:$0x1] %vm3111, 0.0
      %3127 = vst.msk [vmem:[#allocation3 + $0x1e7] sm:$0x1] %vm3111, 0.0
      %3128 = vst.msk [vmem:[#allocation3 + $0x207] sm:$0x1] %vm3111, 0.0
      %3129 = vst.msk [vmem:[#allocation3 + $0x227] sm:$0x1] %vm3111, 0.0
      %3130 = vst.msk [vmem:[#allocation3 + $0x18] sm:$0x1] %vm3111, 0.0
      %3131 = vst.msk [vmem:[#allocation3 + $0x38] sm:$0x1] %vm3111, 0.0
      %3132 = vst.msk [vmem:[#allocation3 + $0x58] sm:$0x1] %vm3111, 0.0
      %3133 = vst.msk [vmem:[#allocation3 + $0x78] sm:$0x1] %vm3111, 0.0
      %3134 = vst.msk [vmem:[#allocation3 + $0x98] sm:$0x1] %vm3111, 0.0
      %3135 = vst.msk [vmem:[#allocation3 + $0xb8] sm:$0x1] %vm3111, 0.0
      %3136 = vst.msk [vmem:[#allocation3 + $0xd8] sm:$0x1] %vm3111, 0.0
      %3137 = vst.msk [vmem:[#allocation3 + $0xf8] sm:$0x1] %vm3111, 0.0
      %3138 = vst.msk [vmem:[#allocation3 + $0x118] sm:$0x1] %vm3111, 0.0
      %3139 = vst.msk [vmem:[#allocation3 + $0x138] sm:$0x1] %vm3111, 0.0
      %3140 = vst.msk [vmem:[#allocation3 + $0x158] sm:$0x1] %vm3111, 0.0
      %3141 = vst.msk [vmem:[#allocation3 + $0x178] sm:$0x1] %vm3111, 0.0
      %3142 = vst.msk [vmem:[#allocation3 + $0x198] sm:$0x1] %vm3111, 0.0
      %3143 = vst.msk [vmem:[#allocation3 + $0x1b8] sm:$0x1] %vm3111, 0.0
      %3144 = vst.msk [vmem:[#allocation3 + $0x1d8] sm:$0x1] %vm3111, 0.0
      %3145 = vst.msk [vmem:[#allocation3 + $0x1f8] sm:$0x1] %vm3111, 0.0
      %3146 = vst.msk [vmem:[#allocation3 + $0x218] sm:$0x1] %vm3111, 0.0
      %3147 = vst.msk [vmem:[#allocation3 + $0x238] sm:$0x1] %vm3111, 0.0
      %s3148 = scalar_lea.vmem [#allocation3], 32
      %3149 = vst.msk [vmem:[%s3148 + $0x8] sm:$0xff] %vm2292, %v3070
      %3150 = vst.msk [vmem:[%s3148 + $0x10] sm:$0xff] %vm2292, %v3071
      %3151 = vst.msk [vmem:[%s3148 + $0x28] sm:$0xff] %vm2292, %v3072
      %3152 = vst.msk [vmem:[%s3148 + $0x30] sm:$0xff] %vm2292, %v3073
      %3153 = vst.msk [vmem:[%s3148 + $0x48] sm:$0xff] %vm2292, %v3074
      %3154 = vst.msk [vmem:[%s3148 + $0x50] sm:$0xff] %vm2292, %v3075
      %3155 = vst.msk [vmem:[%s3148 + $0x68] sm:$0xff] %vm2292, %v3076
      %3156 = vst.msk [vmem:[%s3148 + $0x70] sm:$0xff] %vm2292, %v3077
      %3157 = vst.msk [vmem:[%s3148 + $0x88] sm:$0xff] %vm2292, %v3078
      %3158 = vst.msk [vmem:[%s3148 + $0x90] sm:$0xff] %vm2292, %v3079
      %3159 = vst.msk [vmem:[%s3148 + $0xa8] sm:$0xff] %vm2292, %v3080
      %3160 = vst.msk [vmem:[%s3148 + $0xb0] sm:$0xff] %vm2292, %v3081
      %3161 = vst.msk [vmem:[%s3148 + $0xc8] sm:$0xff] %vm2292, %v3082
      %3162 = vst.msk [vmem:[%s3148 + $0xd0] sm:$0xff] %vm2292, %v3083
      %3163 = vst.msk [vmem:[%s3148 + $0xe8] sm:$0xff] %vm2292, %v3084
      %3164 = vst.msk [vmem:[%s3148 + $0xf0] sm:$0xff] %vm2292, %v3085
      %3165 = vst.msk [vmem:[%s3148 + $0x108] sm:$0xff] %vm2292, %v3086
      %3166 = vst.msk [vmem:[%s3148 + $0x110] sm:$0xff] %vm2292, %v3087
      %3167 = vst.msk [vmem:[%s3148 + $0x128] sm:$0xff] %vm2292, %v3088
      %3168 = vst.msk [vmem:[%s3148 + $0x130] sm:$0xff] %vm2292, %v3089
      %3169 = vst.msk [vmem:[%s3148 + $0x148] sm:$0xff] %vm2292, %v3090
      %3170 = vst.msk [vmem:[%s3148 + $0x150] sm:$0xff] %vm2292, %v3091
      %3171 = vst.msk [vmem:[%s3148 + $0x168] sm:$0xff] %vm2292, %v3092
      %3172 = vst.msk [vmem:[%s3148 + $0x170] sm:$0xff] %vm2292, %v3093
      %3173 = vst.msk [vmem:[%s3148 + $0x188] sm:$0xff] %vm2292, %v3094
      %3174 = vst.msk [vmem:[%s3148 + $0x190] sm:$0xff] %vm2292, %v3095
      %3175 = vst.msk [vmem:[%s3148 + $0x1a8] sm:$0xff] %vm2292, %v3096
      %3176 = vst.msk [vmem:[%s3148 + $0x1b0] sm:$0xff] %vm2292, %v3097
      %3177 = vst.msk [vmem:[%s3148 + $0x1c8] sm:$0xff] %vm2292, %v3098
      %3178 = vst.msk [vmem:[%s3148 + $0x1d0] sm:$0xff] %vm2292, %v3099
      %3179 = vst.msk [vmem:[%s3148 + $0x1e8] sm:$0xff] %vm2292, %v3100
      %3180 = vst.msk [vmem:[%s3148 + $0x1f0] sm:$0xff] %vm2292, %v3101
      %v3181 = vld [vmem:[#allocation3] sm:$0xff]
      %v3182 = vld [vmem:[#allocation3 + $0x8] sm:$0xff]
      %v3183 = vld [vmem:[#allocation3 + $0x10] sm:$0xff]
      %v3184 = vld [vmem:[#allocation3 + $0x18] sm:$0xff]
      %v3185 = vld [vmem:[#allocation3 + $0x20] sm:$0xff]
      %v3186 = vld [vmem:[#allocation3 + $0x28] sm:$0xff]
      %v3187 = vld [vmem:[#allocation3 + $0x30] sm:$0xff]
      %v3188 = vld [vmem:[#allocation3 + $0x38] sm:$0xff]
      %v3189 = vld [vmem:[#allocation3 + $0x40] sm:$0xff]
      %v3190 = vld [vmem:[#allocation3 + $0x48] sm:$0xff]
      %v3191 = vld [vmem:[#allocation3 + $0x50] sm:$0xff]
      %v3192 = vld [vmem:[#allocation3 + $0x58] sm:$0xff]
      %v3193 = vld [vmem:[#allocation3 + $0x60] sm:$0xff]
      %v3194 = vld [vmem:[#allocation3 + $0x68] sm:$0xff]
      %v3195 = vld [vmem:[#allocation3 + $0x70] sm:$0xff]
      %v3196 = vld [vmem:[#allocation3 + $0x78] sm:$0xff]
      %v3197 = vld [vmem:[#allocation3 + $0x80] sm:$0xff]
      %v3198 = vld [vmem:[#allocation3 + $0x88] sm:$0xff]
      %v3199 = vld [vmem:[#allocation3 + $0x90] sm:$0xff]
      %v3200 = vld [vmem:[#allocation3 + $0x98] sm:$0xff]
      %v3201 = vld [vmem:[#allocation3 + $0xa0] sm:$0xff]
      %v3202 = vld [vmem:[#allocation3 + $0xa8] sm:$0xff]
      %v3203 = vld [vmem:[#allocation3 + $0xb0] sm:$0xff]
      %v3204 = vld [vmem:[#allocation3 + $0xb8] sm:$0xff]
      %v3205 = vld [vmem:[#allocation3 + $0xc0] sm:$0xff]
      %v3206 = vld [vmem:[#allocation3 + $0xc8] sm:$0xff]
      %v3207 = vld [vmem:[#allocation3 + $0xd0] sm:$0xff]
      %v3208 = vld [vmem:[#allocation3 + $0xd8] sm:$0xff]
      %v3209 = vld [vmem:[#allocation3 + $0xe0] sm:$0xff]
      %v3210 = vld [vmem:[#allocation3 + $0xe8] sm:$0xff]
      %v3211 = vld [vmem:[#allocation3 + $0xf0] sm:$0xff]
      %v3212 = vld [vmem:[#allocation3 + $0xf8] sm:$0xff]
      %v3213 = vld [vmem:[#allocation3 + $0x100] sm:$0xff]
      %v3214 = vld [vmem:[#allocation3 + $0x108] sm:$0xff]
      %v3215 = vld [vmem:[#allocation3 + $0x110] sm:$0xff]
      %v3216 = vld [vmem:[#allocation3 + $0x118] sm:$0xff]
      %v3217 = vld [vmem:[#allocation3 + $0x120] sm:$0xff]
      %v3218 = vld [vmem:[#allocation3 + $0x128] sm:$0xff]
      %v3219 = vld [vmem:[#allocation3 + $0x130] sm:$0xff]
      %v3220 = vld [vmem:[#allocation3 + $0x138] sm:$0xff]
      %v3221 = vld [vmem:[#allocation3 + $0x140] sm:$0xff]
      %v3222 = vld [vmem:[#allocation3 + $0x148] sm:$0xff]
      %v3223 = vld [vmem:[#allocation3 + $0x150] sm:$0xff]
      %v3224 = vld [vmem:[#allocation3 + $0x158] sm:$0xff]
      %v3225 = vld [vmem:[#allocation3 + $0x160] sm:$0xff]
      %v3226 = vld [vmem:[#allocation3 + $0x168] sm:$0xff]
      %v3227 = vld [vmem:[#allocation3 + $0x170] sm:$0xff]
      %v3228 = vld [vmem:[#allocation3 + $0x178] sm:$0xff]
      %v3229 = vld [vmem:[#allocation3 + $0x180] sm:$0xff]
      %v3230 = vld [vmem:[#allocation3 + $0x188] sm:$0xff]
      %v3231 = vld [vmem:[#allocation3 + $0x190] sm:$0xff]
      %v3232 = vld [vmem:[#allocation3 + $0x198] sm:$0xff]
      %v3233 = vld [vmem:[#allocation3 + $0x1a0] sm:$0xff]
      %v3234 = vld [vmem:[#allocation3 + $0x1a8] sm:$0xff]
      %v3235 = vld [vmem:[#allocation3 + $0x1b0] sm:$0xff]
      %v3236 = vld [vmem:[#allocation3 + $0x1b8] sm:$0xff]
      %v3237 = vld [vmem:[#allocation3 + $0x1c0] sm:$0xff]
      %v3238 = vld [vmem:[#allocation3 + $0x1c8] sm:$0xff]
      %v3239 = vld [vmem:[#allocation3 + $0x1d0] sm:$0xff]
      %v3240 = vld [vmem:[#allocation3 + $0x1d8] sm:$0xff]
      %v3241 = vld [vmem:[#allocation3 + $0x1e0] sm:$0xff]
      %v3242 = vld [vmem:[#allocation3 + $0x1e8] sm:$0xff]
      %v3243 = vld [vmem:[#allocation3 + $0x1f0] sm:$0xff]
      %v3244 = vld [vmem:[#allocation3 + $0x1f8] sm:$0xff]
      %v3245 = vld [vmem:[%s3148] sm:$0xff]
      %v3246 = vld [vmem:[%s3148 + $0x8] sm:$0xff]
      %v3247 = vld [vmem:[%s3148 + $0x10] sm:$0xff]
      %v3248 = vld [vmem:[%s3148 + $0x18] sm:$0xff]
      %v3249 = vld [vmem:[%s3148 + $0x20] sm:$0xff]
      %v3250 = vld [vmem:[%s3148 + $0x28] sm:$0xff]
      %v3251 = vld [vmem:[%s3148 + $0x30] sm:$0xff]
      %v3252 = vld [vmem:[%s3148 + $0x38] sm:$0xff]
      %v3253 = vld [vmem:[%s3148 + $0x40] sm:$0xff]
      %v3254 = vld [vmem:[%s3148 + $0x48] sm:$0xff]
      %v3255 = vld [vmem:[%s3148 + $0x50] sm:$0xff]
      %v3256 = vld [vmem:[%s3148 + $0x58] sm:$0xff]
      %v3257 = vld [vmem:[%s3148 + $0x60] sm:$0xff]
      %v3258 = vld [vmem:[%s3148 + $0x68] sm:$0xff]
      %v3259 = vld [vmem:[%s3148 + $0x70] sm:$0xff]
      %v3260 = vld [vmem:[%s3148 + $0x78] sm:$0xff]
      %v3261 = vld [vmem:[%s3148 + $0x80] sm:$0xff]
      %v3262 = vld [vmem:[%s3148 + $0x88] sm:$0xff]
      %v3263 = vld [vmem:[%s3148 + $0x90] sm:$0xff]
      %v3264 = vld [vmem:[%s3148 + $0x98] sm:$0xff]
      %v3265 = vld [vmem:[%s3148 + $0xa0] sm:$0xff]
      %v3266 = vld [vmem:[%s3148 + $0xa8] sm:$0xff]
      %v3267 = vld [vmem:[%s3148 + $0xb0] sm:$0xff]
      %v3268 = vld [vmem:[%s3148 + $0xb8] sm:$0xff]
      %v3269 = vld [vmem:[%s3148 + $0xc0] sm:$0xff]
      %v3270 = vld [vmem:[%s3148 + $0xc8] sm:$0xff]
      %v3271 = vld [vmem:[%s3148 + $0xd0] sm:$0xff]
      %v3272 = vld [vmem:[%s3148 + $0xd8] sm:$0xff]
      %v3273 = vld [vmem:[%s3148 + $0xe0] sm:$0xff]
      %v3274 = vld [vmem:[%s3148 + $0xe8] sm:$0xff]
      %v3275 = vld [vmem:[%s3148 + $0xf0] sm:$0xff]
      %v3276 = vld [vmem:[%s3148 + $0xf8] sm:$0xff]
      %v3277 = vld [vmem:[%s3148 + $0x100] sm:$0xff]
      %v3278 = vld [vmem:[%s3148 + $0x108] sm:$0xff]
      %v3279 = vld [vmem:[%s3148 + $0x110] sm:$0xff]
      %v3280 = vld [vmem:[%s3148 + $0x118] sm:$0xff]
      %v3281 = vld [vmem:[%s3148 + $0x120] sm:$0xff]
      %v3282 = vld [vmem:[%s3148 + $0x128] sm:$0xff]
      %v3283 = vld [vmem:[%s3148 + $0x130] sm:$0xff]
      %v3284 = vld [vmem:[%s3148 + $0x138] sm:$0xff]
      %v3285 = vld [vmem:[%s3148 + $0x140] sm:$0xff]
      %v3286 = vld [vmem:[%s3148 + $0x148] sm:$0xff]
      %v3287 = vld [vmem:[%s3148 + $0x150] sm:$0xff]
      %v3288 = vld [vmem:[%s3148 + $0x158] sm:$0xff]
      %v3289 = vld [vmem:[%s3148 + $0x160] sm:$0xff]
      %v3290 = vld [vmem:[%s3148 + $0x168] sm:$0xff]
      %v3291 = vld [vmem:[%s3148 + $0x170] sm:$0xff]
      %v3292 = vld [vmem:[%s3148 + $0x178] sm:$0xff]
      %v3293 = vld [vmem:[%s3148 + $0x180] sm:$0xff]
      %v3294 = vld [vmem:[%s3148 + $0x188] sm:$0xff]
      %v3295 = vld [vmem:[%s3148 + $0x190] sm:$0xff]
      %v3296 = vld [vmem:[%s3148 + $0x198] sm:$0xff]
      %v3297 = vld [vmem:[%s3148 + $0x1a0] sm:$0xff]
      %v3298 = vld [vmem:[%s3148 + $0x1a8] sm:$0xff]
      %v3299 = vld [vmem:[%s3148 + $0x1b0] sm:$0xff]
      %v3300 = vld [vmem:[%s3148 + $0x1b8] sm:$0xff]
      %v3301 = vld [vmem:[%s3148 + $0x1c0] sm:$0xff]
      %v3302 = vld [vmem:[%s3148 + $0x1c8] sm:$0xff]
      %v3303 = vld [vmem:[%s3148 + $0x1d0] sm:$0xff]
      %v3304 = vld [vmem:[%s3148 + $0x1d8] sm:$0xff]
      %v3305 = vld [vmem:[%s3148 + $0x1e0] sm:$0xff]
      %v3306 = vld [vmem:[%s3148 + $0x1e8] sm:$0xff]
      %v3307 = vld [vmem:[%s3148 + $0x1f0] sm:$0xff]
      %v3308 = vld [vmem:[%s3148 + $0x1f8] sm:$0xff]
      %s3309 = scalar_lea.vmem [#allocation3], 64
      %v3310 = vld [vmem:[%s3309] sm:$0xff]
      %v3311 = vld [vmem:[%s3309 + $0x8] sm:$0xff]
      %v3312 = vld [vmem:[%s3309 + $0x10] sm:$0xff]
      %v3313 = vld [vmem:[%s3309 + $0x18] sm:$0xff]
      %v3314 = vld [vmem:[%s3309 + $0x20] sm:$0xff]
      %v3315 = vld [vmem:[%s3309 + $0x28] sm:$0xff]
      %v3316 = vld [vmem:[%s3309 + $0x30] sm:$0xff]
      %v3317 = vld [vmem:[%s3309 + $0x38] sm:$0xff]
      %v3318 = vld [vmem:[%s3309 + $0x40] sm:$0xff]
      %v3319 = vld [vmem:[%s3309 + $0x48] sm:$0xff]
      %v3320 = vld [vmem:[%s3309 + $0x50] sm:$0xff]
      %v3321 = vld [vmem:[%s3309 + $0x58] sm:$0xff]
      %v3322 = vld [vmem:[%s3309 + $0x60] sm:$0xff]
      %v3323 = vld [vmem:[%s3309 + $0x68] sm:$0xff]
      %v3324 = vld [vmem:[%s3309 + $0x70] sm:$0xff]
      %v3325 = vld [vmem:[%s3309 + $0x78] sm:$0xff]
      %v3326 = vld [vmem:[%s3309 + $0x80] sm:$0xff]
      %v3327 = vld [vmem:[%s3309 + $0x88] sm:$0xff]
      %v3328 = vld [vmem:[%s3309 + $0x90] sm:$0xff]
      %v3329 = vld [vmem:[%s3309 + $0x98] sm:$0xff]
      %v3330 = vld [vmem:[%s3309 + $0xa0] sm:$0xff]
      %v3331 = vld [vmem:[%s3309 + $0xa8] sm:$0xff]
      %v3332 = vld [vmem:[%s3309 + $0xb0] sm:$0xff]
      %v3333 = vld [vmem:[%s3309 + $0xb8] sm:$0xff]
      %v3334 = vld [vmem:[%s3309 + $0xc0] sm:$0xff]
      %v3335 = vld [vmem:[%s3309 + $0xc8] sm:$0xff]
      %v3336 = vld [vmem:[%s3309 + $0xd0] sm:$0xff]
      %v3337 = vld [vmem:[%s3309 + $0xd8] sm:$0xff]
      %v3338 = vld [vmem:[%s3309 + $0xe0] sm:$0xff]
      %v3339 = vld [vmem:[%s3309 + $0xe8] sm:$0xff]
      %v3340 = vld [vmem:[%s3309 + $0xf0] sm:$0xff]
      %v3341 = vld [vmem:[%s3309 + $0xf8] sm:$0xff]
      %v3342 = vld [vmem:[%s3309 + $0x100] sm:$0xff]
      %v3343 = vld [vmem:[%s3309 + $0x108] sm:$0xff]
      %v3344 = vld [vmem:[%s3309 + $0x110] sm:$0xff]
      %v3345 = vld [vmem:[%s3309 + $0x118] sm:$0xff]
      %v3346 = vld [vmem:[%s3309 + $0x120] sm:$0xff]
      %v3347 = vld [vmem:[%s3309 + $0x128] sm:$0xff]
      %v3348 = vld [vmem:[%s3309 + $0x130] sm:$0xff]
      %v3349 = vld [vmem:[%s3309 + $0x138] sm:$0xff]
      %v3350 = vld [vmem:[%s3309 + $0x140] sm:$0xff]
      %v3351 = vld [vmem:[%s3309 + $0x148] sm:$0xff]
      %v3352 = vld [vmem:[%s3309 + $0x150] sm:$0xff]
      %v3353 = vld [vmem:[%s3309 + $0x158] sm:$0xff]
      %v3354 = vld [vmem:[%s3309 + $0x160] sm:$0xff]
      %v3355 = vld [vmem:[%s3309 + $0x168] sm:$0xff]
      %v3356 = vld [vmem:[%s3309 + $0x170] sm:$0xff]
      %v3357 = vld [vmem:[%s3309 + $0x178] sm:$0xff]
      %v3358 = vld [vmem:[%s3309 + $0x180] sm:$0xff]
      %v3359 = vld [vmem:[%s3309 + $0x188] sm:$0xff]
      %v3360 = vld [vmem:[%s3309 + $0x190] sm:$0xff]
      %v3361 = vld [vmem:[%s3309 + $0x198] sm:$0xff]
      %v3362 = vld [vmem:[%s3309 + $0x1a0] sm:$0xff]
      %v3363 = vld [vmem:[%s3309 + $0x1a8] sm:$0xff]
      %v3364 = vld [vmem:[%s3309 + $0x1b0] sm:$0xff]
      %v3365 = vld [vmem:[%s3309 + $0x1b8] sm:$0xff]
      %v3366 = vld [vmem:[%s3309 + $0x1c0] sm:$0xff]
      %v3367 = vld [vmem:[%s3309 + $0x1c8] sm:$0xff]
      %v3368 = vld [vmem:[%s3309 + $0x1d0] sm:$0xff]
      %v3369 = vld [vmem:[%s3309 + $0x1d8] sm:$0xff]
      %v3370 = vld [vmem:[%s3309 + $0x1e0] sm:$0xff]
      %v3371 = vld [vmem:[%s3309 + $0x1e8] sm:$0xff]
      %v3372 = vld [vmem:[%s3309 + $0x1f0] sm:$0xff]
      %v3373 = vld [vmem:[%s3309 + $0x1f8] sm:$0xff]
      %v3406 = vrot.slane %v3182, 1
      %v3407 = vrot.slane %v3183, 1
      %v3408 = vsel %vm562, %v3406, %v3407
      %v3409 = vrot.slane %v3186, 1
      %v3410 = vrot.slane %v3187, 1
      %v3411 = vsel %vm562, %v3409, %v3410
      %v3412 = vrot.slane %v3190, 1
      %v3413 = vrot.slane %v3191, 1
      %v3414 = vsel %vm562, %v3412, %v3413
      %v3415 = vrot.slane %v3194, 1
      %v3416 = vrot.slane %v3195, 1
      %v3417 = vsel %vm562, %v3415, %v3416
      %v3418 = vrot.slane %v3198, 1
      %v3419 = vrot.slane %v3199, 1
      %v3420 = vsel %vm562, %v3418, %v3419
      %v3421 = vrot.slane %v3202, 1
      %v3422 = vrot.slane %v3203, 1
      %v3423 = vsel %vm562, %v3421, %v3422
      %v3424 = vrot.slane %v3206, 1
      %v3425 = vrot.slane %v3207, 1
      %v3426 = vsel %vm562, %v3424, %v3425
      %v3427 = vrot.slane %v3210, 1
      %v3428 = vrot.slane %v3211, 1
      %v3429 = vsel %vm562, %v3427, %v3428
      %v3430 = vrot.slane %v3214, 1
      %v3431 = vrot.slane %v3215, 1
      %v3432 = vsel %vm562, %v3430, %v3431
      %v3433 = vrot.slane %v3218, 1
      %v3434 = vrot.slane %v3219, 1
      %v3435 = vsel %vm562, %v3433, %v3434
      %v3436 = vrot.slane %v3222, 1
      %v3437 = vrot.slane %v3223, 1
      %v3438 = vsel %vm562, %v3436, %v3437
      %v3439 = vrot.slane %v3226, 1
      %v3440 = vrot.slane %v3227, 1
      %v3441 = vsel %vm562, %v3439, %v3440
      %v3442 = vrot.slane %v3230, 1
      %v3443 = vrot.slane %v3231, 1
      %v3444 = vsel %vm562, %v3442, %v3443
      %v3445 = vrot.slane %v3234, 1
      %v3446 = vrot.slane %v3235, 1
      %v3447 = vsel %vm562, %v3445, %v3446
      %v3448 = vrot.slane %v3238, 1
      %v3449 = vrot.slane %v3239, 1
      %v3450 = vsel %vm562, %v3448, %v3449
      %v3451 = vrot.slane %v3242, 1
      %v3452 = vrot.slane %v3243, 1
      %v3453 = vsel %vm562, %v3451, %v3452
      %3454 = vrot.lane.b32.xlu0 %v3406, 8
      %v3455 = vpop.permute.xlu0 %3454
      %3456 = vrot.lane.b32.xlu0 %v3408, 8
      %v3457 = vpop.permute.xlu0 %3456
      %3458 = vrot.lane.b32.xlu0 %v3407, 8
      %v3459 = vpop.permute.xlu0 %3458
      %3460 = vrot.lane.b32.xlu0 %v3409, 8
      %v3461 = vpop.permute.xlu0 %3460
      %3462 = vrot.lane.b32.xlu0 %v3411, 8
      %v3463 = vpop.permute.xlu0 %3462
      %3464 = vrot.lane.b32.xlu0 %v3410, 8
      %v3465 = vpop.permute.xlu0 %3464
      %3466 = vrot.lane.b32.xlu0 %v3412, 8
      %v3467 = vpop.permute.xlu0 %3466
      %3468 = vrot.lane.b32.xlu0 %v3414, 8
      %v3469 = vpop.permute.xlu0 %3468
      %3470 = vrot.lane.b32.xlu0 %v3413, 8
      %v3471 = vpop.permute.xlu0 %3470
      %3472 = vrot.lane.b32.xlu0 %v3415, 8
      %v3473 = vpop.permute.xlu0 %3472
      %3474 = vrot.lane.b32.xlu0 %v3417, 8
      %v3475 = vpop.permute.xlu0 %3474
      %3476 = vrot.lane.b32.xlu0 %v3416, 8
      %v3477 = vpop.permute.xlu0 %3476
      %3478 = vrot.lane.b32.xlu0 %v3418, 8
      %v3479 = vpop.permute.xlu0 %3478
      %3480 = vrot.lane.b32.xlu0 %v3420, 8
      %v3481 = vpop.permute.xlu0 %3480
      %3482 = vrot.lane.b32.xlu0 %v3419, 8
      %v3483 = vpop.permute.xlu0 %3482
      %3484 = vrot.lane.b32.xlu0 %v3421, 8
      %v3485 = vpop.permute.xlu0 %3484
      %3486 = vrot.lane.b32.xlu0 %v3423, 8
      %v3487 = vpop.permute.xlu0 %3486
      %3488 = vrot.lane.b32.xlu0 %v3422, 8
      %v3489 = vpop.permute.xlu0 %3488
      %3490 = vrot.lane.b32.xlu0 %v3424, 8
      %v3491 = vpop.permute.xlu0 %3490
      %3492 = vrot.lane.b32.xlu0 %v3426, 8
      %v3493 = vpop.permute.xlu0 %3492
      %3494 = vrot.lane.b32.xlu0 %v3425, 8
      %v3495 = vpop.permute.xlu0 %3494
      %3496 = vrot.lane.b32.xlu0 %v3427, 8
      %v3497 = vpop.permute.xlu0 %3496
      %3498 = vrot.lane.b32.xlu0 %v3429, 8
      %v3499 = vpop.permute.xlu0 %3498
      %3500 = vrot.lane.b32.xlu0 %v3428, 8
      %v3501 = vpop.permute.xlu0 %3500
      %3502 = vrot.lane.b32.xlu0 %v3430, 8
      %v3503 = vpop.permute.xlu0 %3502
      %3504 = vrot.lane.b32.xlu0 %v3432, 8
      %v3505 = vpop.permute.xlu0 %3504
      %3506 = vrot.lane.b32.xlu0 %v3431, 8
      %v3507 = vpop.permute.xlu0 %3506
      %3508 = vrot.lane.b32.xlu0 %v3433, 8
      %v3509 = vpop.permute.xlu0 %3508
      %3510 = vrot.lane.b32.xlu0 %v3435, 8
      %v3511 = vpop.permute.xlu0 %3510
      %3512 = vrot.lane.b32.xlu0 %v3434, 8
      %v3513 = vpop.permute.xlu0 %3512
      %3514 = vrot.lane.b32.xlu0 %v3436, 8
      %v3515 = vpop.permute.xlu0 %3514
      %3516 = vrot.lane.b32.xlu0 %v3438, 8
      %v3517 = vpop.permute.xlu0 %3516
      %3518 = vrot.lane.b32.xlu0 %v3437, 8
      %v3519 = vpop.permute.xlu0 %3518
      %3520 = vrot.lane.b32.xlu0 %v3439, 8
      %v3521 = vpop.permute.xlu0 %3520
      %3522 = vrot.lane.b32.xlu0 %v3441, 8
      %v3523 = vpop.permute.xlu0 %3522
      %3524 = vrot.lane.b32.xlu0 %v3440, 8
      %v3525 = vpop.permute.xlu0 %3524
      %3526 = vrot.lane.b32.xlu0 %v3442, 8
      %v3527 = vpop.permute.xlu0 %3526
      %3528 = vrot.lane.b32.xlu0 %v3444, 8
      %v3529 = vpop.permute.xlu0 %3528
      %3530 = vrot.lane.b32.xlu0 %v3443, 8
      %v3531 = vpop.permute.xlu0 %3530
      %3532 = vrot.lane.b32.xlu0 %v3445, 8
      %v3533 = vpop.permute.xlu0 %3532
      %3534 = vrot.lane.b32.xlu0 %v3447, 8
      %v3535 = vpop.permute.xlu0 %3534
      %3536 = vrot.lane.b32.xlu0 %v3446, 8
      %v3537 = vpop.permute.xlu0 %3536
      %3538 = vrot.lane.b32.xlu0 %v3448, 8
      %v3539 = vpop.permute.xlu0 %3538
      %3540 = vrot.lane.b32.xlu0 %v3450, 8
      %v3541 = vpop.permute.xlu0 %3540
      %3542 = vrot.lane.b32.xlu0 %v3449, 8
      %v3543 = vpop.permute.xlu0 %3542
      %3544 = vrot.lane.b32.xlu0 %v3451, 8
      %v3545 = vpop.permute.xlu0 %3544
      %3546 = vrot.lane.b32.xlu0 %v3453, 8
      %v3547 = vpop.permute.xlu0 %3546
      %3548 = vrot.lane.b32.xlu0 %v3452, 8
      %v3549 = vpop.permute.xlu0 %3548
      %v3614 = vrot.slane %v3182, 2
      %v3615 = vrot.slane %v3183, 2
      %v3616 = vsel %vm771, %v3614, %v3615
      %v3617 = vrot.slane %v3184, 2
      %v3618 = vsel %vm771, %v3615, %v3617
      %v3619 = vrot.slane %v3186, 2
      %v3620 = vrot.slane %v3187, 2
      %v3621 = vsel %vm771, %v3619, %v3620
      %v3622 = vrot.slane %v3188, 2
      %v3623 = vsel %vm771, %v3620, %v3622
      %v3624 = vrot.slane %v3190, 2
      %v3625 = vrot.slane %v3191, 2
      %v3626 = vsel %vm771, %v3624, %v3625
      %v3627 = vrot.slane %v3192, 2
      %v3628 = vsel %vm771, %v3625, %v3627
      %v3629 = vrot.slane %v3194, 2
      %v3630 = vrot.slane %v3195, 2
      %v3631 = vsel %vm771, %v3629, %v3630
      %v3632 = vrot.slane %v3196, 2
      %v3633 = vsel %vm771, %v3630, %v3632
      %v3634 = vrot.slane %v3198, 2
      %v3635 = vrot.slane %v3199, 2
      %v3636 = vsel %vm771, %v3634, %v3635
      %v3637 = vrot.slane %v3200, 2
      %v3638 = vsel %vm771, %v3635, %v3637
      %v3639 = vrot.slane %v3202, 2
      %v3640 = vrot.slane %v3203, 2
      %v3641 = vsel %vm771, %v3639, %v3640
      %v3642 = vrot.slane %v3204, 2
      %v3643 = vsel %vm771, %v3640, %v3642
      %v3644 = vrot.slane %v3206, 2
      %v3645 = vrot.slane %v3207, 2
      %v3646 = vsel %vm771, %v3644, %v3645
      %v3647 = vrot.slane %v3208, 2
      %v3648 = vsel %vm771, %v3645, %v3647
      %v3649 = vrot.slane %v3210, 2
      %v3650 = vrot.slane %v3211, 2
      %v3651 = vsel %vm771, %v3649, %v3650
      %v3652 = vrot.slane %v3212, 2
      %v3653 = vsel %vm771, %v3650, %v3652
      %v3654 = vrot.slane %v3214, 2
      %v3655 = vrot.slane %v3215, 2
      %v3656 = vsel %vm771, %v3654, %v3655
      %v3657 = vrot.slane %v3216, 2
      %v3658 = vsel %vm771, %v3655, %v3657
      %v3659 = vrot.slane %v3218, 2
      %v3660 = vrot.slane %v3219, 2
      %v3661 = vsel %vm771, %v3659, %v3660
      %v3662 = vrot.slane %v3220, 2
      %v3663 = vsel %vm771, %v3660, %v3662
      %v3664 = vrot.slane %v3222, 2
      %v3665 = vrot.slane %v3223, 2
      %v3666 = vsel %vm771, %v3664, %v3665
      %v3667 = vrot.slane %v3224, 2
      %v3668 = vsel %vm771, %v3665, %v3667
      %v3669 = vrot.slane %v3226, 2
      %v3670 = vrot.slane %v3227, 2
      %v3671 = vsel %vm771, %v3669, %v3670
      %v3672 = vrot.slane %v3228, 2
      %v3673 = vsel %vm771, %v3670, %v3672
      %v3674 = vrot.slane %v3230, 2
      %v3675 = vrot.slane %v3231, 2
      %v3676 = vsel %vm771, %v3674, %v3675
      %v3677 = vrot.slane %v3232, 2
      %v3678 = vsel %vm771, %v3675, %v3677
      %v3679 = vrot.slane %v3234, 2
      %v3680 = vrot.slane %v3235, 2
      %v3681 = vsel %vm771, %v3679, %v3680
      %v3682 = vrot.slane %v3236, 2
      %v3683 = vsel %vm771, %v3680, %v3682
      %v3684 = vrot.slane %v3238, 2
      %v3685 = vrot.slane %v3239, 2
      %v3686 = vsel %vm771, %v3684, %v3685
      %v3687 = vrot.slane %v3240, 2
      %v3688 = vsel %vm771, %v3685, %v3687
      %v3689 = vrot.slane %v3242, 2
      %v3690 = vrot.slane %v3243, 2
      %v3691 = vsel %vm771, %v3689, %v3690
      %v3692 = vrot.slane %v3244, 2
      %v3693 = vsel %vm771, %v3690, %v3692
      %3694 = vrot.lane.b32.xlu0 %v3614, 16
      %v3695 = vpop.permute.xlu0 %3694
      %3696 = vrot.lane.b32.xlu0 %v3616, 16
      %v3697 = vpop.permute.xlu0 %3696
      %3698 = vrot.lane.b32.xlu0 %v3618, 16
      %v3699 = vpop.permute.xlu0 %3698
      %3700 = vrot.lane.b32.xlu0 %v3619, 16
      %v3701 = vpop.permute.xlu0 %3700
      %3702 = vrot.lane.b32.xlu0 %v3621, 16
      %v3703 = vpop.permute.xlu0 %3702
      %3704 = vrot.lane.b32.xlu0 %v3623, 16
      %v3705 = vpop.permute.xlu0 %3704
      %3706 = vrot.lane.b32.xlu0 %v3624, 16
      %v3707 = vpop.permute.xlu0 %3706
      %3708 = vrot.lane.b32.xlu0 %v3626, 16
      %v3709 = vpop.permute.xlu0 %3708
      %3710 = vrot.lane.b32.xlu0 %v3628, 16
      %v3711 = vpop.permute.xlu0 %3710
      %3712 = vrot.lane.b32.xlu0 %v3629, 16
      %v3713 = vpop.permute.xlu0 %3712
      %3714 = vrot.lane.b32.xlu0 %v3631, 16
      %v3715 = vpop.permute.xlu0 %3714
      %3716 = vrot.lane.b32.xlu0 %v3633, 16
      %v3717 = vpop.permute.xlu0 %3716
      %3718 = vrot.lane.b32.xlu0 %v3634, 16
      %v3719 = vpop.permute.xlu0 %3718
      %3720 = vrot.lane.b32.xlu0 %v3636, 16
      %v3721 = vpop.permute.xlu0 %3720
      %3722 = vrot.lane.b32.xlu0 %v3638, 16
      %v3723 = vpop.permute.xlu0 %3722
      %3724 = vrot.lane.b32.xlu0 %v3639, 16
      %v3725 = vpop.permute.xlu0 %3724
      %3726 = vrot.lane.b32.xlu0 %v3641, 16
      %v3727 = vpop.permute.xlu0 %3726
      %3728 = vrot.lane.b32.xlu0 %v3643, 16
      %v3729 = vpop.permute.xlu0 %3728
      %3730 = vrot.lane.b32.xlu0 %v3644, 16
      %v3731 = vpop.permute.xlu0 %3730
      %3732 = vrot.lane.b32.xlu0 %v3646, 16
      %v3733 = vpop.permute.xlu0 %3732
      %3734 = vrot.lane.b32.xlu0 %v3648, 16
      %v3735 = vpop.permute.xlu0 %3734
      %3736 = vrot.lane.b32.xlu0 %v3649, 16
      %v3737 = vpop.permute.xlu0 %3736
      %3738 = vrot.lane.b32.xlu0 %v3651, 16
      %v3739 = vpop.permute.xlu0 %3738
      %3740 = vrot.lane.b32.xlu0 %v3653, 16
      %v3741 = vpop.permute.xlu0 %3740
      %3742 = vrot.lane.b32.xlu0 %v3654, 16
      %v3743 = vpop.permute.xlu0 %3742
      %3744 = vrot.lane.b32.xlu0 %v3656, 16
      %v3745 = vpop.permute.xlu0 %3744
      %3746 = vrot.lane.b32.xlu0 %v3658, 16
      %v3747 = vpop.permute.xlu0 %3746
      %3748 = vrot.lane.b32.xlu0 %v3659, 16
      %v3749 = vpop.permute.xlu0 %3748
      %3750 = vrot.lane.b32.xlu0 %v3661, 16
      %v3751 = vpop.permute.xlu0 %3750
      %3752 = vrot.lane.b32.xlu0 %v3663, 16
      %v3753 = vpop.permute.xlu0 %3752
      %3754 = vrot.lane.b32.xlu0 %v3664, 16
      %v3755 = vpop.permute.xlu0 %3754
      %3756 = vrot.lane.b32.xlu0 %v3666, 16
      %v3757 = vpop.permute.xlu0 %3756
      %3758 = vrot.lane.b32.xlu0 %v3668, 16
      %v3759 = vpop.permute.xlu0 %3758
      %3760 = vrot.lane.b32.xlu0 %v3669, 16
      %v3761 = vpop.permute.xlu0 %3760
      %3762 = vrot.lane.b32.xlu0 %v3671, 16
      %v3763 = vpop.permute.xlu0 %3762
      %3764 = vrot.lane.b32.xlu0 %v3673, 16
      %v3765 = vpop.permute.xlu0 %3764
      %3766 = vrot.lane.b32.xlu0 %v3674, 16
      %v3767 = vpop.permute.xlu0 %3766
      %3768 = vrot.lane.b32.xlu0 %v3676, 16
      %v3769 = vpop.permute.xlu0 %3768
      %3770 = vrot.lane.b32.xlu0 %v3678, 16
      %v3771 = vpop.permute.xlu0 %3770
      %3772 = vrot.lane.b32.xlu0 %v3679, 16
      %v3773 = vpop.permute.xlu0 %3772
      %3774 = vrot.lane.b32.xlu0 %v3681, 16
      %v3775 = vpop.permute.xlu0 %3774
      %3776 = vrot.lane.b32.xlu0 %v3683, 16
      %v3777 = vpop.permute.xlu0 %3776
      %3778 = vrot.lane.b32.xlu0 %v3684, 16
      %v3779 = vpop.permute.xlu0 %3778
      %3780 = vrot.lane.b32.xlu0 %v3686, 16
      %v3781 = vpop.permute.xlu0 %3780
      %3782 = vrot.lane.b32.xlu0 %v3688, 16
      %v3783 = vpop.permute.xlu0 %3782
      %3784 = vrot.lane.b32.xlu0 %v3689, 16
      %v3785 = vpop.permute.xlu0 %3784
      %3786 = vrot.lane.b32.xlu0 %v3691, 16
      %v3787 = vpop.permute.xlu0 %3786
      %3788 = vrot.lane.b32.xlu0 %v3693, 16
      %v3789 = vpop.permute.xlu0 %3788
      %3886 = vrot.lane.b32.xlu0 %v3245, 24
      %v3887 = vpop.permute.xlu0 %3886
      %3888 = vrot.lane.b32.xlu0 %v3246, 24
      %v3889 = vpop.permute.xlu0 %3888
      %3890 = vrot.lane.b32.xlu0 %v3247, 24
      %v3891 = vpop.permute.xlu0 %3890
      %3892 = vrot.lane.b32.xlu0 %v3249, 24
      %v3893 = vpop.permute.xlu0 %3892
      %3894 = vrot.lane.b32.xlu0 %v3250, 24
      %v3895 = vpop.permute.xlu0 %3894
      %3896 = vrot.lane.b32.xlu0 %v3251, 24
      %v3897 = vpop.permute.xlu0 %3896
      %3898 = vrot.lane.b32.xlu0 %v3253, 24
      %v3899 = vpop.permute.xlu0 %3898
      %3900 = vrot.lane.b32.xlu0 %v3254, 24
      %v3901 = vpop.permute.xlu0 %3900
      %3902 = vrot.lane.b32.xlu0 %v3255, 24
      %v3903 = vpop.permute.xlu0 %3902
      %3904 = vrot.lane.b32.xlu0 %v3257, 24
      %v3905 = vpop.permute.xlu0 %3904
      %3906 = vrot.lane.b32.xlu0 %v3258, 24
      %v3907 = vpop.permute.xlu0 %3906
      %3908 = vrot.lane.b32.xlu0 %v3259, 24
      %v3909 = vpop.permute.xlu0 %3908
      %3910 = vrot.lane.b32.xlu0 %v3261, 24
      %v3911 = vpop.permute.xlu0 %3910
      %3912 = vrot.lane.b32.xlu0 %v3262, 24
      %v3913 = vpop.permute.xlu0 %3912
      %3914 = vrot.lane.b32.xlu0 %v3263, 24
      %v3915 = vpop.permute.xlu0 %3914
      %3916 = vrot.lane.b32.xlu0 %v3265, 24
      %v3917 = vpop.permute.xlu0 %3916
      %3918 = vrot.lane.b32.xlu0 %v3266, 24
      %v3919 = vpop.permute.xlu0 %3918
      %3920 = vrot.lane.b32.xlu0 %v3267, 24
      %v3921 = vpop.permute.xlu0 %3920
      %3922 = vrot.lane.b32.xlu0 %v3269, 24
      %v3923 = vpop.permute.xlu0 %3922
      %3924 = vrot.lane.b32.xlu0 %v3270, 24
      %v3925 = vpop.permute.xlu0 %3924
      %3926 = vrot.lane.b32.xlu0 %v3271, 24
      %v3927 = vpop.permute.xlu0 %3926
      %3928 = vrot.lane.b32.xlu0 %v3273, 24
      %v3929 = vpop.permute.xlu0 %3928
      %3930 = vrot.lane.b32.xlu0 %v3274, 24
      %v3931 = vpop.permute.xlu0 %3930
      %3932 = vrot.lane.b32.xlu0 %v3275, 24
      %v3933 = vpop.permute.xlu0 %3932
      %3934 = vrot.lane.b32.xlu0 %v3277, 24
      %v3935 = vpop.permute.xlu0 %3934
      %3936 = vrot.lane.b32.xlu0 %v3278, 24
      %v3937 = vpop.permute.xlu0 %3936
      %3938 = vrot.lane.b32.xlu0 %v3279, 24
      %v3939 = vpop.permute.xlu0 %3938
      %3940 = vrot.lane.b32.xlu0 %v3281, 24
      %v3941 = vpop.permute.xlu0 %3940
      %3942 = vrot.lane.b32.xlu0 %v3282, 24
      %v3943 = vpop.permute.xlu0 %3942
      %3944 = vrot.lane.b32.xlu0 %v3283, 24
      %v3945 = vpop.permute.xlu0 %3944
      %3946 = vrot.lane.b32.xlu0 %v3285, 24
      %v3947 = vpop.permute.xlu0 %3946
      %3948 = vrot.lane.b32.xlu0 %v3286, 24
      %v3949 = vpop.permute.xlu0 %3948
      %3950 = vrot.lane.b32.xlu0 %v3287, 24
      %v3951 = vpop.permute.xlu0 %3950
      %3952 = vrot.lane.b32.xlu0 %v3289, 24
      %v3953 = vpop.permute.xlu0 %3952
      %3954 = vrot.lane.b32.xlu0 %v3290, 24
      %v3955 = vpop.permute.xlu0 %3954
      %3956 = vrot.lane.b32.xlu0 %v3291, 24
      %v3957 = vpop.permute.xlu0 %3956
      %3958 = vrot.lane.b32.xlu0 %v3293, 24
      %v3959 = vpop.permute.xlu0 %3958
      %3960 = vrot.lane.b32.xlu0 %v3294, 24
      %v3961 = vpop.permute.xlu0 %3960
      %3962 = vrot.lane.b32.xlu0 %v3295, 24
      %v3963 = vpop.permute.xlu0 %3962
      %3964 = vrot.lane.b32.xlu0 %v3297, 24
      %v3965 = vpop.permute.xlu0 %3964
      %3966 = vrot.lane.b32.xlu0 %v3298, 24
      %v3967 = vpop.permute.xlu0 %3966
      %3968 = vrot.lane.b32.xlu0 %v3299, 24
      %v3969 = vpop.permute.xlu0 %3968
      %3970 = vrot.lane.b32.xlu0 %v3301, 24
      %v3971 = vpop.permute.xlu0 %3970
      %3972 = vrot.lane.b32.xlu0 %v3302, 24
      %v3973 = vpop.permute.xlu0 %3972
      %3974 = vrot.lane.b32.xlu0 %v3303, 24
      %v3975 = vpop.permute.xlu0 %3974
      %3976 = vrot.lane.b32.xlu0 %v3305, 24
      %v3977 = vpop.permute.xlu0 %3976
      %3978 = vrot.lane.b32.xlu0 %v3306, 24
      %v3979 = vpop.permute.xlu0 %3978
      %3980 = vrot.lane.b32.xlu0 %v3307, 24
      %v3981 = vpop.permute.xlu0 %3980
      %v4030 = vrot.slane %v3246, 1
      %v4031 = vrot.slane %v3247, 1
      %v4032 = vsel %vm562, %v4030, %v4031
      %v4033 = vrot.slane %v3250, 1
      %v4034 = vrot.slane %v3251, 1
      %v4035 = vsel %vm562, %v4033, %v4034
      %v4036 = vrot.slane %v3254, 1
      %v4037 = vrot.slane %v3255, 1
      %v4038 = vsel %vm562, %v4036, %v4037
      %v4039 = vrot.slane %v3258, 1
      %v4040 = vrot.slane %v3259, 1
      %v4041 = vsel %vm562, %v4039, %v4040
      %v4042 = vrot.slane %v3262, 1
      %v4043 = vrot.slane %v3263, 1
      %v4044 = vsel %vm562, %v4042, %v4043
      %v4045 = vrot.slane %v3266, 1
      %v4046 = vrot.slane %v3267, 1
      %v4047 = vsel %vm562, %v4045, %v4046
      %v4048 = vrot.slane %v3270, 1
      %v4049 = vrot.slane %v3271, 1
      %v4050 = vsel %vm562, %v4048, %v4049
      %v4051 = vrot.slane %v3274, 1
      %v4052 = vrot.slane %v3275, 1
      %v4053 = vsel %vm562, %v4051, %v4052
      %v4054 = vrot.slane %v3278, 1
      %v4055 = vrot.slane %v3279, 1
      %v4056 = vsel %vm562, %v4054, %v4055
      %v4057 = vrot.slane %v3282, 1
      %v4058 = vrot.slane %v3283, 1
      %v4059 = vsel %vm562, %v4057, %v4058
      %v4060 = vrot.slane %v3286, 1
      %v4061 = vrot.slane %v3287, 1
      %v4062 = vsel %vm562, %v4060, %v4061
      %v4063 = vrot.slane %v3290, 1
      %v4064 = vrot.slane %v3291, 1
      %v4065 = vsel %vm562, %v4063, %v4064
      %v4066 = vrot.slane %v3294, 1
      %v4067 = vrot.slane %v3295, 1
      %v4068 = vsel %vm562, %v4066, %v4067
      %v4069 = vrot.slane %v3298, 1
      %v4070 = vrot.slane %v3299, 1
      %v4071 = vsel %vm562, %v4069, %v4070
      %v4072 = vrot.slane %v3302, 1
      %v4073 = vrot.slane %v3303, 1
      %v4074 = vsel %vm562, %v4072, %v4073
      %v4075 = vrot.slane %v3306, 1
      %v4076 = vrot.slane %v3307, 1
      %v4077 = vsel %vm562, %v4075, %v4076
      %4078 = vrot.lane.b32.xlu0 %v4030, 32
      %v4079 = vpop.permute.xlu0 %4078
      %4080 = vrot.lane.b32.xlu0 %v4032, 32
      %v4081 = vpop.permute.xlu0 %4080
      %4082 = vrot.lane.b32.xlu0 %v4031, 32
      %v4083 = vpop.permute.xlu0 %4082
      %4084 = vrot.lane.b32.xlu0 %v4033, 32
      %v4085 = vpop.permute.xlu0 %4084
      %4086 = vrot.lane.b32.xlu0 %v4035, 32
      %v4087 = vpop.permute.xlu0 %4086
      %4088 = vrot.lane.b32.xlu0 %v4034, 32
      %v4089 = vpop.permute.xlu0 %4088
      %4090 = vrot.lane.b32.xlu0 %v4036, 32
      %v4091 = vpop.permute.xlu0 %4090
      %4092 = vrot.lane.b32.xlu0 %v4038, 32
      %v4093 = vpop.permute.xlu0 %4092
      %4094 = vrot.lane.b32.xlu0 %v4037, 32
      %v4095 = vpop.permute.xlu0 %4094
      %4096 = vrot.lane.b32.xlu0 %v4039, 32
      %v4097 = vpop.permute.xlu0 %4096
      %4098 = vrot.lane.b32.xlu0 %v4041, 32
      %v4099 = vpop.permute.xlu0 %4098
      %4100 = vrot.lane.b32.xlu0 %v4040, 32
      %v4101 = vpop.permute.xlu0 %4100
      %4102 = vrot.lane.b32.xlu0 %v4042, 32
      %v4103 = vpop.permute.xlu0 %4102
      %4104 = vrot.lane.b32.xlu0 %v4044, 32
      %v4105 = vpop.permute.xlu0 %4104
      %4106 = vrot.lane.b32.xlu0 %v4043, 32
      %v4107 = vpop.permute.xlu0 %4106
      %4108 = vrot.lane.b32.xlu0 %v4045, 32
      %v4109 = vpop.permute.xlu0 %4108
      %4110 = vrot.lane.b32.xlu0 %v4047, 32
      %v4111 = vpop.permute.xlu0 %4110
      %4112 = vrot.lane.b32.xlu0 %v4046, 32
      %v4113 = vpop.permute.xlu0 %4112
      %4114 = vrot.lane.b32.xlu0 %v4048, 32
      %v4115 = vpop.permute.xlu0 %4114
      %4116 = vrot.lane.b32.xlu0 %v4050, 32
      %v4117 = vpop.permute.xlu0 %4116
      %4118 = vrot.lane.b32.xlu0 %v4049, 32
      %v4119 = vpop.permute.xlu0 %4118
      %4120 = vrot.lane.b32.xlu0 %v4051, 32
      %v4121 = vpop.permute.xlu0 %4120
      %4122 = vrot.lane.b32.xlu0 %v4053, 32
      %v4123 = vpop.permute.xlu0 %4122
      %4124 = vrot.lane.b32.xlu0 %v4052, 32
      %v4125 = vpop.permute.xlu0 %4124
      %4126 = vrot.lane.b32.xlu0 %v4054, 32
      %v4127 = vpop.permute.xlu0 %4126
      %4128 = vrot.lane.b32.xlu0 %v4056, 32
      %v4129 = vpop.permute.xlu0 %4128
      %4130 = vrot.lane.b32.xlu0 %v4055, 32
      %v4131 = vpop.permute.xlu0 %4130
      %4132 = vrot.lane.b32.xlu0 %v4057, 32
      %v4133 = vpop.permute.xlu0 %4132
      %4134 = vrot.lane.b32.xlu0 %v4059, 32
      %v4135 = vpop.permute.xlu0 %4134
      %4136 = vrot.lane.b32.xlu0 %v4058, 32
      %v4137 = vpop.permute.xlu0 %4136
      %4138 = vrot.lane.b32.xlu0 %v4060, 32
      %v4139 = vpop.permute.xlu0 %4138
      %4140 = vrot.lane.b32.xlu0 %v4062, 32
      %v4141 = vpop.permute.xlu0 %4140
      %4142 = vrot.lane.b32.xlu0 %v4061, 32
      %v4143 = vpop.permute.xlu0 %4142
      %4144 = vrot.lane.b32.xlu0 %v4063, 32
      %v4145 = vpop.permute.xlu0 %4144
      %4146 = vrot.lane.b32.xlu0 %v4065, 32
      %v4147 = vpop.permute.xlu0 %4146
      %4148 = vrot.lane.b32.xlu0 %v4064, 32
      %v4149 = vpop.permute.xlu0 %4148
      %4150 = vrot.lane.b32.xlu0 %v4066, 32
      %v4151 = vpop.permute.xlu0 %4150
      %4152 = vrot.lane.b32.xlu0 %v4068, 32
      %v4153 = vpop.permute.xlu0 %4152
      %4154 = vrot.lane.b32.xlu0 %v4067, 32
      %v4155 = vpop.permute.xlu0 %4154
      %4156 = vrot.lane.b32.xlu0 %v4069, 32
      %v4157 = vpop.permute.xlu0 %4156
      %4158 = vrot.lane.b32.xlu0 %v4071, 32
      %v4159 = vpop.permute.xlu0 %4158
      %4160 = vrot.lane.b32.xlu0 %v4070, 32
      %v4161 = vpop.permute.xlu0 %4160
      %4162 = vrot.lane.b32.xlu0 %v4072, 32
      %v4163 = vpop.permute.xlu0 %4162
      %4164 = vrot.lane.b32.xlu0 %v4074, 32
      %v4165 = vpop.permute.xlu0 %4164
      %4166 = vrot.lane.b32.xlu0 %v4073, 32
      %v4167 = vpop.permute.xlu0 %4166
      %4168 = vrot.lane.b32.xlu0 %v4075, 32
      %v4169 = vpop.permute.xlu0 %4168
      %4170 = vrot.lane.b32.xlu0 %v4077, 32
      %v4171 = vpop.permute.xlu0 %4170
      %4172 = vrot.lane.b32.xlu0 %v4076, 32
      %v4173 = vpop.permute.xlu0 %4172
      %v4238 = vrot.slane %v3246, 2
      %v4239 = vrot.slane %v3247, 2
      %v4240 = vsel %vm771, %v4238, %v4239
      %v4241 = vrot.slane %v3248, 2
      %v4242 = vsel %vm771, %v4239, %v4241
      %v4243 = vrot.slane %v3250, 2
      %v4244 = vrot.slane %v3251, 2
      %v4245 = vsel %vm771, %v4243, %v4244
      %v4246 = vrot.slane %v3252, 2
      %v4247 = vsel %vm771, %v4244, %v4246
      %v4248 = vrot.slane %v3254, 2
      %v4249 = vrot.slane %v3255, 2
      %v4250 = vsel %vm771, %v4248, %v4249
      %v4251 = vrot.slane %v3256, 2
      %v4252 = vsel %vm771, %v4249, %v4251
      %v4253 = vrot.slane %v3258, 2
      %v4254 = vrot.slane %v3259, 2
      %v4255 = vsel %vm771, %v4253, %v4254
      %v4256 = vrot.slane %v3260, 2
      %v4257 = vsel %vm771, %v4254, %v4256
      %v4258 = vrot.slane %v3262, 2
      %v4259 = vrot.slane %v3263, 2
      %v4260 = vsel %vm771, %v4258, %v4259
      %v4261 = vrot.slane %v3264, 2
      %v4262 = vsel %vm771, %v4259, %v4261
      %v4263 = vrot.slane %v3266, 2
      %v4264 = vrot.slane %v3267, 2
      %v4265 = vsel %vm771, %v4263, %v4264
      %v4266 = vrot.slane %v3268, 2
      %v4267 = vsel %vm771, %v4264, %v4266
      %v4268 = vrot.slane %v3270, 2
      %v4269 = vrot.slane %v3271, 2
      %v4270 = vsel %vm771, %v4268, %v4269
      %v4271 = vrot.slane %v3272, 2
      %v4272 = vsel %vm771, %v4269, %v4271
      %v4273 = vrot.slane %v3274, 2
      %v4274 = vrot.slane %v3275, 2
      %v4275 = vsel %vm771, %v4273, %v4274
      %v4276 = vrot.slane %v3276, 2
      %v4277 = vsel %vm771, %v4274, %v4276
      %v4278 = vrot.slane %v3278, 2
      %v4279 = vrot.slane %v3279, 2
      %v4280 = vsel %vm771, %v4278, %v4279
      %v4281 = vrot.slane %v3280, 2
      %v4282 = vsel %vm771, %v4279, %v4281
      %v4283 = vrot.slane %v3282, 2
      %v4284 = vrot.slane %v3283, 2
      %v4285 = vsel %vm771, %v4283, %v4284
      %v4286 = vrot.slane %v3284, 2
      %v4287 = vsel %vm771, %v4284, %v4286
      %v4288 = vrot.slane %v3286, 2
      %v4289 = vrot.slane %v3287, 2
      %v4290 = vsel %vm771, %v4288, %v4289
      %v4291 = vrot.slane %v3288, 2
      %v4292 = vsel %vm771, %v4289, %v4291
      %v4293 = vrot.slane %v3290, 2
      %v4294 = vrot.slane %v3291, 2
      %v4295 = vsel %vm771, %v4293, %v4294
      %v4296 = vrot.slane %v3292, 2
      %v4297 = vsel %vm771, %v4294, %v4296
      %v4298 = vrot.slane %v3294, 2
      %v4299 = vrot.slane %v3295, 2
      %v4300 = vsel %vm771, %v4298, %v4299
      %v4301 = vrot.slane %v3296, 2
      %v4302 = vsel %vm771, %v4299, %v4301
      %v4303 = vrot.slane %v3298, 2
      %v4304 = vrot.slane %v3299, 2
      %v4305 = vsel %vm771, %v4303, %v4304
      %v4306 = vrot.slane %v3300, 2
      %v4307 = vsel %vm771, %v4304, %v4306
      %v4308 = vrot.slane %v3302, 2
      %v4309 = vrot.slane %v3303, 2
      %v4310 = vsel %vm771, %v4308, %v4309
      %v4311 = vrot.slane %v3304, 2
      %v4312 = vsel %vm771, %v4309, %v4311
      %v4313 = vrot.slane %v3306, 2
      %v4314 = vrot.slane %v3307, 2
      %v4315 = vsel %vm771, %v4313, %v4314
      %v4316 = vrot.slane %v3308, 2
      %v4317 = vsel %vm771, %v4314, %v4316
      %4318 = vrot.lane.b32.xlu0 %v4238, 40
      %v4319 = vpop.permute.xlu0 %4318
      %4320 = vrot.lane.b32.xlu0 %v4240, 40
      %v4321 = vpop.permute.xlu0 %4320
      %4322 = vrot.lane.b32.xlu0 %v4242, 40
      %v4323 = vpop.permute.xlu0 %4322
      %4324 = vrot.lane.b32.xlu0 %v4243, 40
      %v4325 = vpop.permute.xlu0 %4324
      %4326 = vrot.lane.b32.xlu0 %v4245, 40
      %v4327 = vpop.permute.xlu0 %4326
      %4328 = vrot.lane.b32.xlu0 %v4247, 40
      %v4329 = vpop.permute.xlu0 %4328
      %4330 = vrot.lane.b32.xlu0 %v4248, 40
      %v4331 = vpop.permute.xlu0 %4330
      %4332 = vrot.lane.b32.xlu0 %v4250, 40
      %v4333 = vpop.permute.xlu0 %4332
      %4334 = vrot.lane.b32.xlu0 %v4252, 40
      %v4335 = vpop.permute.xlu0 %4334
      %4336 = vrot.lane.b32.xlu0 %v4253, 40
      %v4337 = vpop.permute.xlu0 %4336
      %4338 = vrot.lane.b32.xlu0 %v4255, 40
      %v4339 = vpop.permute.xlu0 %4338
      %4340 = vrot.lane.b32.xlu0 %v4257, 40
      %v4341 = vpop.permute.xlu0 %4340
      %4342 = vrot.lane.b32.xlu0 %v4258, 40
      %v4343 = vpop.permute.xlu0 %4342
      %4344 = vrot.lane.b32.xlu0 %v4260, 40
      %v4345 = vpop.permute.xlu0 %4344
      %4346 = vrot.lane.b32.xlu0 %v4262, 40
      %v4347 = vpop.permute.xlu0 %4346
      %4348 = vrot.lane.b32.xlu0 %v4263, 40
      %v4349 = vpop.permute.xlu0 %4348
      %4350 = vrot.lane.b32.xlu0 %v4265, 40
      %v4351 = vpop.permute.xlu0 %4350
      %4352 = vrot.lane.b32.xlu0 %v4267, 40
      %v4353 = vpop.permute.xlu0 %4352
      %4354 = vrot.lane.b32.xlu0 %v4268, 40
      %v4355 = vpop.permute.xlu0 %4354
      %4356 = vrot.lane.b32.xlu0 %v4270, 40
      %v4357 = vpop.permute.xlu0 %4356
      %4358 = vrot.lane.b32.xlu0 %v4272, 40
      %v4359 = vpop.permute.xlu0 %4358
      %4360 = vrot.lane.b32.xlu0 %v4273, 40
      %v4361 = vpop.permute.xlu0 %4360
      %4362 = vrot.lane.b32.xlu0 %v4275, 40
      %v4363 = vpop.permute.xlu0 %4362
      %4364 = vrot.lane.b32.xlu0 %v4277, 40
      %v4365 = vpop.permute.xlu0 %4364
      %4366 = vrot.lane.b32.xlu0 %v4278, 40
      %v4367 = vpop.permute.xlu0 %4366
      %4368 = vrot.lane.b32.xlu0 %v4280, 40
      %v4369 = vpop.permute.xlu0 %4368
      %4370 = vrot.lane.b32.xlu0 %v4282, 40
      %v4371 = vpop.permute.xlu0 %4370
      %4372 = vrot.lane.b32.xlu0 %v4283, 40
      %v4373 = vpop.permute.xlu0 %4372
      %4374 = vrot.lane.b32.xlu0 %v4285, 40
      %v4375 = vpop.permute.xlu0 %4374
      %4376 = vrot.lane.b32.xlu0 %v4287, 40
      %v4377 = vpop.permute.xlu0 %4376
      %4378 = vrot.lane.b32.xlu0 %v4288, 40
      %v4379 = vpop.permute.xlu0 %4378
      %4380 = vrot.lane.b32.xlu0 %v4290, 40
      %v4381 = vpop.permute.xlu0 %4380
      %4382 = vrot.lane.b32.xlu0 %v4292, 40
      %v4383 = vpop.permute.xlu0 %4382
      %4384 = vrot.lane.b32.xlu0 %v4293, 40
      %v4385 = vpop.permute.xlu0 %4384
      %4386 = vrot.lane.b32.xlu0 %v4295, 40
      %v4387 = vpop.permute.xlu0 %4386
      %4388 = vrot.lane.b32.xlu0 %v4297, 40
      %v4389 = vpop.permute.xlu0 %4388
      %4390 = vrot.lane.b32.xlu0 %v4298, 40
      %v4391 = vpop.permute.xlu0 %4390
      %4392 = vrot.lane.b32.xlu0 %v4300, 40
      %v4393 = vpop.permute.xlu0 %4392
      %4394 = vrot.lane.b32.xlu0 %v4302, 40
      %v4395 = vpop.permute.xlu0 %4394
      %4396 = vrot.lane.b32.xlu0 %v4303, 40
      %v4397 = vpop.permute.xlu0 %4396
      %4398 = vrot.lane.b32.xlu0 %v4305, 40
      %v4399 = vpop.permute.xlu0 %4398
      %4400 = vrot.lane.b32.xlu0 %v4307, 40
      %v4401 = vpop.permute.xlu0 %4400
      %4402 = vrot.lane.b32.xlu0 %v4308, 40
      %v4403 = vpop.permute.xlu0 %4402
      %4404 = vrot.lane.b32.xlu0 %v4310, 40
      %v4405 = vpop.permute.xlu0 %4404
      %4406 = vrot.lane.b32.xlu0 %v4312, 40
      %v4407 = vpop.permute.xlu0 %4406
      %4408 = vrot.lane.b32.xlu0 %v4313, 40
      %v4409 = vpop.permute.xlu0 %4408
      %4410 = vrot.lane.b32.xlu0 %v4315, 40
      %v4411 = vpop.permute.xlu0 %4410
      %4412 = vrot.lane.b32.xlu0 %v4317, 40
      %v4413 = vpop.permute.xlu0 %4412
      %4510 = vrot.lane.b32.xlu0 %v3310, 48
      %v4511 = vpop.permute.xlu0 %4510
      %4512 = vrot.lane.b32.xlu0 %v3311, 48
      %v4513 = vpop.permute.xlu0 %4512
      %4514 = vrot.lane.b32.xlu0 %v3312, 48
      %v4515 = vpop.permute.xlu0 %4514
      %4516 = vrot.lane.b32.xlu0 %v3314, 48
      %v4517 = vpop.permute.xlu0 %4516
      %4518 = vrot.lane.b32.xlu0 %v3315, 48
      %v4519 = vpop.permute.xlu0 %4518
      %4520 = vrot.lane.b32.xlu0 %v3316, 48
      %v4521 = vpop.permute.xlu0 %4520
      %4522 = vrot.lane.b32.xlu0 %v3318, 48
      %v4523 = vpop.permute.xlu0 %4522
      %4524 = vrot.lane.b32.xlu0 %v3319, 48
      %v4525 = vpop.permute.xlu0 %4524
      %4526 = vrot.lane.b32.xlu0 %v3320, 48
      %v4527 = vpop.permute.xlu0 %4526
      %4528 = vrot.lane.b32.xlu0 %v3322, 48
      %v4529 = vpop.permute.xlu0 %4528
      %4530 = vrot.lane.b32.xlu0 %v3323, 48
      %v4531 = vpop.permute.xlu0 %4530
      %4532 = vrot.lane.b32.xlu0 %v3324, 48
      %v4533 = vpop.permute.xlu0 %4532
      %4534 = vrot.lane.b32.xlu0 %v3326, 48
      %v4535 = vpop.permute.xlu0 %4534
      %4536 = vrot.lane.b32.xlu0 %v3327, 48
      %v4537 = vpop.permute.xlu0 %4536
      %4538 = vrot.lane.b32.xlu0 %v3328, 48
      %v4539 = vpop.permute.xlu0 %4538
      %4540 = vrot.lane.b32.xlu0 %v3330, 48
      %v4541 = vpop.permute.xlu0 %4540
      %4542 = vrot.lane.b32.xlu0 %v3331, 48
      %v4543 = vpop.permute.xlu0 %4542
      %4544 = vrot.lane.b32.xlu0 %v3332, 48
      %v4545 = vpop.permute.xlu0 %4544
      %4546 = vrot.lane.b32.xlu0 %v3334, 48
      %v4547 = vpop.permute.xlu0 %4546
      %4548 = vrot.lane.b32.xlu0 %v3335, 48
      %v4549 = vpop.permute.xlu0 %4548
      %4550 = vrot.lane.b32.xlu0 %v3336, 48
      %v4551 = vpop.permute.xlu0 %4550
      %4552 = vrot.lane.b32.xlu0 %v3338, 48
      %v4553 = vpop.permute.xlu0 %4552
      %4554 = vrot.lane.b32.xlu0 %v3339, 48
      %v4555 = vpop.permute.xlu0 %4554
      %4556 = vrot.lane.b32.xlu0 %v3340, 48
      %v4557 = vpop.permute.xlu0 %4556
      %4558 = vrot.lane.b32.xlu0 %v3342, 48
      %v4559 = vpop.permute.xlu0 %4558
      %4560 = vrot.lane.b32.xlu0 %v3343, 48
      %v4561 = vpop.permute.xlu0 %4560
      %4562 = vrot.lane.b32.xlu0 %v3344, 48
      %v4563 = vpop.permute.xlu0 %4562
      %4564 = vrot.lane.b32.xlu0 %v3346, 48
      %v4565 = vpop.permute.xlu0 %4564
      %4566 = vrot.lane.b32.xlu0 %v3347, 48
      %v4567 = vpop.permute.xlu0 %4566
      %4568 = vrot.lane.b32.xlu0 %v3348, 48
      %v4569 = vpop.permute.xlu0 %4568
      %4570 = vrot.lane.b32.xlu0 %v3350, 48
      %v4571 = vpop.permute.xlu0 %4570
      %4572 = vrot.lane.b32.xlu0 %v3351, 48
      %v4573 = vpop.permute.xlu0 %4572
      %4574 = vrot.lane.b32.xlu0 %v3352, 48
      %v4575 = vpop.permute.xlu0 %4574
      %4576 = vrot.lane.b32.xlu0 %v3354, 48
      %v4577 = vpop.permute.xlu0 %4576
      %4578 = vrot.lane.b32.xlu0 %v3355, 48
      %v4579 = vpop.permute.xlu0 %4578
      %4580 = vrot.lane.b32.xlu0 %v3356, 48
      %v4581 = vpop.permute.xlu0 %4580
      %4582 = vrot.lane.b32.xlu0 %v3358, 48
      %v4583 = vpop.permute.xlu0 %4582
      %4584 = vrot.lane.b32.xlu0 %v3359, 48
      %v4585 = vpop.permute.xlu0 %4584
      %4586 = vrot.lane.b32.xlu0 %v3360, 48
      %v4587 = vpop.permute.xlu0 %4586
      %4588 = vrot.lane.b32.xlu0 %v3362, 48
      %v4589 = vpop.permute.xlu0 %4588
      %4590 = vrot.lane.b32.xlu0 %v3363, 48
      %v4591 = vpop.permute.xlu0 %4590
      %4592 = vrot.lane.b32.xlu0 %v3364, 48
      %v4593 = vpop.permute.xlu0 %4592
      %4594 = vrot.lane.b32.xlu0 %v3366, 48
      %v4595 = vpop.permute.xlu0 %4594
      %4596 = vrot.lane.b32.xlu0 %v3367, 48
      %v4597 = vpop.permute.xlu0 %4596
      %4598 = vrot.lane.b32.xlu0 %v3368, 48
      %v4599 = vpop.permute.xlu0 %4598
      %4600 = vrot.lane.b32.xlu0 %v3370, 48
      %v4601 = vpop.permute.xlu0 %4600
      %4602 = vrot.lane.b32.xlu0 %v3371, 48
      %v4603 = vpop.permute.xlu0 %4602
      %4604 = vrot.lane.b32.xlu0 %v3372, 48
      %v4605 = vpop.permute.xlu0 %4604
      %v4654 = vrot.slane %v3311, 1
      %v4655 = vrot.slane %v3312, 1
      %v4656 = vsel %vm562, %v4654, %v4655
      %v4657 = vrot.slane %v3315, 1
      %v4658 = vrot.slane %v3316, 1
      %v4659 = vsel %vm562, %v4657, %v4658
      %v4660 = vrot.slane %v3319, 1
      %v4661 = vrot.slane %v3320, 1
      %v4662 = vsel %vm562, %v4660, %v4661
      %v4663 = vrot.slane %v3323, 1
      %v4664 = vrot.slane %v3324, 1
      %v4665 = vsel %vm562, %v4663, %v4664
      %v4666 = vrot.slane %v3327, 1
      %v4667 = vrot.slane %v3328, 1
      %v4668 = vsel %vm562, %v4666, %v4667
      %v4669 = vrot.slane %v3331, 1
      %v4670 = vrot.slane %v3332, 1
      %v4671 = vsel %vm562, %v4669, %v4670
      %v4672 = vrot.slane %v3335, 1
      %v4673 = vrot.slane %v3336, 1
      %v4674 = vsel %vm562, %v4672, %v4673
      %v4675 = vrot.slane %v3339, 1
      %v4676 = vrot.slane %v3340, 1
      %v4677 = vsel %vm562, %v4675, %v4676
      %v4678 = vrot.slane %v3343, 1
      %v4679 = vrot.slane %v3344, 1
      %v4680 = vsel %vm562, %v4678, %v4679
      %v4681 = vrot.slane %v3347, 1
      %v4682 = vrot.slane %v3348, 1
      %v4683 = vsel %vm562, %v4681, %v4682
      %v4684 = vrot.slane %v3351, 1
      %v4685 = vrot.slane %v3352, 1
      %v4686 = vsel %vm562, %v4684, %v4685
      %v4687 = vrot.slane %v3355, 1
      %v4688 = vrot.slane %v3356, 1
      %v4689 = vsel %vm562, %v4687, %v4688
      %v4690 = vrot.slane %v3359, 1
      %v4691 = vrot.slane %v3360, 1
      %v4692 = vsel %vm562, %v4690, %v4691
      %v4693 = vrot.slane %v3363, 1
      %v4694 = vrot.slane %v3364, 1
      %v4695 = vsel %vm562, %v4693, %v4694
      %v4696 = vrot.slane %v3367, 1
      %v4697 = vrot.slane %v3368, 1
      %v4698 = vsel %vm562, %v4696, %v4697
      %v4699 = vrot.slane %v3371, 1
      %v4700 = vrot.slane %v3372, 1
      %v4701 = vsel %vm562, %v4699, %v4700
      %4702 = vrot.lane.b32.xlu0 %v4654, 56
      %v4703 = vpop.permute.xlu0 %4702
      %4704 = vrot.lane.b32.xlu0 %v4656, 56
      %v4705 = vpop.permute.xlu0 %4704
      %4706 = vrot.lane.b32.xlu0 %v4655, 56
      %v4707 = vpop.permute.xlu0 %4706
      %4708 = vrot.lane.b32.xlu0 %v4657, 56
      %v4709 = vpop.permute.xlu0 %4708
      %4710 = vrot.lane.b32.xlu0 %v4659, 56
      %v4711 = vpop.permute.xlu0 %4710
      %4712 = vrot.lane.b32.xlu0 %v4658, 56
      %v4713 = vpop.permute.xlu0 %4712
      %4714 = vrot.lane.b32.xlu0 %v4660, 56
      %v4715 = vpop.permute.xlu0 %4714
      %4716 = vrot.lane.b32.xlu0 %v4662, 56
      %v4717 = vpop.permute.xlu0 %4716
      %4718 = vrot.lane.b32.xlu0 %v4661, 56
      %v4719 = vpop.permute.xlu0 %4718
      %4720 = vrot.lane.b32.xlu0 %v4663, 56
      %v4721 = vpop.permute.xlu0 %4720
      %4722 = vrot.lane.b32.xlu0 %v4665, 56
      %v4723 = vpop.permute.xlu0 %4722
      %4724 = vrot.lane.b32.xlu0 %v4664, 56
      %v4725 = vpop.permute.xlu0 %4724
      %4726 = vrot.lane.b32.xlu0 %v4666, 56
      %v4727 = vpop.permute.xlu0 %4726
      %4728 = vrot.lane.b32.xlu0 %v4668, 56
      %v4729 = vpop.permute.xlu0 %4728
      %4730 = vrot.lane.b32.xlu0 %v4667, 56
      %v4731 = vpop.permute.xlu0 %4730
      %4732 = vrot.lane.b32.xlu0 %v4669, 56
      %v4733 = vpop.permute.xlu0 %4732
      %4734 = vrot.lane.b32.xlu0 %v4671, 56
      %v4735 = vpop.permute.xlu0 %4734
      %4736 = vrot.lane.b32.xlu0 %v4670, 56
      %v4737 = vpop.permute.xlu0 %4736
      %4738 = vrot.lane.b32.xlu0 %v4672, 56
      %v4739 = vpop.permute.xlu0 %4738
      %4740 = vrot.lane.b32.xlu0 %v4674, 56
      %v4741 = vpop.permute.xlu0 %4740
      %4742 = vrot.lane.b32.xlu0 %v4673, 56
      %v4743 = vpop.permute.xlu0 %4742
      %4744 = vrot.lane.b32.xlu0 %v4675, 56
      %v4745 = vpop.permute.xlu0 %4744
      %4746 = vrot.lane.b32.xlu0 %v4677, 56
      %v4747 = vpop.permute.xlu0 %4746
      %4748 = vrot.lane.b32.xlu0 %v4676, 56
      %v4749 = vpop.permute.xlu0 %4748
      %4750 = vrot.lane.b32.xlu0 %v4678, 56
      %v4751 = vpop.permute.xlu0 %4750
      %4752 = vrot.lane.b32.xlu0 %v4680, 56
      %v4753 = vpop.permute.xlu0 %4752
      %4754 = vrot.lane.b32.xlu0 %v4679, 56
      %v4755 = vpop.permute.xlu0 %4754
      %4756 = vrot.lane.b32.xlu0 %v4681, 56
      %v4757 = vpop.permute.xlu0 %4756
      %4758 = vrot.lane.b32.xlu0 %v4683, 56
      %v4759 = vpop.permute.xlu0 %4758
      %4760 = vrot.lane.b32.xlu0 %v4682, 56
      %v4761 = vpop.permute.xlu0 %4760
      %4762 = vrot.lane.b32.xlu0 %v4684, 56
      %v4763 = vpop.permute.xlu0 %4762
      %4764 = vrot.lane.b32.xlu0 %v4686, 56
      %v4765 = vpop.permute.xlu0 %4764
      %4766 = vrot.lane.b32.xlu0 %v4685, 56
      %v4767 = vpop.permute.xlu0 %4766
      %4768 = vrot.lane.b32.xlu0 %v4687, 56
      %v4769 = vpop.permute.xlu0 %4768
      %4770 = vrot.lane.b32.xlu0 %v4689, 56
      %v4771 = vpop.permute.xlu0 %4770
      %4772 = vrot.lane.b32.xlu0 %v4688, 56
      %v4773 = vpop.permute.xlu0 %4772
      %4774 = vrot.lane.b32.xlu0 %v4690, 56
      %v4775 = vpop.permute.xlu0 %4774
      %4776 = vrot.lane.b32.xlu0 %v4692, 56
      %v4777 = vpop.permute.xlu0 %4776
      %4778 = vrot.lane.b32.xlu0 %v4691, 56
      %v4779 = vpop.permute.xlu0 %4778
      %4780 = vrot.lane.b32.xlu0 %v4693, 56
      %v4781 = vpop.permute.xlu0 %4780
      %4782 = vrot.lane.b32.xlu0 %v4695, 56
      %v4783 = vpop.permute.xlu0 %4782
      %4784 = vrot.lane.b32.xlu0 %v4694, 56
      %v4785 = vpop.permute.xlu0 %4784
      %4786 = vrot.lane.b32.xlu0 %v4696, 56
      %v4787 = vpop.permute.xlu0 %4786
      %4788 = vrot.lane.b32.xlu0 %v4698, 56
      %v4789 = vpop.permute.xlu0 %4788
      %4790 = vrot.lane.b32.xlu0 %v4697, 56
      %v4791 = vpop.permute.xlu0 %4790
      %4792 = vrot.lane.b32.xlu0 %v4699, 56
      %v4793 = vpop.permute.xlu0 %4792
      %4794 = vrot.lane.b32.xlu0 %v4701, 56
      %v4795 = vpop.permute.xlu0 %4794
      %4796 = vrot.lane.b32.xlu0 %v4700, 56
      %v4797 = vpop.permute.xlu0 %4796
      %v4862 = vrot.slane %v3311, 2
      %v4863 = vrot.slane %v3312, 2
      %v4864 = vsel %vm771, %v4862, %v4863
      %v4865 = vrot.slane %v3313, 2
      %v4866 = vsel %vm771, %v4863, %v4865
      %v4867 = vrot.slane %v3315, 2
      %v4868 = vrot.slane %v3316, 2
      %v4869 = vsel %vm771, %v4867, %v4868
      %v4870 = vrot.slane %v3317, 2
      %v4871 = vsel %vm771, %v4868, %v4870
      %v4872 = vrot.slane %v3319, 2
      %v4873 = vrot.slane %v3320, 2
      %v4874 = vsel %vm771, %v4872, %v4873
      %v4875 = vrot.slane %v3321, 2
      %v4876 = vsel %vm771, %v4873, %v4875
      %v4877 = vrot.slane %v3323, 2
      %v4878 = vrot.slane %v3324, 2
      %v4879 = vsel %vm771, %v4877, %v4878
      %v4880 = vrot.slane %v3325, 2
      %v4881 = vsel %vm771, %v4878, %v4880
      %v4882 = vrot.slane %v3327, 2
      %v4883 = vrot.slane %v3328, 2
      %v4884 = vsel %vm771, %v4882, %v4883
      %v4885 = vrot.slane %v3329, 2
      %v4886 = vsel %vm771, %v4883, %v4885
      %v4887 = vrot.slane %v3331, 2
      %v4888 = vrot.slane %v3332, 2
      %v4889 = vsel %vm771, %v4887, %v4888
      %v4890 = vrot.slane %v3333, 2
      %v4891 = vsel %vm771, %v4888, %v4890
      %v4892 = vrot.slane %v3335, 2
      %v4893 = vrot.slane %v3336, 2
      %v4894 = vsel %vm771, %v4892, %v4893
      %v4895 = vrot.slane %v3337, 2
      %v4896 = vsel %vm771, %v4893, %v4895
      %v4897 = vrot.slane %v3339, 2
      %v4898 = vrot.slane %v3340, 2
      %v4899 = vsel %vm771, %v4897, %v4898
      %v4900 = vrot.slane %v3341, 2
      %v4901 = vsel %vm771, %v4898, %v4900
      %v4902 = vrot.slane %v3343, 2
      %v4903 = vrot.slane %v3344, 2
      %v4904 = vsel %vm771, %v4902, %v4903
      %v4905 = vrot.slane %v3345, 2
      %v4906 = vsel %vm771, %v4903, %v4905
      %v4907 = vrot.slane %v3347, 2
      %v4908 = vrot.slane %v3348, 2
      %v4909 = vsel %vm771, %v4907, %v4908
      %v4910 = vrot.slane %v3349, 2
      %v4911 = vsel %vm771, %v4908, %v4910
      %v4912 = vrot.slane %v3351, 2
      %v4913 = vrot.slane %v3352, 2
      %v4914 = vsel %vm771, %v4912, %v4913
      %v4915 = vrot.slane %v3353, 2
      %v4916 = vsel %vm771, %v4913, %v4915
      %v4917 = vrot.slane %v3355, 2
      %v4918 = vrot.slane %v3356, 2
      %v4919 = vsel %vm771, %v4917, %v4918
      %v4920 = vrot.slane %v3357, 2
      %v4921 = vsel %vm771, %v4918, %v4920
      %v4922 = vrot.slane %v3359, 2
      %v4923 = vrot.slane %v3360, 2
      %v4924 = vsel %vm771, %v4922, %v4923
      %v4925 = vrot.slane %v3361, 2
      %v4926 = vsel %vm771, %v4923, %v4925
      %v4927 = vrot.slane %v3363, 2
      %v4928 = vrot.slane %v3364, 2
      %v4929 = vsel %vm771, %v4927, %v4928
      %v4930 = vrot.slane %v3365, 2
      %v4931 = vsel %vm771, %v4928, %v4930
      %v4932 = vrot.slane %v3367, 2
      %v4933 = vrot.slane %v3368, 2
      %v4934 = vsel %vm771, %v4932, %v4933
      %v4935 = vrot.slane %v3369, 2
      %v4936 = vsel %vm771, %v4933, %v4935
      %v4937 = vrot.slane %v3371, 2
      %v4938 = vrot.slane %v3372, 2
      %v4939 = vsel %vm771, %v4937, %v4938
      %v4940 = vrot.slane %v3373, 2
      %v4941 = vsel %vm771, %v4938, %v4940
      %4942 = vrot.lane.b32.xlu0 %v4862, 64
      %v4943 = vpop.permute.xlu0 %4942
      %4944 = vrot.lane.b32.xlu0 %v4864, 64
      %v4945 = vpop.permute.xlu0 %4944
      %4946 = vrot.lane.b32.xlu0 %v4866, 64
      %v4947 = vpop.permute.xlu0 %4946
      %4948 = vrot.lane.b32.xlu0 %v4867, 64
      %v4949 = vpop.permute.xlu0 %4948
      %4950 = vrot.lane.b32.xlu0 %v4869, 64
      %v4951 = vpop.permute.xlu0 %4950
      %4952 = vrot.lane.b32.xlu0 %v4871, 64
      %v4953 = vpop.permute.xlu0 %4952
      %4954 = vrot.lane.b32.xlu0 %v4872, 64
      %v4955 = vpop.permute.xlu0 %4954
      %4956 = vrot.lane.b32.xlu0 %v4874, 64
      %v4957 = vpop.permute.xlu0 %4956
      %4958 = vrot.lane.b32.xlu0 %v4876, 64
      %v4959 = vpop.permute.xlu0 %4958
      %4960 = vrot.lane.b32.xlu0 %v4877, 64
      %v4961 = vpop.permute.xlu0 %4960
      %4962 = vrot.lane.b32.xlu0 %v4879, 64
      %v4963 = vpop.permute.xlu0 %4962
      %4964 = vrot.lane.b32.xlu0 %v4881, 64
      %v4965 = vpop.permute.xlu0 %4964
      %4966 = vrot.lane.b32.xlu0 %v4882, 64
      %v4967 = vpop.permute.xlu0 %4966
      %4968 = vrot.lane.b32.xlu0 %v4884, 64
      %v4969 = vpop.permute.xlu0 %4968
      %4970 = vrot.lane.b32.xlu0 %v4886, 64
      %v4971 = vpop.permute.xlu0 %4970
      %4972 = vrot.lane.b32.xlu0 %v4887, 64
      %v4973 = vpop.permute.xlu0 %4972
      %4974 = vrot.lane.b32.xlu0 %v4889, 64
      %v4975 = vpop.permute.xlu0 %4974
      %4976 = vrot.lane.b32.xlu0 %v4891, 64
      %v4977 = vpop.permute.xlu0 %4976
      %4978 = vrot.lane.b32.xlu0 %v4892, 64
      %v4979 = vpop.permute.xlu0 %4978
      %4980 = vrot.lane.b32.xlu0 %v4894, 64
      %v4981 = vpop.permute.xlu0 %4980
      %4982 = vrot.lane.b32.xlu0 %v4896, 64
      %v4983 = vpop.permute.xlu0 %4982
      %4984 = vrot.lane.b32.xlu0 %v4897, 64
      %v4985 = vpop.permute.xlu0 %4984
      %4986 = vrot.lane.b32.xlu0 %v4899, 64
      %v4987 = vpop.permute.xlu0 %4986
      %4988 = vrot.lane.b32.xlu0 %v4901, 64
      %v4989 = vpop.permute.xlu0 %4988
      %4990 = vrot.lane.b32.xlu0 %v4902, 64
      %v4991 = vpop.permute.xlu0 %4990
      %4992 = vrot.lane.b32.xlu0 %v4904, 64
      %v4993 = vpop.permute.xlu0 %4992
      %4994 = vrot.lane.b32.xlu0 %v4906, 64
      %v4995 = vpop.permute.xlu0 %4994
      %4996 = vrot.lane.b32.xlu0 %v4907, 64
      %v4997 = vpop.permute.xlu0 %4996
      %4998 = vrot.lane.b32.xlu0 %v4909, 64
      %v4999 = vpop.permute.xlu0 %4998
      %5000 = vrot.lane.b32.xlu0 %v4911, 64
      %v5001 = vpop.permute.xlu0 %5000
      %5002 = vrot.lane.b32.xlu0 %v4912, 64
      %v5003 = vpop.permute.xlu0 %5002
      %5004 = vrot.lane.b32.xlu0 %v4914, 64
      %v5005 = vpop.permute.xlu0 %5004
      %5006 = vrot.lane.b32.xlu0 %v4916, 64
      %v5007 = vpop.permute.xlu0 %5006
      %5008 = vrot.lane.b32.xlu0 %v4917, 64
      %v5009 = vpop.permute.xlu0 %5008
      %5010 = vrot.lane.b32.xlu0 %v4919, 64
      %v5011 = vpop.permute.xlu0 %5010
      %5012 = vrot.lane.b32.xlu0 %v4921, 64
      %v5013 = vpop.permute.xlu0 %5012
      %5014 = vrot.lane.b32.xlu0 %v4922, 64
      %v5015 = vpop.permute.xlu0 %5014
      %5016 = vrot.lane.b32.xlu0 %v4924, 64
      %v5017 = vpop.permute.xlu0 %5016
      %5018 = vrot.lane.b32.xlu0 %v4926, 64
      %v5019 = vpop.permute.xlu0 %5018
      %5020 = vrot.lane.b32.xlu0 %v4927, 64
      %v5021 = vpop.permute.xlu0 %5020
      %5022 = vrot.lane.b32.xlu0 %v4929, 64
      %v5023 = vpop.permute.xlu0 %5022
      %5024 = vrot.lane.b32.xlu0 %v4931, 64
      %v5025 = vpop.permute.xlu0 %5024
      %5026 = vrot.lane.b32.xlu0 %v4932, 64
      %v5027 = vpop.permute.xlu0 %5026
      %5028 = vrot.lane.b32.xlu0 %v4934, 64
      %v5029 = vpop.permute.xlu0 %5028
      %5030 = vrot.lane.b32.xlu0 %v4936, 64
      %v5031 = vpop.permute.xlu0 %5030
      %5032 = vrot.lane.b32.xlu0 %v4937, 64
      %v5033 = vpop.permute.xlu0 %5032
      %5034 = vrot.lane.b32.xlu0 %v4939, 64
      %v5035 = vpop.permute.xlu0 %5034
      %5036 = vrot.lane.b32.xlu0 %v4941, 64
      %v5037 = vpop.permute.xlu0 %5036
      %v5118 = vrot.slane %v225, 1
      %v5119 = vrot.slane %v226, 1
      %v5120 = vsel %vm562, %v5118, %v5119
      %v5121 = vrot.slane %v227, 1
      %v5122 = vrot.slane %v228, 1
      %v5123 = vsel %vm562, %v5121, %v5122
      %v5124 = vrot.slane %v229, 1
      %v5125 = vrot.slane %v230, 1
      %v5126 = vsel %vm562, %v5124, %v5125
      %v5127 = vrot.slane %v231, 1
      %v5128 = vrot.slane %v232, 1
      %v5129 = vsel %vm562, %v5127, %v5128
      %v5130 = vrot.slane %v233, 1
      %v5131 = vrot.slane %v234, 1
      %v5132 = vsel %vm562, %v5130, %v5131
      %v5133 = vrot.slane %v235, 1
      %v5134 = vrot.slane %v236, 1
      %v5135 = vsel %vm562, %v5133, %v5134
      %v5136 = vrot.slane %v237, 1
      %v5137 = vrot.slane %v238, 1
      %v5138 = vsel %vm562, %v5136, %v5137
      %v5139 = vrot.slane %v239, 1
      %v5140 = vrot.slane %v240, 1
      %v5141 = vsel %vm562, %v5139, %v5140
      %v5142 = vrot.slane %v241, 1
      %v5143 = vrot.slane %v242, 1
      %v5144 = vsel %vm562, %v5142, %v5143
      %v5145 = vrot.slane %v243, 1
      %v5146 = vrot.slane %v244, 1
      %v5147 = vsel %vm562, %v5145, %v5146
      %v5148 = vrot.slane %v245, 1
      %v5149 = vrot.slane %v246, 1
      %v5150 = vsel %vm562, %v5148, %v5149
      %v5151 = vrot.slane %v247, 1
      %v5152 = vrot.slane %v248, 1
      %v5153 = vsel %vm562, %v5151, %v5152
      %v5154 = vrot.slane %v249, 1
      %v5155 = vrot.slane %v250, 1
      %v5156 = vsel %vm562, %v5154, %v5155
      %v5157 = vrot.slane %v251, 1
      %v5158 = vrot.slane %v252, 1
      %v5159 = vsel %vm562, %v5157, %v5158
      %v5160 = vrot.slane %v253, 1
      %v5161 = vrot.slane %v254, 1
      %v5162 = vsel %vm562, %v5160, %v5161
      %v5163 = vrot.slane %v255, 1
      %v5164 = vrot.slane %v256, 1
      %v5165 = vsel %vm562, %v5163, %v5164
      %5166 = vrot.lane.b32.xlu0 %v5118, 72
      %v5167 = vpop.permute.xlu0 %5166
      %5168 = vrot.lane.b32.xlu0 %v5120, 72
      %v5169 = vpop.permute.xlu0 %5168
      %5170 = vrot.lane.b32.xlu0 %v5119, 72
      %v5171 = vpop.permute.xlu0 %5170
      %5172 = vrot.lane.b32.xlu0 %v5121, 72
      %v5173 = vpop.permute.xlu0 %5172
      %5174 = vrot.lane.b32.xlu0 %v5123, 72
      %v5175 = vpop.permute.xlu0 %5174
      %5176 = vrot.lane.b32.xlu0 %v5122, 72
      %v5177 = vpop.permute.xlu0 %5176
      %5178 = vrot.lane.b32.xlu0 %v5124, 72
      %v5179 = vpop.permute.xlu0 %5178
      %5180 = vrot.lane.b32.xlu0 %v5126, 72
      %v5181 = vpop.permute.xlu0 %5180
      %5182 = vrot.lane.b32.xlu0 %v5125, 72
      %v5183 = vpop.permute.xlu0 %5182
      %5184 = vrot.lane.b32.xlu0 %v5127, 72
      %v5185 = vpop.permute.xlu0 %5184
      %5186 = vrot.lane.b32.xlu0 %v5129, 72
      %v5187 = vpop.permute.xlu0 %5186
      %5188 = vrot.lane.b32.xlu0 %v5128, 72
      %v5189 = vpop.permute.xlu0 %5188
      %5190 = vrot.lane.b32.xlu0 %v5130, 72
      %v5191 = vpop.permute.xlu0 %5190
      %5192 = vrot.lane.b32.xlu0 %v5132, 72
      %v5193 = vpop.permute.xlu0 %5192
      %5194 = vrot.lane.b32.xlu0 %v5131, 72
      %v5195 = vpop.permute.xlu0 %5194
      %5196 = vrot.lane.b32.xlu0 %v5133, 72
      %v5197 = vpop.permute.xlu0 %5196
      %5198 = vrot.lane.b32.xlu0 %v5135, 72
      %v5199 = vpop.permute.xlu0 %5198
      %5200 = vrot.lane.b32.xlu0 %v5134, 72
      %v5201 = vpop.permute.xlu0 %5200
      %5202 = vrot.lane.b32.xlu0 %v5136, 72
      %v5203 = vpop.permute.xlu0 %5202
      %5204 = vrot.lane.b32.xlu0 %v5138, 72
      %v5205 = vpop.permute.xlu0 %5204
      %5206 = vrot.lane.b32.xlu0 %v5137, 72
      %v5207 = vpop.permute.xlu0 %5206
      %5208 = vrot.lane.b32.xlu0 %v5139, 72
      %v5209 = vpop.permute.xlu0 %5208
      %5210 = vrot.lane.b32.xlu0 %v5141, 72
      %v5211 = vpop.permute.xlu0 %5210
      %5212 = vrot.lane.b32.xlu0 %v5140, 72
      %v5213 = vpop.permute.xlu0 %5212
      %5214 = vrot.lane.b32.xlu0 %v5142, 72
      %v5215 = vpop.permute.xlu0 %5214
      %5216 = vrot.lane.b32.xlu0 %v5144, 72
      %v5217 = vpop.permute.xlu0 %5216
      %5218 = vrot.lane.b32.xlu0 %v5143, 72
      %v5219 = vpop.permute.xlu0 %5218
      %5220 = vrot.lane.b32.xlu0 %v5145, 72
      %v5221 = vpop.permute.xlu0 %5220
      %5222 = vrot.lane.b32.xlu0 %v5147, 72
      %v5223 = vpop.permute.xlu0 %5222
      %5224 = vrot.lane.b32.xlu0 %v5146, 72
      %v5225 = vpop.permute.xlu0 %5224
      %5226 = vrot.lane.b32.xlu0 %v5148, 72
      %v5227 = vpop.permute.xlu0 %5226
      %5228 = vrot.lane.b32.xlu0 %v5150, 72
      %v5229 = vpop.permute.xlu0 %5228
      %5230 = vrot.lane.b32.xlu0 %v5149, 72
      %v5231 = vpop.permute.xlu0 %5230
      %5232 = vrot.lane.b32.xlu0 %v5151, 72
      %v5233 = vpop.permute.xlu0 %5232
      %5234 = vrot.lane.b32.xlu0 %v5153, 72
      %v5235 = vpop.permute.xlu0 %5234
      %5236 = vrot.lane.b32.xlu0 %v5152, 72
      %v5237 = vpop.permute.xlu0 %5236
      %5238 = vrot.lane.b32.xlu0 %v5154, 72
      %v5239 = vpop.permute.xlu0 %5238
      %5240 = vrot.lane.b32.xlu0 %v5156, 72
      %v5241 = vpop.permute.xlu0 %5240
      %5242 = vrot.lane.b32.xlu0 %v5155, 72
      %v5243 = vpop.permute.xlu0 %5242
      %5244 = vrot.lane.b32.xlu0 %v5157, 72
      %v5245 = vpop.permute.xlu0 %5244
      %5246 = vrot.lane.b32.xlu0 %v5159, 72
      %v5247 = vpop.permute.xlu0 %5246
      %5248 = vrot.lane.b32.xlu0 %v5158, 72
      %v5249 = vpop.permute.xlu0 %5248
      %5250 = vrot.lane.b32.xlu0 %v5160, 72
      %v5251 = vpop.permute.xlu0 %5250
      %5252 = vrot.lane.b32.xlu0 %v5162, 72
      %v5253 = vpop.permute.xlu0 %5252
      %5254 = vrot.lane.b32.xlu0 %v5161, 72
      %v5255 = vpop.permute.xlu0 %5254
      %5256 = vrot.lane.b32.xlu0 %v5163, 72
      %v5257 = vpop.permute.xlu0 %5256
      %5258 = vrot.lane.b32.xlu0 %v5165, 72
      %v5259 = vpop.permute.xlu0 %5258
      %5260 = vrot.lane.b32.xlu0 %v5164, 72
      %v5261 = vpop.permute.xlu0 %5260
      %v5310 = vsel %vm2292, %v3181, %v3455
      %v5311 = vsel %vm2292, %v3182, %v3457
      %v5312 = vsel %vm2292, %v3183, %v3459
      %v5313 = vsel %vm2292, %v3185, %v3461
      %v5314 = vsel %vm2292, %v3186, %v3463
      %v5315 = vsel %vm2292, %v3187, %v3465
      %v5316 = vsel %vm2292, %v3189, %v3467
      %v5317 = vsel %vm2292, %v3190, %v3469
      %v5318 = vsel %vm2292, %v3191, %v3471
      %v5319 = vsel %vm2292, %v3193, %v3473
      %v5320 = vsel %vm2292, %v3194, %v3475
      %v5321 = vsel %vm2292, %v3195, %v3477
      %v5322 = vsel %vm2292, %v3197, %v3479
      %v5323 = vsel %vm2292, %v3198, %v3481
      %v5324 = vsel %vm2292, %v3199, %v3483
      %v5325 = vsel %vm2292, %v3201, %v3485
      %v5326 = vsel %vm2292, %v3202, %v3487
      %v5327 = vsel %vm2292, %v3203, %v3489
      %v5328 = vsel %vm2292, %v3205, %v3491
      %v5329 = vsel %vm2292, %v3206, %v3493
      %v5330 = vsel %vm2292, %v3207, %v3495
      %v5331 = vsel %vm2292, %v3209, %v3497
      %v5332 = vsel %vm2292, %v3210, %v3499
      %v5333 = vsel %vm2292, %v3211, %v3501
      %v5334 = vsel %vm2292, %v3213, %v3503
      %v5335 = vsel %vm2292, %v3214, %v3505
      %v5336 = vsel %vm2292, %v3215, %v3507
      %v5337 = vsel %vm2292, %v3217, %v3509
      %v5338 = vsel %vm2292, %v3218, %v3511
      %v5339 = vsel %vm2292, %v3219, %v3513
      %v5340 = vsel %vm2292, %v3221, %v3515
      %v5341 = vsel %vm2292, %v3222, %v3517
      %v5342 = vsel %vm2292, %v3223, %v3519
      %v5343 = vsel %vm2292, %v3225, %v3521
      %v5344 = vsel %vm2292, %v3226, %v3523
      %v5345 = vsel %vm2292, %v3227, %v3525
      %v5346 = vsel %vm2292, %v3229, %v3527
      %v5347 = vsel %vm2292, %v3230, %v3529
      %v5348 = vsel %vm2292, %v3231, %v3531
      %v5349 = vsel %vm2292, %v3233, %v3533
      %v5350 = vsel %vm2292, %v3234, %v3535
      %v5351 = vsel %vm2292, %v3235, %v3537
      %v5352 = vsel %vm2292, %v3237, %v3539
      %v5353 = vsel %vm2292, %v3238, %v3541
      %v5354 = vsel %vm2292, %v3239, %v3543
      %v5355 = vsel %vm2292, %v3241, %v3545
      %v5356 = vsel %vm2292, %v3242, %v3547
      %v5357 = vsel %vm2292, %v3243, %v3549
      %v5358 = vsel %vm2390, %v5310, %v3695
      %v5359 = vsel %vm2390, %v5311, %v3697
      %v5360 = vsel %vm2390, %v5312, %v3699
      %v5361 = vsel %vm2390, %v5313, %v3701
      %v5362 = vsel %vm2390, %v5314, %v3703
      %v5363 = vsel %vm2390, %v5315, %v3705
      %v5364 = vsel %vm2390, %v5316, %v3707
      %v5365 = vsel %vm2390, %v5317, %v3709
      %v5366 = vsel %vm2390, %v5318, %v3711
      %v5367 = vsel %vm2390, %v5319, %v3713
      %v5368 = vsel %vm2390, %v5320, %v3715
      %v5369 = vsel %vm2390, %v5321, %v3717
      %v5370 = vsel %vm2390, %v5322, %v3719
      %v5371 = vsel %vm2390, %v5323, %v3721
      %v5372 = vsel %vm2390, %v5324, %v3723
      %v5373 = vsel %vm2390, %v5325, %v3725
      %v5374 = vsel %vm2390, %v5326, %v3727
      %v5375 = vsel %vm2390, %v5327, %v3729
      %v5376 = vsel %vm2390, %v5328, %v3731
      %v5377 = vsel %vm2390, %v5329, %v3733
      %v5378 = vsel %vm2390, %v5330, %v3735
      %v5379 = vsel %vm2390, %v5331, %v3737
      %v5380 = vsel %vm2390, %v5332, %v3739
      %v5381 = vsel %vm2390, %v5333, %v3741
      %v5382 = vsel %vm2390, %v5334, %v3743
      %v5383 = vsel %vm2390, %v5335, %v3745
      %v5384 = vsel %vm2390, %v5336, %v3747
      %v5385 = vsel %vm2390, %v5337, %v3749
      %v5386 = vsel %vm2390, %v5338, %v3751
      %v5387 = vsel %vm2390, %v5339, %v3753
      %v5388 = vsel %vm2390, %v5340, %v3755
      %v5389 = vsel %vm2390, %v5341, %v3757
      %v5390 = vsel %vm2390, %v5342, %v3759
      %v5391 = vsel %vm2390, %v5343, %v3761
      %v5392 = vsel %vm2390, %v5344, %v3763
      %v5393 = vsel %vm2390, %v5345, %v3765
      %v5394 = vsel %vm2390, %v5346, %v3767
      %v5395 = vsel %vm2390, %v5347, %v3769
      %v5396 = vsel %vm2390, %v5348, %v3771
      %v5397 = vsel %vm2390, %v5349, %v3773
      %v5398 = vsel %vm2390, %v5350, %v3775
      %v5399 = vsel %vm2390, %v5351, %v3777
      %v5400 = vsel %vm2390, %v5352, %v3779
      %v5401 = vsel %vm2390, %v5353, %v3781
      %v5402 = vsel %vm2390, %v5354, %v3783
      %v5403 = vsel %vm2390, %v5355, %v3785
      %v5404 = vsel %vm2390, %v5356, %v3787
      %v5405 = vsel %vm2390, %v5357, %v3789
      %v5406 = vsel %vm2488, %v5358, %v3887
      %v5407 = vsel %vm2488, %v5359, %v3889
      %v5408 = vsel %vm2488, %v5360, %v3891
      %v5409 = vsel %vm2488, %v5361, %v3893
      %v5410 = vsel %vm2488, %v5362, %v3895
      %v5411 = vsel %vm2488, %v5363, %v3897
      %v5412 = vsel %vm2488, %v5364, %v3899
      %v5413 = vsel %vm2488, %v5365, %v3901
      %v5414 = vsel %vm2488, %v5366, %v3903
      %v5415 = vsel %vm2488, %v5367, %v3905
      %v5416 = vsel %vm2488, %v5368, %v3907
      %v5417 = vsel %vm2488, %v5369, %v3909
      %v5418 = vsel %vm2488, %v5370, %v3911
      %v5419 = vsel %vm2488, %v5371, %v3913
      %v5420 = vsel %vm2488, %v5372, %v3915
      %v5421 = vsel %vm2488, %v5373, %v3917
      %v5422 = vsel %vm2488, %v5374, %v3919
      %v5423 = vsel %vm2488, %v5375, %v3921
      %v5424 = vsel %vm2488, %v5376, %v3923
      %v5425 = vsel %vm2488, %v5377, %v3925
      %v5426 = vsel %vm2488, %v5378, %v3927
      %v5427 = vsel %vm2488, %v5379, %v3929
      %v5428 = vsel %vm2488, %v5380, %v3931
      %v5429 = vsel %vm2488, %v5381, %v3933
      %v5430 = vsel %vm2488, %v5382, %v3935
      %v5431 = vsel %vm2488, %v5383, %v3937
      %v5432 = vsel %vm2488, %v5384, %v3939
      %v5433 = vsel %vm2488, %v5385, %v3941
      %v5434 = vsel %vm2488, %v5386, %v3943
      %v5435 = vsel %vm2488, %v5387, %v3945
      %v5436 = vsel %vm2488, %v5388, %v3947
      %v5437 = vsel %vm2488, %v5389, %v3949
      %v5438 = vsel %vm2488, %v5390, %v3951
      %v5439 = vsel %vm2488, %v5391, %v3953
      %v5440 = vsel %vm2488, %v5392, %v3955
      %v5441 = vsel %vm2488, %v5393, %v3957
      %v5442 = vsel %vm2488, %v5394, %v3959
      %v5443 = vsel %vm2488, %v5395, %v3961
      %v5444 = vsel %vm2488, %v5396, %v3963
      %v5445 = vsel %vm2488, %v5397, %v3965
      %v5446 = vsel %vm2488, %v5398, %v3967
      %v5447 = vsel %vm2488, %v5399, %v3969
      %v5448 = vsel %vm2488, %v5400, %v3971
      %v5449 = vsel %vm2488, %v5401, %v3973
      %v5450 = vsel %vm2488, %v5402, %v3975
      %v5451 = vsel %vm2488, %v5403, %v3977
      %v5452 = vsel %vm2488, %v5404, %v3979
      %v5453 = vsel %vm2488, %v5405, %v3981
      %v5454 = vsel %vm2586, %v5406, %v4079
      %v5455 = vsel %vm2586, %v5407, %v4081
      %v5456 = vsel %vm2586, %v5408, %v4083
      %v5457 = vsel %vm2586, %v5409, %v4085
      %v5458 = vsel %vm2586, %v5410, %v4087
      %v5459 = vsel %vm2586, %v5411, %v4089
      %v5460 = vsel %vm2586, %v5412, %v4091
      %v5461 = vsel %vm2586, %v5413, %v4093
      %v5462 = vsel %vm2586, %v5414, %v4095
      %v5463 = vsel %vm2586, %v5415, %v4097
      %v5464 = vsel %vm2586, %v5416, %v4099
      %v5465 = vsel %vm2586, %v5417, %v4101
      %v5466 = vsel %vm2586, %v5418, %v4103
      %v5467 = vsel %vm2586, %v5419, %v4105
      %v5468 = vsel %vm2586, %v5420, %v4107
      %v5469 = vsel %vm2586, %v5421, %v4109
      %v5470 = vsel %vm2586, %v5422, %v4111
      %v5471 = vsel %vm2586, %v5423, %v4113
      %v5472 = vsel %vm2586, %v5424, %v4115
      %v5473 = vsel %vm2586, %v5425, %v4117
      %v5474 = vsel %vm2586, %v5426, %v4119
      %v5475 = vsel %vm2586, %v5427, %v4121
      %v5476 = vsel %vm2586, %v5428, %v4123
      %v5477 = vsel %vm2586, %v5429, %v4125
      %v5478 = vsel %vm2586, %v5430, %v4127
      %v5479 = vsel %vm2586, %v5431, %v4129
      %v5480 = vsel %vm2586, %v5432, %v4131
      %v5481 = vsel %vm2586, %v5433, %v4133
      %v5482 = vsel %vm2586, %v5434, %v4135
      %v5483 = vsel %vm2586, %v5435, %v4137
      %v5484 = vsel %vm2586, %v5436, %v4139
      %v5485 = vsel %vm2586, %v5437, %v4141
      %v5486 = vsel %vm2586, %v5438, %v4143
      %v5487 = vsel %vm2586, %v5439, %v4145
      %v5488 = vsel %vm2586, %v5440, %v4147
      %v5489 = vsel %vm2586, %v5441, %v4149
      %v5490 = vsel %vm2586, %v5442, %v4151
      %v5491 = vsel %vm2586, %v5443, %v4153
      %v5492 = vsel %vm2586, %v5444, %v4155
      %v5493 = vsel %vm2586, %v5445, %v4157
      %v5494 = vsel %vm2586, %v5446, %v4159
      %v5495 = vsel %vm2586, %v5447, %v4161
      %v5496 = vsel %vm2586, %v5448, %v4163
      %v5497 = vsel %vm2586, %v5449, %v4165
      %v5498 = vsel %vm2586, %v5450, %v4167
      %v5499 = vsel %vm2586, %v5451, %v4169
      %v5500 = vsel %vm2586, %v5452, %v4171
      %v5501 = vsel %vm2586, %v5453, %v4173
      %vm5502 = vcmask 326656
      %v5503 = vsel %vm5502, %v5454, %v4319
      %v5504 = vsel %vm5502, %v5455, %v4321
      %v5505 = vsel %vm5502, %v5456, %v4323
      %v5506 = vsel %vm5502, %v5457, %v4325
      %v5507 = vsel %vm5502, %v5458, %v4327
      %v5508 = vsel %vm5502, %v5459, %v4329
      %v5509 = vsel %vm5502, %v5460, %v4331
      %v5510 = vsel %vm5502, %v5461, %v4333
      %v5511 = vsel %vm5502, %v5462, %v4335
      %v5512 = vsel %vm5502, %v5463, %v4337
      %v5513 = vsel %vm5502, %v5464, %v4339
      %v5514 = vsel %vm5502, %v5465, %v4341
      %v5515 = vsel %vm5502, %v5466, %v4343
      %v5516 = vsel %vm5502, %v5467, %v4345
      %v5517 = vsel %vm5502, %v5468, %v4347
      %v5518 = vsel %vm5502, %v5469, %v4349
      %v5519 = vsel %vm5502, %v5470, %v4351
      %v5520 = vsel %vm5502, %v5471, %v4353
      %v5521 = vsel %vm5502, %v5472, %v4355
      %v5522 = vsel %vm5502, %v5473, %v4357
      %v5523 = vsel %vm5502, %v5474, %v4359
      %v5524 = vsel %vm5502, %v5475, %v4361
      %v5525 = vsel %vm5502, %v5476, %v4363
      %v5526 = vsel %vm5502, %v5477, %v4365
      %v5527 = vsel %vm5502, %v5478, %v4367
      %v5528 = vsel %vm5502, %v5479, %v4369
      %v5529 = vsel %vm5502, %v5480, %v4371
      %v5530 = vsel %vm5502, %v5481, %v4373
      %v5531 = vsel %vm5502, %v5482, %v4375
      %v5532 = vsel %vm5502, %v5483, %v4377
      %v5533 = vsel %vm5502, %v5484, %v4379
      %v5534 = vsel %vm5502, %v5485, %v4381
      %v5535 = vsel %vm5502, %v5486, %v4383
      %v5536 = vsel %vm5502, %v5487, %v4385
      %v5537 = vsel %vm5502, %v5488, %v4387
      %v5538 = vsel %vm5502, %v5489, %v4389
      %v5539 = vsel %vm5502, %v5490, %v4391
      %v5540 = vsel %vm5502, %v5491, %v4393
      %v5541 = vsel %vm5502, %v5492, %v4395
      %v5542 = vsel %vm5502, %v5493, %v4397
      %v5543 = vsel %vm5502, %v5494, %v4399
      %v5544 = vsel %vm5502, %v5495, %v4401
      %v5545 = vsel %vm5502, %v5496, %v4403
      %v5546 = vsel %vm5502, %v5497, %v4405
      %v5547 = vsel %vm5502, %v5498, %v4407
      %v5548 = vsel %vm5502, %v5499, %v4409
      %v5549 = vsel %vm5502, %v5500, %v4411
      %v5550 = vsel %vm5502, %v5501, %v4413
      %vm5551 = vcmask 392192
      %v5552 = vsel %vm5551, %v5503, %v4511
      %v5553 = vsel %vm5551, %v5504, %v4513
      %v5554 = vsel %vm5551, %v5505, %v4515
      %v5555 = vsel %vm5551, %v5506, %v4517
      %v5556 = vsel %vm5551, %v5507, %v4519
      %v5557 = vsel %vm5551, %v5508, %v4521
      %v5558 = vsel %vm5551, %v5509, %v4523
      %v5559 = vsel %vm5551, %v5510, %v4525
      %v5560 = vsel %vm5551, %v5511, %v4527
      %v5561 = vsel %vm5551, %v5512, %v4529
      %v5562 = vsel %vm5551, %v5513, %v4531
      %v5563 = vsel %vm5551, %v5514, %v4533
      %v5564 = vsel %vm5551, %v5515, %v4535
      %v5565 = vsel %vm5551, %v5516, %v4537
      %v5566 = vsel %vm5551, %v5517, %v4539
      %v5567 = vsel %vm5551, %v5518, %v4541
      %v5568 = vsel %vm5551, %v5519, %v4543
      %v5569 = vsel %vm5551, %v5520, %v4545
      %v5570 = vsel %vm5551, %v5521, %v4547
      %v5571 = vsel %vm5551, %v5522, %v4549
      %v5572 = vsel %vm5551, %v5523, %v4551
      %v5573 = vsel %vm5551, %v5524, %v4553
      %v5574 = vsel %vm5551, %v5525, %v4555
      %v5575 = vsel %vm5551, %v5526, %v4557
      %v5576 = vsel %vm5551, %v5527, %v4559
      %v5577 = vsel %vm5551, %v5528, %v4561
      %v5578 = vsel %vm5551, %v5529, %v4563
      %v5579 = vsel %vm5551, %v5530, %v4565
      %v5580 = vsel %vm5551, %v5531, %v4567
      %v5581 = vsel %vm5551, %v5532, %v4569
      %v5582 = vsel %vm5551, %v5533, %v4571
      %v5583 = vsel %vm5551, %v5534, %v4573
      %v5584 = vsel %vm5551, %v5535, %v4575
      %v5585 = vsel %vm5551, %v5536, %v4577
      %v5586 = vsel %vm5551, %v5537, %v4579
      %v5587 = vsel %vm5551, %v5538, %v4581
      %v5588 = vsel %vm5551, %v5539, %v4583
      %v5589 = vsel %vm5551, %v5540, %v4585
      %v5590 = vsel %vm5551, %v5541, %v4587
      %v5591 = vsel %vm5551, %v5542, %v4589
      %v5592 = vsel %vm5551, %v5543, %v4591
      %v5593 = vsel %vm5551, %v5544, %v4593
      %v5594 = vsel %vm5551, %v5545, %v4595
      %v5595 = vsel %vm5551, %v5546, %v4597
      %v5596 = vsel %vm5551, %v5547, %v4599
      %v5597 = vsel %vm5551, %v5548, %v4601
      %v5598 = vsel %vm5551, %v5549, %v4603
      %v5599 = vsel %vm5551, %v5550, %v4605
      %vm5600 = vcmask 457728
      %v5601 = vsel %vm5600, %v5552, %v4703
      %v5602 = vsel %vm5600, %v5553, %v4705
      %v5603 = vsel %vm5600, %v5554, %v4707
      %v5604 = vsel %vm5600, %v5555, %v4709
      %v5605 = vsel %vm5600, %v5556, %v4711
      %v5606 = vsel %vm5600, %v5557, %v4713
      %v5607 = vsel %vm5600, %v5558, %v4715
      %v5608 = vsel %vm5600, %v5559, %v4717
      %v5609 = vsel %vm5600, %v5560, %v4719
      %v5610 = vsel %vm5600, %v5561, %v4721
      %v5611 = vsel %vm5600, %v5562, %v4723
      %v5612 = vsel %vm5600, %v5563, %v4725
      %v5613 = vsel %vm5600, %v5564, %v4727
      %v5614 = vsel %vm5600, %v5565, %v4729
      %v5615 = vsel %vm5600, %v5566, %v4731
      %v5616 = vsel %vm5600, %v5567, %v4733
      %v5617 = vsel %vm5600, %v5568, %v4735
      %v5618 = vsel %vm5600, %v5569, %v4737
      %v5619 = vsel %vm5600, %v5570, %v4739
      %v5620 = vsel %vm5600, %v5571, %v4741
      %v5621 = vsel %vm5600, %v5572, %v4743
      %v5622 = vsel %vm5600, %v5573, %v4745
      %v5623 = vsel %vm5600, %v5574, %v4747
      %v5624 = vsel %vm5600, %v5575, %v4749
      %v5625 = vsel %vm5600, %v5576, %v4751
      %v5626 = vsel %vm5600, %v5577, %v4753
      %v5627 = vsel %vm5600, %v5578, %v4755
      %v5628 = vsel %vm5600, %v5579, %v4757
      %v5629 = vsel %vm5600, %v5580, %v4759
      %v5630 = vsel %vm5600, %v5581, %v4761
      %v5631 = vsel %vm5600, %v5582, %v4763
      %v5632 = vsel %vm5600, %v5583, %v4765
      %v5633 = vsel %vm5600, %v5584, %v4767
      %v5634 = vsel %vm5600, %v5585, %v4769
      %v5635 = vsel %vm5600, %v5586, %v4771
      %v5636 = vsel %vm5600, %v5587, %v4773
      %v5637 = vsel %vm5600, %v5588, %v4775
      %v5638 = vsel %vm5600, %v5589, %v4777
      %v5639 = vsel %vm5600, %v5590, %v4779
      %v5640 = vsel %vm5600, %v5591, %v4781
      %v5641 = vsel %vm5600, %v5592, %v4783
      %v5642 = vsel %vm5600, %v5593, %v4785
      %v5643 = vsel %vm5600, %v5594, %v4787
      %v5644 = vsel %vm5600, %v5595, %v4789
      %v5645 = vsel %vm5600, %v5596, %v4791
      %v5646 = vsel %vm5600, %v5597, %v4793
      %v5647 = vsel %vm5600, %v5598, %v4795
      %v5648 = vsel %vm5600, %v5599, %v4797
      %vm5649 = vcmask 523264
      %v5650 = vsel %vm5649, %v5601, %v4943
      %v5651 = vsel %vm5649, %v5602, %v4945
      %v5652 = vsel %vm5649, %v5603, %v4947
      %v5653 = vsel %vm5649, %v5604, %v4949
      %v5654 = vsel %vm5649, %v5605, %v4951
      %v5655 = vsel %vm5649, %v5606, %v4953
      %v5656 = vsel %vm5649, %v5607, %v4955
      %v5657 = vsel %vm5649, %v5608, %v4957
      %v5658 = vsel %vm5649, %v5609, %v4959
      %v5659 = vsel %vm5649, %v5610, %v4961
      %v5660 = vsel %vm5649, %v5611, %v4963
      %v5661 = vsel %vm5649, %v5612, %v4965
      %v5662 = vsel %vm5649, %v5613, %v4967
      %v5663 = vsel %vm5649, %v5614, %v4969
      %v5664 = vsel %vm5649, %v5615, %v4971
      %v5665 = vsel %vm5649, %v5616, %v4973
      %v5666 = vsel %vm5649, %v5617, %v4975
      %v5667 = vsel %vm5649, %v5618, %v4977
      %v5668 = vsel %vm5649, %v5619, %v4979
      %v5669 = vsel %vm5649, %v5620, %v4981
      %v5670 = vsel %vm5649, %v5621, %v4983
      %v5671 = vsel %vm5649, %v5622, %v4985
      %v5672 = vsel %vm5649, %v5623, %v4987
      %v5673 = vsel %vm5649, %v5624, %v4989
      %v5674 = vsel %vm5649, %v5625, %v4991
      %v5675 = vsel %vm5649, %v5626, %v4993
      %v5676 = vsel %vm5649, %v5627, %v4995
      %v5677 = vsel %vm5649, %v5628, %v4997
      %v5678 = vsel %vm5649, %v5629, %v4999
      %v5679 = vsel %vm5649, %v5630, %v5001
      %v5680 = vsel %vm5649, %v5631, %v5003
      %v5681 = vsel %vm5649, %v5632, %v5005
      %v5682 = vsel %vm5649, %v5633, %v5007
      %v5683 = vsel %vm5649, %v5634, %v5009
      %v5684 = vsel %vm5649, %v5635, %v5011
      %v5685 = vsel %vm5649, %v5636, %v5013
      %v5686 = vsel %vm5649, %v5637, %v5015
      %v5687 = vsel %vm5649, %v5638, %v5017
      %v5688 = vsel %vm5649, %v5639, %v5019
      %v5689 = vsel %vm5649, %v5640, %v5021
      %v5690 = vsel %vm5649, %v5641, %v5023
      %v5691 = vsel %vm5649, %v5642, %v5025
      %v5692 = vsel %vm5649, %v5643, %v5027
      %v5693 = vsel %vm5649, %v5644, %v5029
      %v5694 = vsel %vm5649, %v5645, %v5031
      %v5695 = vsel %vm5649, %v5646, %v5033
      %v5696 = vsel %vm5649, %v5647, %v5035
      %v5697 = vsel %vm5649, %v5648, %v5037
      %vm5698 = vcmask 588800
      %v5699 = vsel %vm5698, %v5650, %v5167
      %v5700 = vsel %vm5698, %v5651, %v5169
      %v5701 = vsel %vm5698, %v5652, %v5171
      %v5702 = vsel %vm5698, %v5653, %v5173
      %v5703 = vsel %vm5698, %v5654, %v5175
      %v5704 = vsel %vm5698, %v5655, %v5177
      %v5705 = vsel %vm5698, %v5656, %v5179
      %v5706 = vsel %vm5698, %v5657, %v5181
      %v5707 = vsel %vm5698, %v5658, %v5183
      %v5708 = vsel %vm5698, %v5659, %v5185
      %v5709 = vsel %vm5698, %v5660, %v5187
      %v5710 = vsel %vm5698, %v5661, %v5189
      %v5711 = vsel %vm5698, %v5662, %v5191
      %v5712 = vsel %vm5698, %v5663, %v5193
      %v5713 = vsel %vm5698, %v5664, %v5195
      %v5714 = vsel %vm5698, %v5665, %v5197
      %v5715 = vsel %vm5698, %v5666, %v5199
      %v5716 = vsel %vm5698, %v5667, %v5201
      %v5717 = vsel %vm5698, %v5668, %v5203
      %v5718 = vsel %vm5698, %v5669, %v5205
      %v5719 = vsel %vm5698, %v5670, %v5207
      %v5720 = vsel %vm5698, %v5671, %v5209
      %v5721 = vsel %vm5698, %v5672, %v5211
      %v5722 = vsel %vm5698, %v5673, %v5213
      %v5723 = vsel %vm5698, %v5674, %v5215
      %v5724 = vsel %vm5698, %v5675, %v5217
      %v5725 = vsel %vm5698, %v5676, %v5219
      %v5726 = vsel %vm5698, %v5677, %v5221
      %v5727 = vsel %vm5698, %v5678, %v5223
      %v5728 = vsel %vm5698, %v5679, %v5225
      %v5729 = vsel %vm5698, %v5680, %v5227
      %v5730 = vsel %vm5698, %v5681, %v5229
      %v5731 = vsel %vm5698, %v5682, %v5231
      %v5732 = vsel %vm5698, %v5683, %v5233
      %v5733 = vsel %vm5698, %v5684, %v5235
      %v5734 = vsel %vm5698, %v5685, %v5237
      %v5735 = vsel %vm5698, %v5686, %v5239
      %v5736 = vsel %vm5698, %v5687, %v5241
      %v5737 = vsel %vm5698, %v5688, %v5243
      %v5738 = vsel %vm5698, %v5689, %v5245
      %v5739 = vsel %vm5698, %v5690, %v5247
      %v5740 = vsel %vm5698, %v5691, %v5249
      %v5741 = vsel %vm5698, %v5692, %v5251
      %v5742 = vsel %vm5698, %v5693, %v5253
      %v5743 = vsel %vm5698, %v5694, %v5255
      %v5744 = vsel %vm5698, %v5695, %v5257
      %v5745 = vsel %vm5698, %v5696, %v5259
      %v5746 = vsel %vm5698, %v5697, %v5261
      %v5795 = vrot.slane %v5699, 7
      %v5796 = vrot.slane %v5700, 7
      %v5797 = vsel %vm2683, %v5795, %v5796
      %v5798 = vrot.slane %v5701, 7
      %v5799 = vsel %vm2683, %v5796, %v5798
      %v5800 = vrot.slane %v5702, 7
      %v5801 = vrot.slane %v5703, 7
      %v5802 = vsel %vm2683, %v5800, %v5801
      %v5803 = vrot.slane %v5704, 7
      %v5804 = vsel %vm2683, %v5801, %v5803
      %v5805 = vrot.slane %v5705, 7
      %v5806 = vrot.slane %v5706, 7
      %v5807 = vsel %vm2683, %v5805, %v5806
      %v5808 = vrot.slane %v5707, 7
      %v5809 = vsel %vm2683, %v5806, %v5808
      %v5810 = vrot.slane %v5708, 7
      %v5811 = vrot.slane %v5709, 7
      %v5812 = vsel %vm2683, %v5810, %v5811
      %v5813 = vrot.slane %v5710, 7
      %v5814 = vsel %vm2683, %v5811, %v5813
      %v5815 = vrot.slane %v5711, 7
      %v5816 = vrot.slane %v5712, 7
      %v5817 = vsel %vm2683, %v5815, %v5816
      %v5818 = vrot.slane %v5713, 7
      %v5819 = vsel %vm2683, %v5816, %v5818
      %v5820 = vrot.slane %v5714, 7
      %v5821 = vrot.slane %v5715, 7
      %v5822 = vsel %vm2683, %v5820, %v5821
      %v5823 = vrot.slane %v5716, 7
      %v5824 = vsel %vm2683, %v5821, %v5823
      %v5825 = vrot.slane %v5717, 7
      %v5826 = vrot.slane %v5718, 7
      %v5827 = vsel %vm2683, %v5825, %v5826
      %v5828 = vrot.slane %v5719, 7
      %v5829 = vsel %vm2683, %v5826, %v5828
      %v5830 = vrot.slane %v5720, 7
      %v5831 = vrot.slane %v5721, 7
      %v5832 = vsel %vm2683, %v5830, %v5831
      %v5833 = vrot.slane %v5722, 7
      %v5834 = vsel %vm2683, %v5831, %v5833
      %v5835 = vrot.slane %v5723, 7
      %v5836 = vrot.slane %v5724, 7
      %v5837 = vsel %vm2683, %v5835, %v5836
      %v5838 = vrot.slane %v5725, 7
      %v5839 = vsel %vm2683, %v5836, %v5838
      %v5840 = vrot.slane %v5726, 7
      %v5841 = vrot.slane %v5727, 7
      %v5842 = vsel %vm2683, %v5840, %v5841
      %v5843 = vrot.slane %v5728, 7
      %v5844 = vsel %vm2683, %v5841, %v5843
      %v5845 = vrot.slane %v5729, 7
      %v5846 = vrot.slane %v5730, 7
      %v5847 = vsel %vm2683, %v5845, %v5846
      %v5848 = vrot.slane %v5731, 7
      %v5849 = vsel %vm2683, %v5846, %v5848
      %v5850 = vrot.slane %v5732, 7
      %v5851 = vrot.slane %v5733, 7
      %v5852 = vsel %vm2683, %v5850, %v5851
      %v5853 = vrot.slane %v5734, 7
      %v5854 = vsel %vm2683, %v5851, %v5853
      %v5855 = vrot.slane %v5735, 7
      %v5856 = vrot.slane %v5736, 7
      %v5857 = vsel %vm2683, %v5855, %v5856
      %v5858 = vrot.slane %v5737, 7
      %v5859 = vsel %vm2683, %v5856, %v5858
      %v5860 = vrot.slane %v5738, 7
      %v5861 = vrot.slane %v5739, 7
      %v5862 = vsel %vm2683, %v5860, %v5861
      %v5863 = vrot.slane %v5740, 7
      %v5864 = vsel %vm2683, %v5861, %v5863
      %v5865 = vrot.slane %v5741, 7
      %v5866 = vrot.slane %v5742, 7
      %v5867 = vsel %vm2683, %v5865, %v5866
      %v5868 = vrot.slane %v5743, 7
      %v5869 = vsel %vm2683, %v5866, %v5868
      %v5870 = vrot.slane %v5744, 7
      %v5871 = vrot.slane %v5745, 7
      %v5872 = vsel %vm2683, %v5870, %v5871
      %v5873 = vrot.slane %v5746, 7
      %v5874 = vsel %vm2683, %v5871, %v5873
      %v5875 = vld [vmem:[%s3] sm:$0xff]
      %v5876 = vld [vmem:[%s3 + $0x8] sm:$0xff]
      %v5877 = vld [vmem:[%s3 + $0x10] sm:$0xff]
      %v5878 = vld [vmem:[%s3 + $0x18] sm:$0xff]
      %v5879 = vld [vmem:[%s3 + $0x20] sm:$0xff]
      %v5880 = vld [vmem:[%s3 + $0x28] sm:$0xff]
      %v5881 = vld [vmem:[%s3 + $0x30] sm:$0xff]
      %v5882 = vld [vmem:[%s3 + $0x38] sm:$0xff]
      %v5883 = vld [vmem:[%s3 + $0x40] sm:$0xff]
      %v5884 = vld [vmem:[%s3 + $0x48] sm:$0xf]
      %v5885 = vld [vmem:[%s4] sm:$0x1]
      %v5887 = vlaneseq
      %v5888 = vshrl.u32 %v5887, 7
      %v5889 = vsub.s32 0, %v5888
      %v5890 = vrot.slane %v5885, %v5889
      %vm5892 = vcmask 621568
      %v5893 = vsel %vm5892, %v5797, 0
      %v5895 = vsel %vm5892, %v5799, 0
      %v5897 = vsel %vm5892, %v5802, 0
      %v5899 = vsel %vm5892, %v5804, 0
      %v5901 = vsel %vm5892, %v5807, 0
      %v5903 = vsel %vm5892, %v5809, 0
      %v5905 = vsel %vm5892, %v5812, 0
      %v5907 = vsel %vm5892, %v5814, 0
      %v5909 = vsel %vm5892, %v5817, 0
      %v5911 = vsel %vm5892, %v5819, 0
      %v5913 = vsel %vm5892, %v5822, 0
      %v5915 = vsel %vm5892, %v5824, 0
      %v5917 = vsel %vm5892, %v5827, 0
      %v5919 = vsel %vm5892, %v5829, 0
      %v5921 = vsel %vm5892, %v5832, 0
      %v5923 = vsel %vm5892, %v5834, 0
      %v5925 = vsel %vm5892, %v5837, 0
      %v5927 = vsel %vm5892, %v5839, 0
      %v5929 = vsel %vm5892, %v5842, 0
      %v5931 = vsel %vm5892, %v5844, 0
      %v5933 = vsel %vm5892, %v5847, 0
      %v5935 = vsel %vm5892, %v5849, 0
      %v5937 = vsel %vm5892, %v5852, 0
      %v5939 = vsel %vm5892, %v5854, 0
      %v5941 = vsel %vm5892, %v5857, 0
      %v5943 = vsel %vm5892, %v5859, 0
      %v5945 = vsel %vm5892, %v5862, 0
      %v5947 = vsel %vm5892, %v5864, 0
      %v5949 = vsel %vm5892, %v5867, 0
      %v5951 = vsel %vm5892, %v5869, 0
      %v5953 = vsel %vm5892, %v5872, 0
      %v5955 = vsel %vm5892, %v5874, 0
      %v5958 = vsel %vm2841, %v5884, 0
      %5960 = vmatprep.subr.mxu0 0.0
      %5961 = vmatpush1.msra.mxu0 %v5875
      %5962 = vmatprep.subr.mxu0 0.0
      %5963 = vmatpush1.msra.mxu0 %v5876
      %5964 = vmatprep.subr.mxu0 0.0
      %5965 = vmatpush1.msra.mxu0 %v5877
      %5966 = vmatprep.subr.mxu0 0.0
      %5967 = vmatpush1.msra.mxu0 %v5878
      %5968 = vmatprep.subr.mxu0 0.0
      %5969 = vmatpush1.msra.mxu0 %v5879
      %5970 = vmatprep.subr.mxu0 0.0
      %5971 = vmatpush1.msra.mxu0 %v5880
      %5972 = vmatprep.subr.mxu0 0.0
      %5973 = vmatpush1.msra.mxu0 %v5881
      %5974 = vmatprep.subr.mxu0 0.0
      %5975 = vmatpush1.msra.mxu0 %v5882
      %5976 = vmatprep.subr.mxu0 0.0
      %5977 = vmatpush1.msra.mxu0 %v5883
      %5978 = vmatprep.subr.mxu0 0.0
      %5979 = vmatpush1.msra.mxu0 %v5958
      %5980 = vmatprep.subr.mxu0 0.0
      %5981 = vmatpush1.msra.mxu0 0.0
      %5982 = vmatprep.subr.mxu0 0.0
      %5983 = vmatpush1.msra.mxu0 0.0
      %5984 = vmatprep.subr.mxu0 0.0
      %5985 = vmatpush1.msra.mxu0 0.0
      %5986 = vmatprep.subr.mxu0 0.0
      %5987 = vmatpush1.msra.mxu0 0.0
      %5988 = vmatprep.subr.mxu0 0.0
      %5989 = vmatpush1.msra.mxu0 0.0
      %5990 = vmatprep.subr.mxu0 0.0
      %5991 = vmatpush1.msra.mxu0 0.0
      %5992 = vmatprep.subr.mxu0 0.0
      %5993 = vmatpush1.msra.mxu0 0.0
      %5994 = vmatprep.subr.mxu0 0.0
      %5995 = vmatpush1.msra.mxu0 0.0
      %5996 = vmatprep.subr.mxu0 0.0
      %5997 = vmatpush1.msra.mxu0 0.0
      %5998 = vmatprep.subr.mxu0 0.0
      %5999 = vmatpush1.msra.mxu0 0.0
      %6000 = vmatprep.subr.mxu0 0.0
      %6001 = vmatpush1.msra.mxu0 0.0
      %6002 = vmatprep.subr.mxu0 0.0
      %6003 = vmatpush1.msra.mxu0 0.0
      %6004 = vmatprep.subr.mxu0 0.0
      %6005 = vmatpush1.msra.mxu0 0.0
      %6006 = vmatprep.subr.mxu0 0.0
      %6007 = vmatpush1.msra.mxu0 0.0
      %6008 = vmatprep.subr.mxu0 0.0
      %6009 = vmatpush1.msra.mxu0 0.0
      %6010 = vmatprep.subr.mxu0 0.0
      %6011 = vmatpush1.msra.mxu0 0.0
      %6012 = vmatprep.subr.mxu0 0.0
      %6013 = vmatpush1.msra.mxu0 0.0
      %6014 = vmatprep.subr.mxu0 0.0
      %6015 = vmatpush1.msra.mxu0 0.0
      %6016 = vmatprep.subr.mxu0 0.0
      %6017 = vmatpush1.msra.mxu0 0.0
      %6018 = vmatprep.subr.mxu0 0.0
      %6019 = vmatpush1.msra.mxu0 0.0
      %6020 = vmatprep.subr.mxu0 0.0
      %6021 = vmatpush1.msra.mxu0 0.0
      %6022 = vmatprep.subr.mxu0 0.0
      %6023 = vmatpush1.msra.mxu0 0.0
      %6024 = vmatprep.mubr.f32.mxu0 0.0
      %6025 = vmatmul.mubr.f32.gmra.mrb[0].mxu0 %v5893
      %v6026 = vpop.f32.mrb[0].mxu0
      %v6027 = vadd.f32 %v5890, %v6026
      %v6028 = vpop.f32.mrb[0].mxu0
      %6029 = vmatprep.mubr.f32.mxu0 0.0
      %6030 = vmatmul.mubr.f32.gmra.mrb[0].mxu0 %v5895
      %v6031 = vpop.f32.mrb[0].mxu0
      %v6032 = vadd.f32 %v5890, %v6031
      %v6033 = vpop.f32.mrb[0].mxu0
      %6034 = vmatprep.mubr.f32.mxu0 0.0
      %6035 = vmatmul.mubr.f32.gmra.mrb[0].mxu0 %v5897
      %v6036 = vpop.f32.mrb[0].mxu0
      %v6037 = vadd.f32 %v5890, %v6036
      %v6038 = vpop.f32.mrb[0].mxu0
      %6039 = vmatprep.mubr.f32.mxu0 0.0
      %6040 = vmatmul.mubr.f32.gmra.mrb[0].mxu0 %v5899
      %v6041 = vpop.f32.mrb[0].mxu0
      %v6042 = vadd.f32 %v5890, %v6041
      %v6043 = vpop.f32.mrb[0].mxu0
      %6044 = vmatprep.mubr.f32.mxu0 0.0
      %6045 = vmatmul.mubr.f32.gmra.mrb[0].mxu0 %v5901
      %v6046 = vpop.f32.mrb[0].mxu0
      %v6047 = vadd.f32 %v5890, %v6046
      %v6048 = vpop.f32.mrb[0].mxu0
      %6049 = vmatprep.mubr.f32.mxu0 0.0
      %6050 = vmatmul.mubr.f32.gmra.mrb[0].mxu0 %v5903
      %v6051 = vpop.f32.mrb[0].mxu0
      %v6052 = vadd.f32 %v5890, %v6051
      %v6053 = vpop.f32.mrb[0].mxu0
      %6054 = vmatprep.mubr.f32.mxu0 0.0
      %6055 = vmatmul.mubr.f32.gmra.mrb[0].mxu0 %v5905
      %v6056 = vpop.f32.mrb[0].mxu0
      %v6057 = vadd.f32 %v5890, %v6056
      %v6058 = vpop.f32.mrb[0].mxu0
      %6059 = vmatprep.mubr.f32.mxu0 0.0
      %6060 = vmatmul.mubr.f32.gmra.mrb[0].mxu0 %v5907
      %v6061 = vpop.f32.mrb[0].mxu0
      %v6062 = vadd.f32 %v5890, %v6061
      %v6063 = vpop.f32.mrb[0].mxu0
      %6064 = vmatprep.mubr.f32.mxu0 0.0
      %6065 = vmatmul.mubr.f32.gmra.mrb[0].mxu0 %v5909
      %v6066 = vpop.f32.mrb[0].mxu0
      %v6067 = vadd.f32 %v5890, %v6066
      %v6068 = vpop.f32.mrb[0].mxu0
      %6069 = vmatprep.mubr.f32.mxu0 0.0
      %6070 = vmatmul.mubr.f32.gmra.mrb[0].mxu0 %v5911
      %v6071 = vpop.f32.mrb[0].mxu0
      %v6072 = vadd.f32 %v5890, %v6071
      %v6073 = vpop.f32.mrb[0].mxu0
      %6074 = vmatprep.mubr.f32.mxu0 0.0
      %6075 = vmatmul.mubr.f32.gmra.mrb[0].mxu0 %v5913
      %v6076 = vpop.f32.mrb[0].mxu0
      %v6077 = vadd.f32 %v5890, %v6076
      %v6078 = vpop.f32.mrb[0].mxu0
      %6079 = vmatprep.mubr.f32.mxu0 0.0
      %6080 = vmatmul.mubr.f32.gmra.mrb[0].mxu0 %v5915
      %v6081 = vpop.f32.mrb[0].mxu0
      %v6082 = vadd.f32 %v5890, %v6081
      %v6083 = vpop.f32.mrb[0].mxu0
      %6084 = vmatprep.mubr.f32.mxu0 0.0
      %6085 = vmatmul.mubr.f32.gmra.mrb[0].mxu0 %v5917
      %v6086 = vpop.f32.mrb[0].mxu0
      %v6087 = vadd.f32 %v5890, %v6086
      %v6088 = vpop.f32.mrb[0].mxu0
      %6089 = vmatprep.mubr.f32.mxu0 0.0
      %6090 = vmatmul.mubr.f32.gmra.mrb[0].mxu0 %v5919
      %v6091 = vpop.f32.mrb[0].mxu0
      %v6092 = vadd.f32 %v5890, %v6091
      %v6093 = vpop.f32.mrb[0].mxu0
      %6094 = vmatprep.mubr.f32.mxu0 0.0
      %6095 = vmatmul.mubr.f32.gmra.mrb[0].mxu0 %v5921
      %v6096 = vpop.f32.mrb[0].mxu0
      %v6097 = vadd.f32 %v5890, %v6096
      %v6098 = vpop.f32.mrb[0].mxu0
      %6099 = vmatprep.mubr.f32.mxu0 0.0
      %6100 = vmatmul.mubr.f32.gmra.mrb[0].mxu0 %v5923
      %v6101 = vpop.f32.mrb[0].mxu0
      %v6102 = vadd.f32 %v5890, %v6101
      %v6103 = vpop.f32.mrb[0].mxu0
      %6104 = vmatprep.mubr.f32.mxu0 0.0
      %6105 = vmatmul.mubr.f32.gmra.mrb[0].mxu0 %v5925
      %v6106 = vpop.f32.mrb[0].mxu0
      %v6107 = vadd.f32 %v5890, %v6106
      %v6108 = vpop.f32.mrb[0].mxu0
      %6109 = vmatprep.mubr.f32.mxu0 0.0
      %6110 = vmatmul.mubr.f32.gmra.mrb[0].mxu0 %v5927
      %v6111 = vpop.f32.mrb[0].mxu0
      %v6112 = vadd.f32 %v5890, %v6111
      %v6113 = vpop.f32.mrb[0].mxu0
      %6114 = vmatprep.mubr.f32.mxu0 0.0
      %6115 = vmatmul.mubr.f32.gmra.mrb[0].mxu0 %v5929
      %v6116 = vpop.f32.mrb[0].mxu0
      %v6117 = vadd.f32 %v5890, %v6116
      %v6118 = vpop.f32.mrb[0].mxu0
      %6119 = vmatprep.mubr.f32.mxu0 0.0
      %6120 = vmatmul.mubr.f32.gmra.mrb[0].mxu0 %v5931
      %v6121 = vpop.f32.mrb[0].mxu0
      %v6122 = vadd.f32 %v5890, %v6121
      %v6123 = vpop.f32.mrb[0].mxu0
      %6124 = vmatprep.mubr.f32.mxu0 0.0
      %6125 = vmatmul.mubr.f32.gmra.mrb[0].mxu0 %v5933
      %v6126 = vpop.f32.mrb[0].mxu0
      %v6127 = vadd.f32 %v5890, %v6126
      %v6128 = vpop.f32.mrb[0].mxu0
      %6129 = vmatprep.mubr.f32.mxu0 0.0
      %6130 = vmatmul.mubr.f32.gmra.mrb[0].mxu0 %v5935
      %v6131 = vpop.f32.mrb[0].mxu0
      %v6132 = vadd.f32 %v5890, %v6131
      %v6133 = vpop.f32.mrb[0].mxu0
      %6134 = vmatprep.mubr.f32.mxu0 0.0
      %6135 = vmatmul.mubr.f32.gmra.mrb[0].mxu0 %v5937
      %v6136 = vpop.f32.mrb[0].mxu0
      %v6137 = vadd.f32 %v5890, %v6136
      %v6138 = vpop.f32.mrb[0].mxu0
      %6139 = vmatprep.mubr.f32.mxu0 0.0
      %6140 = vmatmul.mubr.f32.gmra.mrb[0].mxu0 %v5939
      %v6141 = vpop.f32.mrb[0].mxu0
      %v6142 = vadd.f32 %v5890, %v6141
      %v6143 = vpop.f32.mrb[0].mxu0
      %6144 = vmatprep.mubr.f32.mxu0 0.0
      %6145 = vmatmul.mubr.f32.gmra.mrb[0].mxu0 %v5941
      %v6146 = vpop.f32.mrb[0].mxu0
      %v6147 = vadd.f32 %v5890, %v6146
      %v6148 = vpop.f32.mrb[0].mxu0
      %6149 = vmatprep.mubr.f32.mxu0 0.0
      %6150 = vmatmul.mubr.f32.gmra.mrb[0].mxu0 %v5943
      %v6151 = vpop.f32.mrb[0].mxu0
      %v6152 = vadd.f32 %v5890, %v6151
      %v6153 = vpop.f32.mrb[0].mxu0
      %6154 = vmatprep.mubr.f32.mxu0 0.0
      %6155 = vmatmul.mubr.f32.gmra.mrb[0].mxu0 %v5945
      %v6156 = vpop.f32.mrb[0].mxu0
      %v6157 = vadd.f32 %v5890, %v6156
      %v6158 = vpop.f32.mrb[0].mxu0
      %6159 = vmatprep.mubr.f32.mxu0 0.0
      %6160 = vmatmul.mubr.f32.gmra.mrb[0].mxu0 %v5947
      %v6161 = vpop.f32.mrb[0].mxu0
      %v6162 = vadd.f32 %v5890, %v6161
      %v6163 = vpop.f32.mrb[0].mxu0
      %6164 = vmatprep.mubr.f32.mxu0 0.0
      %6165 = vmatmul.mubr.f32.gmra.mrb[0].mxu0 %v5949
      %v6166 = vpop.f32.mrb[0].mxu0
      %v6167 = vadd.f32 %v5890, %v6166
      %v6168 = vpop.f32.mrb[0].mxu0
      %6169 = vmatprep.mubr.f32.mxu0 0.0
      %6170 = vmatmul.mubr.f32.gmra.mrb[0].mxu0 %v5951
      %v6171 = vpop.f32.mrb[0].mxu0
      %v6172 = vadd.f32 %v5890, %v6171
      %v6173 = vpop.f32.mrb[0].mxu0
      %6174 = vmatprep.mubr.f32.mxu0 0.0
      %6175 = vmatmul.mubr.f32.gmra.mrb[0].mxu0 %v5953
      %v6176 = vpop.f32.mrb[0].mxu0
      %v6177 = vadd.f32 %v5890, %v6176
      %v6178 = vpop.f32.mrb[0].mxu0
      %6179 = vmatprep.mubr.f32.mxu0 0.0
      %6180 = vmatmul.mubr.f32.gmra.mrb[0].mxu0 %v5955
      %v6181 = vpop.f32.mrb[0].mxu0
      %v6182 = vadd.f32 %v5890, %v6181
      %v6183 = vpop.f32.mrb[0].mxu0
      %6184 = vdwg.mxu0
      %v6185 = vmax.f32 %v6027, 0.0
      %v6186 = vmax.f32 %v6032, 0.0
      %v6187 = vmax.f32 %v6037, 0.0
      %v6188 = vmax.f32 %v6042, 0.0
      %v6189 = vmax.f32 %v6047, 0.0
      %v6190 = vmax.f32 %v6052, 0.0
      %v6191 = vmax.f32 %v6057, 0.0
      %v6192 = vmax.f32 %v6062, 0.0
      %v6193 = vmax.f32 %v6067, 0.0
      %v6194 = vmax.f32 %v6072, 0.0
      %v6195 = vmax.f32 %v6077, 0.0
      %v6196 = vmax.f32 %v6082, 0.0
      %v6197 = vmax.f32 %v6087, 0.0
      %v6198 = vmax.f32 %v6092, 0.0
      %v6199 = vmax.f32 %v6097, 0.0
      %v6200 = vmax.f32 %v6102, 0.0
      %v6201 = vmax.f32 %v6107, 0.0
      %v6202 = vmax.f32 %v6112, 0.0
      %v6203 = vmax.f32 %v6117, 0.0
      %v6204 = vmax.f32 %v6122, 0.0
      %v6205 = vmax.f32 %v6127, 0.0
      %v6206 = vmax.f32 %v6132, 0.0
      %v6207 = vmax.f32 %v6137, 0.0
      %v6208 = vmax.f32 %v6142, 0.0
      %v6209 = vmax.f32 %v6147, 0.0
      %v6210 = vmax.f32 %v6152, 0.0
      %v6211 = vmax.f32 %v6157, 0.0
      %v6212 = vmax.f32 %v6162, 0.0
      %v6213 = vmax.f32 %v6167, 0.0
      %v6214 = vmax.f32 %v6172, 0.0
      %v6215 = vmax.f32 %v6177, 0.0
      %v6216 = vmax.f32 %v6182, 0.0
      %6217 = vxpose.xlu0.b32.start [1/16] %v6185, 128
      %6218 = vxpose.xlu0.b32.cont [2/16] %v6186, 128
      %6219 = vxpose.xlu0.b32.cont [3/16] %v6187, 128
      %6220 = vxpose.xlu0.b32.cont [4/16] %v6188, 128
      %6221 = vxpose.xlu0.b32.cont [5/16] %v6189, 128
      %6222 = vxpose.xlu0.b32.cont [6/16] %v6190, 128
      %6223 = vxpose.xlu0.b32.cont [7/16] %v6191, 128
      %6224 = vxpose.xlu0.b32.cont [8/16] %v6192, 128
      %6225 = vxpose.xlu0.b32.cont [9/16] %v6193, 128
      %6226 = vxpose.xlu0.b32.cont [10/16] %v6194, 128
      %6227 = vxpose.xlu0.b32.cont [11/16] %v6195, 128
      %6228 = vxpose.xlu0.b32.cont [12/16] %v6196, 128
      %6229 = vxpose.xlu0.b32.cont [13/16] %v6197, 128
      %6230 = vxpose.xlu0.b32.cont [14/16] %v6198, 128
      %6231 = vxpose.xlu0.b32.cont [15/16] %v6199, 128
      %6232 = vxpose.xlu0.b32.end [16/16] %v6200, 128
      %v6233 = vpop.trf.xlu0
      %v6234 = vpop.trf.xlu0
      %v6235 = vpop.trf.xlu0
      %v6236 = vpop.trf.xlu0
      %v6237 = vpop.trf.xlu0
      %v6238 = vpop.trf.xlu0
      %v6239 = vpop.trf.xlu0
      %v6240 = vpop.trf.xlu0
      %v6241 = vpop.trf.xlu0
      %v6242 = vpop.trf.xlu0
      %v6243 = vpop.trf.xlu0
      %v6244 = vpop.trf.xlu0
      %v6245 = vpop.trf.xlu0
      %v6246 = vpop.trf.xlu0
      %v6247 = vpop.trf.xlu0
      %v6248 = vpop.trf.xlu0
      %6249 = vxpose.xlu0.b32.start [1/16] %v6201, 128
      %6250 = vxpose.xlu0.b32.cont [2/16] %v6202, 128
      %6251 = vxpose.xlu0.b32.cont [3/16] %v6203, 128
      %6252 = vxpose.xlu0.b32.cont [4/16] %v6204, 128
      %6253 = vxpose.xlu0.b32.cont [5/16] %v6205, 128
      %6254 = vxpose.xlu0.b32.cont [6/16] %v6206, 128
      %6255 = vxpose.xlu0.b32.cont [7/16] %v6207, 128
      %6256 = vxpose.xlu0.b32.cont [8/16] %v6208, 128
      %6257 = vxpose.xlu0.b32.cont [9/16] %v6209, 128
      %6258 = vxpose.xlu0.b32.cont [10/16] %v6210, 128
      %6259 = vxpose.xlu0.b32.cont [11/16] %v6211, 128
      %6260 = vxpose.xlu0.b32.cont [12/16] %v6212, 128
      %6261 = vxpose.xlu0.b32.cont [13/16] %v6213, 128
      %6262 = vxpose.xlu0.b32.cont [14/16] %v6214, 128
      %6263 = vxpose.xlu0.b32.cont [15/16] %v6215, 128
      %6264 = vxpose.xlu0.b32.end [16/16] %v6216, 128
      %v6265 = vpop.trf.xlu0
      %v6266 = vpop.trf.xlu0
      %v6267 = vpop.trf.xlu0
      %v6268 = vpop.trf.xlu0
      %v6269 = vpop.trf.xlu0
      %v6270 = vpop.trf.xlu0
      %v6271 = vpop.trf.xlu0
      %v6272 = vpop.trf.xlu0
      %v6273 = vpop.trf.xlu0
      %v6274 = vpop.trf.xlu0
      %v6275 = vpop.trf.xlu0
      %v6276 = vpop.trf.xlu0
      %v6277 = vpop.trf.xlu0
      %v6278 = vpop.trf.xlu0
      %v6279 = vpop.trf.xlu0
      %v6280 = vpop.trf.xlu0
      %6281 = vst [vmem:[%s224] sm:$0xff] %v6233
      %6282 = vst [vmem:[%s224 + $0x8] sm:$0xff] %v6265
      %p6283 = scmp.lt.s32.totalorder %s16, 1
      %s6284 = scalar_select %p6283, %s16, 1
      %s6285 = smul.addr %s6284, 2
      %s6286 = smul.addr %s6285, 8
      %s6287 = scalar_lea.vmem %s5, %s6286
      // Predicated region
      $region41: #{_lambda_.1} parent=39 // pred_check
        %p6288 = pneg %p144
      $region42: #{_lambda_.1} parent=39 // pred_check_branch
        %6290 = sbr.rel (%p6288) target = $region44
      $region43: #{_lambda_.1} parent=39 // pred_region
        _
      $region44: #{_lambda_.1} parent=39 // pred_fallthru
        _
    $region40: #{_lambda_.1} parent=5 // pred_fallthru
      _
    %p6291 = scmp.le.s32.totalorder 2, %s11
    // Predicated region
    $region45: #{_lambda_.1} parent=5 // pred_check
      %p6292 = pneg %p6291
    $region46: #{_lambda_.1} parent=5 // pred_check_branch
      %6294 = sbr.rel (%p6292) target = $region48
    $region47: #{_lambda_.1} parent=5 // pred_region
      %s6295 = ssub.s32 %s11, 2
      // Predicated region
      $region49: #{_lambda_.1} parent=47 // pred_check
        %p6296 = pneg %p150
      $region50: #{_lambda_.1} parent=47 // pred_check_branch
        %6298 = sbr.rel (%p6296) target = $region52
      $region51: #{_lambda_.1} parent=47 // pred_region
        %p6299 = scmp.lt.s32.totalorder %s17, 1
        %s6300 = scalar_select %p6299, %s17, 1
        %s6301 = smul.addr %s6300, 2
        %s6302 = smul.addr %s6301, 8
        %s6303 = scalar_lea.vmem %s5, %s6302
      $region52: #{_lambda_.1} parent=47 // pred_fallthru
        _
    $region48: #{_lambda_.1} parent=5 // pred_fallthru
      _
  $region6: #{_lambda_.1} parent=0 // loop_footer
    %s15 = sadd.s32 1, %s11
  $region7: #{_lambda_.1} parent=0 // loop_footer_branch
    %10 = sbr.rel target = $region3
  $region8: #{_lambda_.1} parent=0 // loop_exit
    _

</llo_original>
